<compile_context>
chip_gen: v5e
topology: v5e:2x2
jax: 0.10.0
libtpu: 0.0.40
codegen_flags: <defaults>
</compile_context>

<pallas_src>
import functools

import jax
import jax.numpy as jnp
from jax.experimental import pallas as pl
from jax.experimental.pallas import tpu as pltpu


def _round_up(n, m):
    return ((n + m - 1) // m) * m


def _convnext_block_kernel(x_ref, lh_ref, rh_ref, dww_ref, dwb_ref,
                           win_ref, bin_ref, wout_ref, bout_ref,
                           out_ref, ext_ref, *,
                           kernel_size, eps, halo, mxu_dtype, gelu_approximate):
    """One (batch, length-tile) grid step.

    x_ref    : (1, TL, C)    main tile (channel-last)
    lh_ref   : (1, HALO, C)  rows [l*TL - HALO, l*TL) of x (clamped; junk at l==0)
    rh_ref   : (1, HALO, C)  rows [(l+1)*TL, (l+1)*TL + HALO) (clamped; junk at last)
    dww_ref  : (K, C)        depthwise weights (torch (C, 1, K) transposed)
    dwb_ref  : (1, C)        depthwise bias
    win_ref  : (C, H)        pointwise-in weight, LN-affine folded in (bf16/f32)
    bin_ref  : (1, H)        pointwise-in bias, LN-affine folded in (f32)
    wout_ref : (H, C)        pointwise-out weight, layer-scale folded in (bf16/f32)
    bout_ref : (1, C)        pointwise-out bias, layer-scale folded in (f32)
    out_ref  : (1, TL, C)
    ext_ref  : (TL + 2*HALO, C) f32 VMEM scratch (halo-extended tile)
    """
    P = kernel_size // 2
    TL = out_ref.shape[1]
    C = out_ref.shape[2]
    N = TL + 2 * halo
    l_idx = pl.program_id(1)
    n_l = pl.num_programs(1)

    # ---- Params, loaded once. -----------------------------------------------
    dww = dww_ref[...].astype(jnp.float32)         # (K, C)
    dwb = dwb_ref[...].astype(jnp.float32)         # (1, C)
    b_in = bin_ref[...]
    b_out = bout_ref[...]

    xf = x_ref[0].astype(jnp.float32)              # (TL, C), also the residual

    # ---- Assemble halo-extended tile (all stores sublane-aligned). ----------
    @pl.when(l_idx > 0)
    def _():
        ext_ref[0:halo, :] = lh_ref[0].astype(jnp.float32)

    @pl.when(l_idx == 0)
    def _():
        ext_ref[0:halo, :] = jnp.zeros((halo, C), jnp.float32)

    ext_ref[halo:halo + TL, :] = xf

    @pl.when(l_idx < n_l - 1)
    def _():
        ext_ref[halo + TL:, :] = rh_ref[0].astype(jnp.float32)

    @pl.when(l_idx == n_l - 1)
    def _():
        ext_ref[halo + TL:, :] = jnp.zeros((halo, C), jnp.float32)

    # ---- Depthwise conv1d: y[j, c] = sum_k ext[halo - P + j + k, c] * w[k, c]
    # One aligned load of ext, then XLU roll shifts for the misaligned taps.
    ext = ext_ref[...]                             # (N, C)
    acc = jnp.zeros((TL, C), jnp.float32)
    for k in range(kernel_size):
        d = halo - P + k
        if d == halo:
            win = xf                               # center tap == main tile
        elif d % 8 == 0:
            win = ext[d:d + TL, :]                 # sublane-aligned slice
        else:
            win = pltpu.roll(ext, N - d, axis=0)[:TL, :]
        acc = acc + win * dww[k:k + 1, :]
    y = acc + dwb

    # ---- LayerNorm over channels (one-pass stats; affine folded into w_in). -
    mean = jnp.mean(y, axis=-1, keepdims=True)
    msq = jnp.mean(y * y, axis=-1, keepdims=True)
    var = msq - mean * mean
    y = (y - mean) * jax.lax.rsqrt(var + eps)

    # ---- Pointwise in (C->H), GELU, pointwise out (H->C); bf16 MXU, f32 acc. -
    h = jnp.dot(y.astype(mxu_dtype), win_ref[...],
                preferred_element_type=jnp.float32) + b_in
    h = jax.nn.gelu(h, approximate=gelu_approximate)
    o = jnp.dot(h.astype(mxu_dtype), wout_ref[...],
                preferred_element_type=jnp.float32) + b_out

    # ---- Residual (tile already in VMEM); layer scale is folded into w_out. -
    out_ref[0] = (o + xf).astype(out_ref.dtype)


def convnext_block_1d_nlc(x_nlc, params, kernel_size, eps=1e-5, tile_l=512,
                          use_bf16_matmul=True, gelu_approximate=True):
    """Channel-last entry point: x_nlc (B, L, C) -> (B, L, C) (same dtype)."""
    B, L, C = x_nlc.shape
    P = kernel_size // 2
    H = params["w_in"].shape[1]
    io_bytes = jnp.dtype(x_nlc.dtype).itemsize

    assert tile_l % 8 == 0, "tile_l must be a multiple of 8 (sublanes)"
    HALO = _round_up(max(P, 1), 8)
    TL = min(tile_l, _round_up(L, 8))
    if B == 1 and L > HALO:
        # v7x: keep >= 2 length tiles so both TensorCores get parallel work.
        TL = min(TL, max(HALO, _round_up((L + 1) // 2, 8)))
    TL = _round_up(max(TL, HALO), HALO)
    Lp = _round_up(L, TL)
    nL = Lp // TL
    assert P <= HALO <= TL, "halo must come from a single neighbor tile"

    if Lp != L:  # pad L up to a tile multiple (zeros; extra rows are dropped)
        x_nlc = jnp.pad(x_nlc, ((0, 0), (0, Lp - L), (0, 0)))

    # ---- Fold LN affine into w_in/b_in and layer scale into w_out/b_out. ----
    lnw = params["ln_w"].reshape(-1).astype(jnp.float32)       # (C,)
    lnb = params["ln_b"].reshape(-1).astype(jnp.float32)       # (C,)
    scale = params["scale"].reshape(-1).astype(jnp.float32)    # (C,)
    w_in = params["w_in"].astype(jnp.float32)                  # (C, H)
    w_out = params["w_out"].astype(jnp.float32)                # (H, C)
    b_in = params["b_in"].astype(jnp.float32).reshape(1, -1)   # (1, H)
    b_out = params["b_out"].astype(jnp.float32).reshape(1, -1)  # (1, C)

    w_in_f = lnw[:, None] * w_in
    b_in_f = b_in + (lnb @ w_in)[None, :]
    w_out_f = w_out * scale[None, :]
    b_out_f = b_out * scale[None, :]

    mxu_dtype = jnp.bfloat16 if use_bf16_matmul else jnp.float32
    w_in_f = w_in_f.astype(mxu_dtype)
    w_out_f = w_out_f.astype(mxu_dtype)
    w_bytes = 2 if use_bf16_matmul else 4

    dw_w = params["dw_w"].astype(jnp.float32)                  # (K, C)
    dw_b = params["dw_b"].astype(jnp.float32).reshape(1, -1)   # (1, C)

    kern = functools.partial(_convnext_block_kernel, kernel_size=kernel_size,
                             eps=eps, halo=HALO, mxu_dtype=mxu_dtype,
                             gelu_approximate=gelu_approximate)

    def rep(shape):  # replicated (weight/bias) blocks, full-array extent
        return pl.BlockSpec(shape, lambda b, l: (0, 0))

    # Halos read directly from x via clamped, shifted block index maps
    # (in units of HALO rows); boundary tiles are zero-filled in-kernel.
    tl_blocks = TL // HALO
    n_halo_blocks = Lp // HALO
    left_spec = pl.BlockSpec(
        (1, HALO, C),
        lambda b, l: (b, jnp.maximum(l * tl_blocks - 1, 0), 0))
    right_spec = pl.BlockSpec(
        (1, HALO, C),
        lambda b, l: (b, jnp.minimum((l + 1) * tl_blocks, n_halo_blocks - 1), 0))

    flops = 2 * B * Lp * C * kernel_size + 4 * B * Lp * C * H
    transcendentals = B * Lp * (H + 1)
    bytes_accessed = (2 * B * Lp * C * io_bytes                 # activation in + out
                      + 2 * B * nL * HALO * C * io_bytes        # halo re-reads
                      + 2 * C * H * w_bytes                     # pointwise weights
                      + 4 * (kernel_size + 2) * C + 4 * H)      # small params

    out = pl.pallas_call(
        kern,
        out_shape=jax.ShapeDtypeStruct((B, Lp, C), x_nlc.dtype),
        grid=(B, nL),
        in_specs=[
            pl.BlockSpec((1, TL, C), lambda b, l: (b, l, 0)),   # main tile
            left_spec,                                          # left halo (from x)
            right_spec,                                         # right halo (from x)
            rep((kernel_size, C)),                              # depthwise w
            rep((1, C)),                                        # depthwise b
            rep((C, H)),                                        # pointwise-in w (folded)
            rep((1, H)),                                        # pointwise-in b (folded)
            rep((H, C)),                                        # pointwise-out w (folded)
            rep((1, C)),                                        # pointwise-out b (folded)
        ],
        out_specs=pl.BlockSpec((1, TL, C), lambda b, l: (b, l, 0)),
        scratch_shapes=[pltpu.VMEM((TL + 2 * HALO, C), jnp.float32)],
        compiler_params=pltpu.CompilerParams(
            dimension_semantics=("parallel", "parallel")),
        cost_estimate=pl.CostEstimate(flops=flops,
                                      transcendentals=transcendentals,
                                      bytes_accessed=bytes_accessed),
    )(x_nlc, x_nlc, x_nlc, dw_w, dw_b, w_in_f, b_in_f, w_out_f, b_out_f)

    if Lp != L:
        out = out[:, :L, :]
    return out


def convnext_block_1d(x, params, kernel_size, eps=1e-5, tile_l=512,
                      use_bf16_matmul=True, gelu_approximate=True):
    """PyTorch-layout wrapper: x (B, C, L) -> (B, C, L).

    Transposes here are interface glue for NCL parity; use
    `convnext_block_1d_nlc` directly when activations are already channel-last.
    """
    x_nlc = jnp.transpose(x, (0, 2, 1))
    out = convnext_block_1d_nlc(x_nlc, params, kernel_size, eps=eps,
                                tile_l=tile_l, use_bf16_matmul=use_bf16_matmul,
                                gelu_approximate=gelu_approximate)
    return jnp.transpose(out, (0, 2, 1))


def convnext_block_1d_ref(x, params, kernel_size, eps=1e-5,
                          gelu_approximate=False):
    """Pure-JAX (f32) reference. gelu_approximate=False == torch F.gelu default."""
    B, C, L = x.shape
    P = kernel_size // 2
    xt = jnp.transpose(x, (0, 2, 1)).astype(jnp.float32)       # (B, L, C)
    xp = jnp.pad(xt, ((0, 0), (P, P), (0, 0)))
    y = jnp.zeros((B, L, C), jnp.float32)
    for k in range(kernel_size):
        y = y + xp[:, k:k + L, :] * params["dw_w"][k][None, None, :]
    y = y + params["dw_b"]
    mean = y.mean(-1, keepdims=True)
    var = ((y - mean) ** 2).mean(-1, keepdims=True)
    y = (y - mean) / jnp.sqrt(var + eps) * params["ln_w"] + params["ln_b"]
    h = jax.nn.gelu(y @ params["w_in"] + params["b_in"],
                    approximate=gelu_approximate)
    o = h @ params["w_out"] + params["b_out"]
    o = params["scale"] * o + xt
    return jnp.transpose(o, (0, 2, 1))


def make_params(key, num_features, bottleneck_channels, kernel_size, scale=1e-2):
    """Deterministic synthetic parameters (shapes follow ConvNeXtBlock1d.__init__)."""
    C, H, K = num_features, bottleneck_channels, kernel_size
    k1, k2, k3, k4, k5, k6, k7, k8 = jax.random.split(key, 8)
    # torch depthwise weight (C, 1, K) -> stored transposed as (K, C)
    dw_w = (jax.random.normal(k1, (C, K), jnp.float32) * 0.2).T
    dw_b = jax.random.normal(k2, (1, C), jnp.float32) * 0.1
    ln_w = 1.0 + 0.1 * jax.random.normal(k7, (1, C), jnp.float32)
    ln_b = 0.1 * jax.random.normal(k8, (1, C), jnp.float32)
    # torch pointwise-in weight (H, C, 1) -> stored as (C, H)
    w_in = (jax.random.normal(k3, (H, C), jnp.float32) * (1.0 / jnp.sqrt(C))).T
    b_in = jax.random.normal(k4, (1, H), jnp.float32) * 0.1
    # torch pointwise-out weight (C, H, 1) -> stored as (H, C)
    w_out = (jax.random.normal(k5, (C, H), jnp.float32) * (1.0 / jnp.sqrt(H))).T
    b_out = jax.random.normal(k6, (1, C), jnp.float32) * 0.1
    scale_p = jnp.full((1, C), scale, jnp.float32)
    return {"dw_w": dw_w, "dw_b": dw_b, "ln_w": ln_w, "ln_b": ln_b,
            "w_in": w_in, "b_in": b_in, "w_out": w_out, "b_out": b_out,
            "scale": scale_p}


if __name__ == "__main__":
    batch_size = 2
    num_features = 128          # C (lane-dense: multiple of 128)
    bottleneck_channels = 256   # H (lane-dense)
    length = 384                # L: not a tile multiple -> exercises pad path
    kernel_size = 7             # odd, as required by the module

    key = jax.random.PRNGKey(0)
    kx, kp = jax.random.split(key)
    x = jax.random.normal(kx, (batch_size, num_features, length), jnp.float32)
    params = make_params(kp, num_features, bottleneck_channels, kernel_size)

    # tile_l=256 -> grid (2, 2): exercises the cross-tile halo path too.
    fwd = jax.jit(functools.partial(convnext_block_1d, kernel_size=kernel_size,
                                    tile_l=256, use_bf16_matmul=True,
                                    gelu_approximate=True))
    out = jax.block_until_ready(fwd(x, params))
    assert out.shape == (batch_size, num_features, length)

    # Primary check: same GELU variant as the kernel (isolates kernel math).
    ref_tanh = convnext_block_1d_ref(x, params, kernel_size,
                                     gelu_approximate=True)
    err_tanh = jnp.max(jnp.abs(out - ref_tanh))
    assert jnp.allclose(out, ref_tanh, atol=2e-3, rtol=2e-3), \
        f"max abs err vs tanh-GELU ref: {err_tanh}"

    # Torch-parity check: exact erf GELU reference (tanh approx + bf16 MXU
    # error is attenuated by the 1e-2 layer scale).
    ref_erf = convnext_block_1d_ref(x, params, kernel_size,
                                    gelu_approximate=False)
    err_erf = jnp.max(jnp.abs(out - ref_erf))
    assert jnp.allclose(out, ref_erf, atol=5e-3, rtol=5e-3), \
        f"max abs err vs erf-GELU (torch) ref: {err_erf}"

    print("KERNEL_OK")
</pallas_src>

<mosaic_0001>
module attributes {stable_mosaic.version = 11 : i64} {
  func.func @_convnext_block_kernel(%arg0: i32, %arg1: i32, %arg2: memref<1x256x128xf32, #tpu.memory_space<vmem>>, %arg3: memref<1x8x128xf32, #tpu.memory_space<vmem>>, %arg4: memref<1x8x128xf32, #tpu.memory_space<vmem>>, %arg5: memref<7x128xf32, #tpu.memory_space<vmem>>, %arg6: memref<1x128xf32, #tpu.memory_space<vmem>>, %arg7: memref<128x256xbf16, #tpu.memory_space<vmem>>, %arg8: memref<1x256xf32, #tpu.memory_space<vmem>>, %arg9: memref<256x128xbf16, #tpu.memory_space<vmem>>, %arg10: memref<1x128xf32, #tpu.memory_space<vmem>>, %arg11: memref<1x256x128xf32, #tpu.memory_space<vmem>>, %arg12: memref<272x128xf32, #tpu.memory_space<vmem>>) attributes {dimension_semantics = [#tpu.dimension_semantics<parallel>, #tpu.dimension_semantics<parallel>], iteration_bounds = array<i64: 2, 2>, scalar_prefetch = 0 : i64, scratch_operands = 1 : i64, tpu.core_type = #tpu.core_type<tc>, window_params = [{transform_indices = @transform_0, window_bounds = array<i64: 1, 256, 128>}, {transform_indices = @transform_1, window_bounds = array<i64: 1, 8, 128>}, {transform_indices = @transform_2, window_bounds = array<i64: 1, 8, 128>}, {pipeline_mode = #tpu.pipeline_mode<synchronous>, transform_indices = @transform_3, window_bounds = array<i64: 7, 128>}, {pipeline_mode = #tpu.pipeline_mode<synchronous>, transform_indices = @transform_4, window_bounds = array<i64: 1, 128>}, {pipeline_mode = #tpu.pipeline_mode<synchronous>, transform_indices = @transform_5, window_bounds = array<i64: 128, 256>}, {pipeline_mode = #tpu.pipeline_mode<synchronous>, transform_indices = @transform_6, window_bounds = array<i64: 1, 256>}, {pipeline_mode = #tpu.pipeline_mode<synchronous>, transform_indices = @transform_7, window_bounds = array<i64: 256, 128>}, {pipeline_mode = #tpu.pipeline_mode<synchronous>, transform_indices = @transform_8, window_bounds = array<i64: 1, 128>}, {transform_indices = @transform_9, window_bounds = array<i64: 1, 256, 128>}]} {
    %c0 = arith.constant 0 : index
    %c0_0 = arith.constant 0 : index
    %0 = vector.load %arg5[%c0, %c0_0] : memref<7x128xf32, #tpu.memory_space<vmem>>, vector<7x128xf32>
    %c0_1 = arith.constant 0 : index
    %c0_2 = arith.constant 0 : index
    %1 = vector.load %arg6[%c0_1, %c0_2] : memref<1x128xf32, #tpu.memory_space<vmem>>, vector<1x128xf32>
    %c0_3 = arith.constant 0 : index
    %c0_4 = arith.constant 0 : index
    %2 = vector.load %arg8[%c0_3, %c0_4] : memref<1x256xf32, #tpu.memory_space<vmem>>, vector<1x256xf32>
    %c0_5 = arith.constant 0 : index
    %c0_6 = arith.constant 0 : index
    %3 = vector.load %arg10[%c0_5, %c0_6] : memref<1x128xf32, #tpu.memory_space<vmem>>, vector<1x128xf32>
    %c0_7 = arith.constant 0 : index
    %c0_8 = arith.constant 0 : index
    %c0_9 = arith.constant 0 : index
    %4 = vector.load %arg2[%c0_7, %c0_8, %c0_9] : memref<1x256x128xf32, #tpu.memory_space<vmem>>, vector<1x256x128xf32>
    %5 = vector.shape_cast %4 : vector<1x256x128xf32> to vector<256x128xf32>
    %c0_i32 = arith.constant 0 : i32
    %6 = arith.cmpi sgt, %arg1, %c0_i32 : i32
    %7 = arith.extui %6 : i1 to i32
    %c0_i32_10 = arith.constant 0 : i32
    %8 = arith.cmpi ne, %7, %c0_i32_10 : i32
    scf.if %8 {
      %c0_37 = arith.constant 0 : index
      %c0_38 = arith.constant 0 : index
      %c0_39 = arith.constant 0 : index
      %108 = vector.load %arg3[%c0_37, %c0_38, %c0_39] : memref<1x8x128xf32, #tpu.memory_space<vmem>>, vector<1x8x128xf32>
      %109 = vector.shape_cast %108 : vector<1x8x128xf32> to vector<8x128xf32>
      %c0_40 = arith.constant 0 : index
      %c0_41 = arith.constant 0 : index
      %110 = vector.load %arg12[%c0_40, %c0_41] : memref<272x128xf32, #tpu.memory_space<vmem>>, vector<8x128xf32>
      tpu.vector_store %arg12[%c0_40, %c0_41], %109 {strides = array<i32>} : memref<272x128xf32, #tpu.memory_space<vmem>>, vector<8x128xf32>,
    } else {
    }
    %c0_i32_11 = arith.constant 0 : i32
    %9 = arith.cmpi eq, %arg1, %c0_i32_11 : i32
    %10 = arith.extui %9 : i1 to i32
    %c0_i32_12 = arith.constant 0 : i32
    %11 = arith.cmpi ne, %10, %c0_i32_12 : i32
    scf.if %11 {
      %cst_37 = arith.constant 0.000000e+00 : f32
      %108 = vector.broadcast %cst_37 : f32 to vector<8x128xf32>
      %c0_38 = arith.constant 0 : index
      %c0_39 = arith.constant 0 : index
      %109 = vector.load %arg12[%c0_38, %c0_39] : memref<272x128xf32, #tpu.memory_space<vmem>>, vector<8x128xf32>
      tpu.vector_store %arg12[%c0_38, %c0_39], %108 {strides = array<i32>} : memref<272x128xf32, #tpu.memory_space<vmem>>, vector<8x128xf32>,
    } else {
    }
    %c8 = arith.constant 8 : index
    %c0_13 = arith.constant 0 : index
    %12 = vector.load %arg12[%c8, %c0_13] : memref<272x128xf32, #tpu.memory_space<vmem>>, vector<256x128xf32>
    tpu.vector_store %arg12[%c8, %c0_13], %5 {strides = array<i32>} : memref<272x128xf32, #tpu.memory_space<vmem>>, vector<256x128xf32>,
    %c1_i32 = arith.constant 1 : i32
    %13 = arith.cmpi slt, %arg1, %c1_i32 : i32
    %14 = arith.extui %13 : i1 to i32
    %c0_i32_14 = arith.constant 0 : i32
    %15 = arith.cmpi ne, %14, %c0_i32_14 : i32
    scf.if %15 {
      %c0_37 = arith.constant 0 : index
      %c0_38 = arith.constant 0 : index
      %c0_39 = arith.constant 0 : index
      %108 = vector.load %arg4[%c0_37, %c0_38, %c0_39] : memref<1x8x128xf32, #tpu.memory_space<vmem>>, vector<1x8x128xf32>
      %109 = vector.shape_cast %108 : vector<1x8x128xf32> to vector<8x128xf32>
      %c264 = arith.constant 264 : index
      %c0_40 = arith.constant 0 : index
      %110 = vector.load %arg12[%c264, %c0_40] : memref<272x128xf32, #tpu.memory_space<vmem>>, vector<8x128xf32>
      tpu.vector_store %arg12[%c264, %c0_40], %109 {strides = array<i32>} : memref<272x128xf32, #tpu.memory_space<vmem>>, vector<8x128xf32>,
    } else {
    }
    %c1_i32_15 = arith.constant 1 : i32
    %16 = arith.cmpi eq, %arg1, %c1_i32_15 : i32
    %17 = arith.extui %16 : i1 to i32
    %c0_i32_16 = arith.constant 0 : i32
    %18 = arith.cmpi ne, %17, %c0_i32_16 : i32
    scf.if %18 {
      %cst_37 = arith.constant 0.000000e+00 : f32
      %108 = vector.broadcast %cst_37 : f32 to vector<8x128xf32>
      %c264 = arith.constant 264 : index
      %c0_38 = arith.constant 0 : index
      %109 = vector.load %arg12[%c264, %c0_38] : memref<272x128xf32, #tpu.memory_space<vmem>>, vector<8x128xf32>
      tpu.vector_store %arg12[%c264, %c0_38], %108 {strides = array<i32>} : memref<272x128xf32, #tpu.memory_space<vmem>>, vector<8x128xf32>,
    } else {
    }
    %c0_17 = arith.constant 0 : index
    %c0_18 = arith.constant 0 : index
    %19 = vector.load %arg12[%c0_17, %c0_18] : memref<272x128xf32, #tpu.memory_space<vmem>>, vector<272x128xf32>
    %cst = arith.constant 0.000000e+00 : f32
    %20 = vector.broadcast %cst : f32 to vector<256x128xf32>
    %c267_i32 = arith.constant 267 : i32
    %21 = tpu.dynamic_rotate %19 by %c267_i32 dim 0 : vector<272x128xf32>, i32 -> vector<272x128xf32>
    %22 = vector.extract_strided_slice %21 {offsets = [0, 0], sizes = [256, 128], strides = [1, 1]} : vector<272x128xf32> to vector<256x128xf32>
    %23 = vector.extract_strided_slice %0 {offsets = [0, 0], sizes = [1, 128], strides = [1, 1]} : vector<7x128xf32> to vector<1x128xf32>
    %24 = vector.broadcast %23 : vector<1x128xf32> to vector<256x128xf32>
    %25 = arith.mulf %22, %24 : vector<256x128xf32>
    %26 = arith.addf %20, %25 : vector<256x128xf32>
    %c266_i32 = arith.constant 266 : i32
    %27 = tpu.dynamic_rotate %19 by %c266_i32 dim 0 : vector<272x128xf32>, i32 -> vector<272x128xf32>
    %28 = vector.extract_strided_slice %27 {offsets = [0, 0], sizes = [256, 128], strides = [1, 1]} : vector<272x128xf32> to vector<256x128xf32>
    %29 = vector.extract_strided_slice %0 {offsets = [1, 0], sizes = [1, 128], strides = [1, 1]} : vector<7x128xf32> to vector<1x128xf32>
    %30 = vector.broadcast %29 : vector<1x128xf32> to vector<256x128xf32>
    %31 = arith.mulf %28, %30 : vector<256x128xf32>
    %32 = arith.addf %26, %31 : vector<256x128xf32>
    %c265_i32 = arith.constant 265 : i32
    %33 = tpu.dynamic_rotate %19 by %c265_i32 dim 0 : vector<272x128xf32>, i32 -> vector<272x128xf32>
    %34 = vector.extract_strided_slice %33 {offsets = [0, 0], sizes = [256, 128], strides = [1, 1]} : vector<272x128xf32> to vector<256x128xf32>
    %35 = vector.extract_strided_slice %0 {offsets = [2, 0], sizes = [1, 128], strides = [1, 1]} : vector<7x128xf32> to vector<1x128xf32>
    %36 = vector.broadcast %35 : vector<1x128xf32> to vector<256x128xf32>
    %37 = arith.mulf %34, %36 : vector<256x128xf32>
    %38 = arith.addf %32, %37 : vector<256x128xf32>
    %39 = vector.extract_strided_slice %0 {offsets = [3, 0], sizes = [1, 128], strides = [1, 1]} : vector<7x128xf32> to vector<1x128xf32>
    %40 = vector.broadcast %39 : vector<1x128xf32> to vector<256x128xf32>
    %41 = arith.mulf %5, %40 : vector<256x128xf32>
    %42 = arith.addf %38, %41 : vector<256x128xf32>
    %c263_i32 = arith.constant 263 : i32
    %43 = tpu.dynamic_rotate %19 by %c263_i32 dim 0 : vector<272x128xf32>, i32 -> vector<272x128xf32>
    %44 = vector.extract_strided_slice %43 {offsets = [0, 0], sizes = [256, 128], strides = [1, 1]} : vector<272x128xf32> to vector<256x128xf32>
    %45 = vector.extract_strided_slice %0 {offsets = [4, 0], sizes = [1, 128], strides = [1, 1]} : vector<7x128xf32> to vector<1x128xf32>
    %46 = vector.broadcast %45 : vector<1x128xf32> to vector<256x128xf32>
    %47 = arith.mulf %44, %46 : vector<256x128xf32>
    %48 = arith.addf %42, %47 : vector<256x128xf32>
    %c262_i32 = arith.constant 262 : i32
    %49 = tpu.dynamic_rotate %19 by %c262_i32 dim 0 : vector<272x128xf32>, i32 -> vector<272x128xf32>
    %50 = vector.extract_strided_slice %49 {offsets = [0, 0], sizes = [256, 128], strides = [1, 1]} : vector<272x128xf32> to vector<256x128xf32>
    %51 = vector.extract_strided_slice %0 {offsets = [5, 0], sizes = [1, 128], strides = [1, 1]} : vector<7x128xf32> to vector<1x128xf32>
    %52 = vector.broadcast %51 : vector<1x128xf32> to vector<256x128xf32>
    %53 = arith.mulf %50, %52 : vector<256x128xf32>
    %54 = arith.addf %48, %53 : vector<256x128xf32>
    %c261_i32 = arith.constant 261 : i32
    %55 = tpu.dynamic_rotate %19 by %c261_i32 dim 0 : vector<272x128xf32>, i32 -> vector<272x128xf32>
    %56 = vector.extract_strided_slice %55 {offsets = [0, 0], sizes = [256, 128], strides = [1, 1]} : vector<272x128xf32> to vector<256x128xf32>
    %57 = vector.extract_strided_slice %0 {offsets = [6, 0], sizes = [1, 128], strides = [1, 1]} : vector<7x128xf32> to vector<1x128xf32>
    %58 = vector.broadcast %57 : vector<1x128xf32> to vector<256x128xf32>
    %59 = arith.mulf %56, %58 : vector<256x128xf32>
    %60 = arith.addf %54, %59 : vector<256x128xf32>
    %61 = vector.broadcast %1 : vector<1x128xf32> to vector<256x128xf32>
    %62 = arith.addf %60, %61 : vector<256x128xf32>
    %cst_19 = arith.constant dense<0.000000e+00> : vector<256xf32>
    %63 = vector.multi_reduction <add>, %62, %cst_19 [1] : vector<256x128xf32> to vector<256xf32>
    %64 = vector.shape_cast %63 : vector<256xf32> to vector<256x1xf32>
    %cst_20 = arith.constant 1.280000e+02 : f32
    %65 = vector.broadcast %cst_20 : f32 to vector<256x1xf32>
    %66 = arith.divf %64, %65 : vector<256x1xf32>
    %67 = arith.mulf %62, %62 : vector<256x128xf32>
    %cst_21 = arith.constant dense<0.000000e+00> : vector<256xf32>
    %68 = vector.multi_reduction <add>, %67, %cst_21 [1] : vector<256x128xf32> to vector<256xf32>
    %69 = vector.shape_cast %68 : vector<256xf32> to vector<256x1xf32>
    %cst_22 = arith.constant 1.280000e+02 : f32
    %70 = vector.broadcast %cst_22 : f32 to vector<256x1xf32>
    %71 = arith.divf %69, %70 : vector<256x1xf32>
    %72 = arith.mulf %66, %66 : vector<256x1xf32>
    %73 = arith.subf %71, %72 : vector<256x1xf32>
    %74 = vector.broadcast %66 : vector<256x1xf32> to vector<256x128xf32>
    %75 = arith.subf %62, %74 : vector<256x128xf32>
    %cst_23 = arith.constant 9.99999974E-6 : f32
    %76 = vector.broadcast %cst_23 : f32 to vector<256x1xf32>
    %77 = arith.addf %73, %76 : vector<256x1xf32>
    %78 = math.rsqrt %77 : vector<256x1xf32>
    %79 = vector.broadcast %78 : vector<256x1xf32> to vector<256x128xf32>
    %80 = arith.mulf %75, %79 : vector<256x128xf32>
    %81 = arith.truncf %80 : vector<256x128xf32> to vector<256x128xbf16>
    %c0_24 = arith.constant 0 : index
    %c0_25 = arith.constant 0 : index
    %82 = vector.load %arg7[%c0_24, %c0_25] : memref<128x256xbf16, #tpu.memory_space<vmem>>, vector<128x256xbf16>
    %cst_26 = arith.constant dense<0.000000e+00> : vector<256x256xf32>
    %83 = tpu.matmul %81, %82, %cst_26 {dimension_numbers = #tpu.dot_dimension_numbers<[1], [0], [0], [1], [0, 0, 1, 1], [], []>} : vector<256x128xbf16>, vector<128x256xbf16>, vector<256x256xf32> -> vector<256x256xf32>
    %84 = vector.broadcast %2 : vector<1x256xf32> to vector<256x256xf32>
    %85 = arith.addf %83, %84 : vector<256x256xf32>
    %86 = arith.mulf %85, %85 : vector<256x256xf32>
    %87 = arith.mulf %85, %86 : vector<256x256xf32>
    %cst_27 = arith.constant 4.471500e-02 : f32
    %88 = vector.broadcast %cst_27 : f32 to vector<256x256xf32>
    %89 = arith.mulf %88, %87 : vector<256x256xf32>
    %90 = arith.addf %85, %89 : vector<256x256xf32>
    %cst_28 = arith.constant 0.797884583 : f32
    %91 = vector.broadcast %cst_28 : f32 to vector<256x256xf32>
    %92 = arith.mulf %91, %90 : vector<256x256xf32>
    %93 = math.tanh %92 : vector<256x256xf32>
    %cst_29 = arith.constant 1.000000e+00 : f32
    %94 = vector.broadcast %cst_29 : f32 to vector<256x256xf32>
    %95 = arith.addf %94, %93 : vector<256x256xf32>
    %cst_30 = arith.constant 5.000000e-01 : f32
    %96 = vector.broadcast %cst_30 : f32 to vector<256x256xf32>
    %97 = arith.mulf %96, %95 : vector<256x256xf32>
    %98 = arith.mulf %85, %97 : vector<256x256xf32>
    %99 = arith.truncf %98 : vector<256x256xf32> to vector<256x256xbf16>
    %c0_31 = arith.constant 0 : index
    %c0_32 = arith.constant 0 : index
    %100 = vector.load %arg9[%c0_31, %c0_32] : memref<256x128xbf16, #tpu.memory_space<vmem>>, vector<256x128xbf16>
    %cst_33 = arith.constant dense<0.000000e+00> : vector<256x128xf32>
    %101 = tpu.matmul %99, %100, %cst_33 {dimension_numbers = #tpu.dot_dimension_numbers<[1], [0], [0], [1], [0, 0, 1, 1], [], []>} : vector<256x256xbf16>, vector<256x128xbf16>, vector<256x128xf32> -> vector<256x128xf32>
    %102 = vector.broadcast %3 : vector<1x128xf32> to vector<256x128xf32>
    %103 = arith.addf %101, %102 : vector<256x128xf32>
    %104 = arith.addf %103, %5 : vector<256x128xf32>
    %c0_34 = arith.constant 0 : index
    %c0_35 = arith.constant 0 : index
    %c0_36 = arith.constant 0 : index
    %105 = vector.load %arg11[%c0_34, %c0_35, %c0_36] : memref<1x256x128xf32, #tpu.memory_space<vmem>>, vector<1x256x128xf32>
    %106 = vector.shape_cast %105 : vector<1x256x128xf32> to vector<256x128xf32>
    %107 = vector.shape_cast %104 : vector<256x128xf32> to vector<1x256x128xf32>
    tpu.vector_store %arg11[%c0_34, %c0_35, %c0_36], %107 {strides = array<i32>} : memref<1x256x128xf32, #tpu.memory_space<vmem>>, vector<1x256x128xf32>,
    return
  }
  func.func @transform_0(%arg0: i32, %arg1: i32) -> (i32, i32, i32) {
    %c0_i32 = arith.constant 0 : i32
    %c0_i32_0 = arith.constant 0 : i32
    return %arg0, %arg1, %c0_i32 : i32, i32, i32
  }
  func.func @transform_1(%arg0: i32, %arg1: i32) -> (i32, i32, i32) {
    %c32_i32 = arith.constant 32 : i32
    %0 = arith.muli %arg1, %c32_i32 : i32
    %c1_i32 = arith.constant 1 : i32
    %1 = arith.subi %0, %c1_i32 : i32
    %c0_i32 = arith.constant 0 : i32
    %2 = arith.maxsi %1, %c0_i32 : i32
    %c0_i32_0 = arith.constant 0 : i32
    %c0_i32_1 = arith.constant 0 : i32
    return %arg0, %2, %c0_i32_0 : i32, i32, i32
  }
  func.func @transform_2(%arg0: i32, %arg1: i32) -> (i32, i32, i32) {
    %c1_i32 = arith.constant 1 : i32
    %0 = arith.addi %arg1, %c1_i32 : i32
    %c32_i32 = arith.constant 32 : i32
    %1 = arith.muli %0, %c32_i32 : i32
    %c63_i32 = arith.constant 63 : i32
    %2 = arith.minsi %1, %c63_i32 : i32
    %c0_i32 = arith.constant 0 : i32
    %c0_i32_0 = arith.constant 0 : i32
    return %arg0, %2, %c0_i32 : i32, i32, i32
  }
  func.func @transform_3(%arg0: i32, %arg1: i32) -> (i32, i32) {
    %c0_i32 = arith.constant 0 : i32
    %c0_i32_0 = arith.constant 0 : i32
    %c0_i32_1 = arith.constant 0 : i32
    return %c0_i32, %c0_i32_0 : i32, i32
  }
  func.func @transform_4(%arg0: i32, %arg1: i32) -> (i32, i32) {
    %c0_i32 = arith.constant 0 : i32
    %c0_i32_0 = arith.constant 0 : i32
    %c0_i32_1 = arith.constant 0 : i32
    return %c0_i32, %c0_i32_0 : i32, i32
  }
  func.func @transform_5(%arg0: i32, %arg1: i32) -> (i32, i32) {
    %c0_i32 = arith.constant 0 : i32
    %c0_i32_0 = arith.constant 0 : i32
    %c0_i32_1 = arith.constant 0 : i32
    return %c0_i32, %c0_i32_0 : i32, i32
  }
  func.func @transform_6(%arg0: i32, %arg1: i32) -> (i32, i32) {
    %c0_i32 = arith.constant 0 : i32
    %c0_i32_0 = arith.constant 0 : i32
    %c0_i32_1 = arith.constant 0 : i32
    return %c0_i32, %c0_i32_0 : i32, i32
  }
  func.func @transform_7(%arg0: i32, %arg1: i32) -> (i32, i32) {
    %c0_i32 = arith.constant 0 : i32
    %c0_i32_0 = arith.constant 0 : i32
    %c0_i32_1 = arith.constant 0 : i32
    return %c0_i32, %c0_i32_0 : i32, i32
  }
  func.func @transform_8(%arg0: i32, %arg1: i32) -> (i32, i32) {
    %c0_i32 = arith.constant 0 : i32
    %c0_i32_0 = arith.constant 0 : i32
    %c0_i32_1 = arith.constant 0 : i32
    return %c0_i32, %c0_i32_0 : i32, i32
  }
  func.func @transform_9(%arg0: i32, %arg1: i32) -> (i32, i32, i32) {
    %c0_i32 = arith.constant 0 : i32
    %c0_i32_0 = arith.constant 0 : i32
    return %arg0, %arg1, %c0_i32 : i32, i32, i32
  }
}

</mosaic_0001>

<llo_original>
// kernel: mul.17
$region0: #{mul.17}
  #allocation0 [shape = 's32[1]{0}', space=sflag, size = 0x4, scoped, tag = 'scoped memory for mul.17']
  %s0 = inlined_call_operand.vmem [shape: f32[1,128], index: 0, kind: input, shape index: {}]
  %s1 = inlined_call_operand.vmem [shape: f32[1,128], index: 1, kind: input, shape index: {}]
  %s2 = inlined_call_operand.vmem [shape: f32[1,128], index: 2, kind: output, shape index: {}]
  %v3 = vld [vmem:[%s0] sm:$0x1]
  %v4 = vld [vmem:[%s1] sm:$0x1]
  %5 = xla_tuple %v3, %v4
  %6 = xla_tuple %5
  %v7 = vmul.f32 %v3, %v4
  %8 = xla_tuple %v7
  %9 = vst [vmem:[%s2] sm:$0x1] %v7

// kernel: convnext_block_1d.1
$region0: #{convnext_block_1d.1}
  #allocation0 [shape = 'u32[]', space=smem, size = 0x4, offset = 0x4, fixed_abs, tag = 'smem constant byte address 0x4 - core index']
  #allocation1 [shape = 'u32[72,128]{1,0:T(1,128)}', space=vmem, size = 0x9000, scoped, tag = 'internal scratch']
  #allocation2 [shape = 'f32[272,128]{1,0:T(8,128)}', space=vmem, size = 0x22000, scoped, tag = 'scratch operand']
  %s0 = inlined_call_operand.vmem [shape: f32[2,512,128], index: 0, kind: input, shape index: {}, may-alias: {0,1,2}]
  %s1 = inlined_call_operand.vmem [shape: f32[2,512,128], index: 1, kind: input, shape index: {}, may-alias: {0,1,2}]
  %s2 = inlined_call_operand.vmem [shape: f32[2,512,128], index: 2, kind: input, shape index: {}, may-alias: {0,1,2}]
  %s3 = inlined_call_operand.vmem [shape: f32[7,128], index: 3, kind: input, shape index: {}]
  %s4 = inlined_call_operand.vmem [shape: f32[1,128], index: 4, kind: input, shape index: {}]
  %s5 = inlined_call_operand.vmem [shape: bf16[128,256], index: 5, kind: input, shape index: {}]
  %s6 = inlined_call_operand.vmem [shape: f32[1,256], index: 6, kind: input, shape index: {}]
  %s7 = inlined_call_operand.vmem [shape: bf16[256,128], index: 7, kind: input, shape index: {}]
  %s8 = inlined_call_operand.vmem [shape: f32[1,128], index: 8, kind: input, shape index: {}]
  %s9 = inlined_call_operand.vmem [shape: f32[2,512,128], index: 9, kind: output, shape index: {}]
  %s10 = sld [smem:[#allocation0]]
  $region85: #{convnext_block_1d.1} parent=0
    _
  %s12 = ssub.s32 1, %s10
  %s13 = scalar_select 0, %s12, %s10
  loop: start=0, step=1, limit=6
  $region2: #{convnext_block_1d.1} parent=0 // loop_pre_header
    _
  $region3: #{convnext_block_1d.1} parent=0 // loop_header
    %s15 = sphi 0, %s19
    %p16 = scmp.ge.s32.totalorder %s15, 6
    %s22 = sphi 0, %s34
    %s23 = sphi 0, %s30
    %s24 = sphi 0, %s22
    %s25 = sphi 0, %s23
    %s26 = sphi 0, %s24
    %s27 = sphi 0, %s25
    %s39 = sphi 0, %s41
    %s42 = sphi 0, %s39
    %s43 = sphi 0, %s42
    %s59 = sphi 0, %s43
    %s75 = sphi 0, %s77
    %s78 = sphi 0, %s75
    %s79 = sphi 0, %s78
    %s95 = sphi 0, %s79
    %s111 = sphi 0, %s113
    %s114 = sphi 0, %s111
    %s115 = sphi 0, %s114
    %s131 = sphi 0, %s115
    %s135 = sphi 0, %s135
    %s137 = sphi 0, %s135
    %s138 = sphi 0, %s137
    %s152 = sphi 0, %s138
    %s156 = sphi 0, %s156
    %s158 = sphi 0, %s156
    %s159 = sphi 0, %s158
    %s173 = sphi 0, %s159
    %s177 = sphi 0, %s177
    %s179 = sphi 0, %s177
    %s180 = sphi 0, %s179
    %s194 = sphi 0, %s180
    %s198 = sphi 0, %s198
    %s200 = sphi 0, %s198
    %s201 = sphi 0, %s200
    %s215 = sphi 0, %s201
    %s219 = sphi 0, %s219
    %s221 = sphi 0, %s219
    %s222 = sphi 0, %s221
    %s236 = sphi 0, %s222
    %s240 = sphi 0, %s240
    %s242 = sphi 0, %s240
    %s243 = sphi 0, %s242
    %s257 = sphi 0, %s243
    %s265 = sphi 0, %s267
    %s268 = sphi 0, %s265
    %s269 = sphi 0, %s268
    %s285 = sphi 0, %s269
  $region4: #{convnext_block_1d.1} parent=0 // loop_header_branch
    %18 = sbr.rel (%p16) target = $region8
  $region5: #{convnext_block_1d.1} parent=0 // loop_body
    %s20 = ssub.s32 %s15, 1
    %s21 = ssub.s32 %s15, 2
    %s28 = sadd.s32 1, %s23
    %p29 = scmp.ge.s32.totalorder %s28, 2
    %s30 = scalar_select %p29, 0, %s28
    %s31 = sadd.s32 1, %s22
    %s32 = scalar_select %p29, %s31, %s22
    %p33 = scmp.ge.s32.totalorder %s32, 2
    %s34 = scalar_select %p33, 0, %s32
    %s35 = ssub.s32 %s22, %s34
    %s36 = ssub.s32 %s23, %s30
    %s37 = sor.u32 %s35, %s36
    %p38 = scmp.eq.s32.totalorder %s37, 0
    %s40 = sadd.s32 %s39, 1
    %s41 = scalar_select %p38, %s39, %s40
    %p44 = pneg %p38
    %p45 = scmp.eq.s32.totalorder %s15, 3
    %p46 = por %p44, %p45
    %p47 = scmp.ne.s32.totalorder %s39, %s42
    %p48 = scmp.eq.s32.totalorder %s15, 0
    %p49 = por %p47, %p48
    %p50 = scmp.ne.s32.totalorder %s39, %s42
    %p51 = scmp.eq.s32.totalorder %s20, 3
    %p52 = por %p50, %p51
    %p53 = scmp.ne.s32.totalorder %s42, %s43
    %p54 = scmp.eq.s32.totalorder %s20, 0
    %p55 = por %p53, %p54
    %p56 = scmp.ne.s32.totalorder %s42, %s43
    %p57 = scmp.eq.s32.totalorder %s21, 3
    %p58 = por %p56, %p57
    %p60 = scmp.ne.s32.totalorder %s43, %s59
    %p61 = scmp.eq.s32.totalorder %s21, 0
    %p62 = por %p60, %p61
    %s63 = smul.u32 %s23, 32
    %s64 = ssub.s32 %s63, 1
    %p65 = scmp.gt.s32.totalorder %s64, 0
    %s66 = scalar_select %p65, %s64, 0
    %s67 = smul.u32 %s30, 32
    %s68 = ssub.s32 %s67, 1
    %p69 = scmp.gt.s32.totalorder %s68, 0
    %s70 = scalar_select %p69, %s68, 0
    %s71 = ssub.s32 %s22, %s34
    %s72 = ssub.s32 %s66, %s70
    %s73 = sor.u32 %s71, %s72
    %p74 = scmp.eq.s32.totalorder %s73, 0
    %s76 = sadd.s32 %s75, 1
    %s77 = scalar_select %p74, %s75, %s76
    %p80 = pneg %p74
    %p81 = scmp.eq.s32.totalorder %s15, 3
    %p82 = por %p80, %p81
    %p83 = scmp.ne.s32.totalorder %s75, %s78
    %p84 = scmp.eq.s32.totalorder %s15, 0
    %p85 = por %p83, %p84
    %p86 = scmp.ne.s32.totalorder %s75, %s78
    %p87 = scmp.eq.s32.totalorder %s20, 3
    %p88 = por %p86, %p87
    %p89 = scmp.ne.s32.totalorder %s78, %s79
    %p90 = scmp.eq.s32.totalorder %s20, 0
    %p91 = por %p89, %p90
    %p92 = scmp.ne.s32.totalorder %s78, %s79
    %p93 = scmp.eq.s32.totalorder %s21, 3
    %p94 = por %p92, %p93
    %p96 = scmp.ne.s32.totalorder %s79, %s95
    %p97 = scmp.eq.s32.totalorder %s21, 0
    %p98 = por %p96, %p97
    %s99 = sadd.s32 %s23, 1
    %s100 = smul.u32 %s99, 32
    %p101 = scmp.lt.s32.totalorder %s100, 63
    %s102 = scalar_select %p101, %s100, 63
    %s103 = sadd.s32 %s30, 1
    %s104 = smul.u32 %s103, 32
    %p105 = scmp.lt.s32.totalorder %s104, 63
    %s106 = scalar_select %p105, %s104, 63
    %s107 = ssub.s32 %s22, %s34
    %s108 = ssub.s32 %s102, %s106
    %s109 = sor.u32 %s107, %s108
    %p110 = scmp.eq.s32.totalorder %s109, 0
    %s112 = sadd.s32 %s111, 1
    %s113 = scalar_select %p110, %s111, %s112
    %p116 = pneg %p110
    %p117 = scmp.eq.s32.totalorder %s15, 3
    %p118 = por %p116, %p117
    %p119 = scmp.ne.s32.totalorder %s111, %s114
    %p120 = scmp.eq.s32.totalorder %s15, 0
    %p121 = por %p119, %p120
    %p122 = scmp.ne.s32.totalorder %s111, %s114
    %p123 = scmp.eq.s32.totalorder %s20, 3
    %p124 = por %p122, %p123
    %p125 = scmp.ne.s32.totalorder %s114, %s115
    %p126 = scmp.eq.s32.totalorder %s20, 0
    %p127 = por %p125, %p126
    %p128 = scmp.ne.s32.totalorder %s114, %s115
    %p129 = scmp.eq.s32.totalorder %s21, 3
    %p130 = por %p128, %p129
    %p132 = scmp.ne.s32.totalorder %s115, %s131
    %p133 = scmp.eq.s32.totalorder %s21, 0
    %p134 = por %p132, %p133
    %s136 = sadd.s32 %s135, 1
    %p139 = scmp.eq.s32.totalorder %s15, 3
    %p140 = scmp.ne.s32.totalorder %s135, %s137
    %p141 = scmp.eq.s32.totalorder %s15, 0
    %p142 = por %p140, %p141
    %p143 = scmp.ne.s32.totalorder %s135, %s137
    %p144 = scmp.eq.s32.totalorder %s20, 3
    %p145 = por %p143, %p144
    %p146 = scmp.ne.s32.totalorder %s137, %s138
    %p147 = scmp.eq.s32.totalorder %s20, 0
    %p148 = por %p146, %p147
    %p149 = scmp.ne.s32.totalorder %s137, %s138
    %p150 = scmp.eq.s32.totalorder %s21, 3
    %p151 = por %p149, %p150
    %p153 = scmp.ne.s32.totalorder %s138, %s152
    %p154 = scmp.eq.s32.totalorder %s21, 0
    %p155 = por %p153, %p154
    %s157 = sadd.s32 %s156, 1
    %p160 = scmp.eq.s32.totalorder %s15, 3
    %p161 = scmp.ne.s32.totalorder %s156, %s158
    %p162 = scmp.eq.s32.totalorder %s15, 0
    %p163 = por %p161, %p162
    %p164 = scmp.ne.s32.totalorder %s156, %s158
    %p165 = scmp.eq.s32.totalorder %s20, 3
    %p166 = por %p164, %p165
    %p167 = scmp.ne.s32.totalorder %s158, %s159
    %p168 = scmp.eq.s32.totalorder %s20, 0
    %p169 = por %p167, %p168
    %p170 = scmp.ne.s32.totalorder %s158, %s159
    %p171 = scmp.eq.s32.totalorder %s21, 3
    %p172 = por %p170, %p171
    %p174 = scmp.ne.s32.totalorder %s159, %s173
    %p175 = scmp.eq.s32.totalorder %s21, 0
    %p176 = por %p174, %p175
    %s178 = sadd.s32 %s177, 1
    %p181 = scmp.eq.s32.totalorder %s15, 3
    %p182 = scmp.ne.s32.totalorder %s177, %s179
    %p183 = scmp.eq.s32.totalorder %s15, 0
    %p184 = por %p182, %p183
    %p185 = scmp.ne.s32.totalorder %s177, %s179
    %p186 = scmp.eq.s32.totalorder %s20, 3
    %p187 = por %p185, %p186
    %p188 = scmp.ne.s32.totalorder %s179, %s180
    %p189 = scmp.eq.s32.totalorder %s20, 0
    %p190 = por %p188, %p189
    %p191 = scmp.ne.s32.totalorder %s179, %s180
    %p192 = scmp.eq.s32.totalorder %s21, 3
    %p193 = por %p191, %p192
    %p195 = scmp.ne.s32.totalorder %s180, %s194
    %p196 = scmp.eq.s32.totalorder %s21, 0
    %p197 = por %p195, %p196
    %s199 = sadd.s32 %s198, 1
    %p202 = scmp.eq.s32.totalorder %s15, 3
    %p203 = scmp.ne.s32.totalorder %s198, %s200
    %p204 = scmp.eq.s32.totalorder %s15, 0
    %p205 = por %p203, %p204
    %p206 = scmp.ne.s32.totalorder %s198, %s200
    %p207 = scmp.eq.s32.totalorder %s20, 3
    %p208 = por %p206, %p207
    %p209 = scmp.ne.s32.totalorder %s200, %s201
    %p210 = scmp.eq.s32.totalorder %s20, 0
    %p211 = por %p209, %p210
    %p212 = scmp.ne.s32.totalorder %s200, %s201
    %p213 = scmp.eq.s32.totalorder %s21, 3
    %p214 = por %p212, %p213
    %p216 = scmp.ne.s32.totalorder %s201, %s215
    %p217 = scmp.eq.s32.totalorder %s21, 0
    %p218 = por %p216, %p217
    %s220 = sadd.s32 %s219, 1
    %p223 = scmp.eq.s32.totalorder %s15, 3
    %p224 = scmp.ne.s32.totalorder %s219, %s221
    %p225 = scmp.eq.s32.totalorder %s15, 0
    %p226 = por %p224, %p225
    %p227 = scmp.ne.s32.totalorder %s219, %s221
    %p228 = scmp.eq.s32.totalorder %s20, 3
    %p229 = por %p227, %p228
    %p230 = scmp.ne.s32.totalorder %s221, %s222
    %p231 = scmp.eq.s32.totalorder %s20, 0
    %p232 = por %p230, %p231
    %p233 = scmp.ne.s32.totalorder %s221, %s222
    %p234 = scmp.eq.s32.totalorder %s21, 3
    %p235 = por %p233, %p234
    %p237 = scmp.ne.s32.totalorder %s222, %s236
    %p238 = scmp.eq.s32.totalorder %s21, 0
    %p239 = por %p237, %p238
    %s241 = sadd.s32 %s240, 1
    %p244 = scmp.eq.s32.totalorder %s15, 3
    %p245 = scmp.ne.s32.totalorder %s240, %s242
    %p246 = scmp.eq.s32.totalorder %s15, 0
    %p247 = por %p245, %p246
    %p248 = scmp.ne.s32.totalorder %s240, %s242
    %p249 = scmp.eq.s32.totalorder %s20, 3
    %p250 = por %p248, %p249
    %p251 = scmp.ne.s32.totalorder %s242, %s243
    %p252 = scmp.eq.s32.totalorder %s20, 0
    %p253 = por %p251, %p252
    %p254 = scmp.ne.s32.totalorder %s242, %s243
    %p255 = scmp.eq.s32.totalorder %s21, 3
    %p256 = por %p254, %p255
    %p258 = scmp.ne.s32.totalorder %s243, %s257
    %p259 = scmp.eq.s32.totalorder %s21, 0
    %p260 = por %p258, %p259
    %s261 = ssub.s32 %s22, %s34
    %s262 = ssub.s32 %s23, %s30
    %s263 = sor.u32 %s261, %s262
    %p264 = scmp.eq.s32.totalorder %s263, 0
    %s266 = sadd.s32 %s265, 1
    %s267 = scalar_select %p264, %s265, %s266
    %p270 = pneg %p264
    %p271 = scmp.eq.s32.totalorder %s15, 3
    %p272 = por %p270, %p271
    %p273 = scmp.ne.s32.totalorder %s265, %s268
    %p274 = scmp.eq.s32.totalorder %s15, 0
    %p275 = por %p273, %p274
    %p276 = scmp.ne.s32.totalorder %s265, %s268
    %p277 = scmp.eq.s32.totalorder %s20, 3
    %p278 = por %p276, %p277
    %p279 = scmp.ne.s32.totalorder %s268, %s269
    %p280 = scmp.eq.s32.totalorder %s20, 0
    %p281 = por %p279, %p280
    %p282 = scmp.ne.s32.totalorder %s268, %s269
    %p283 = scmp.eq.s32.totalorder %s21, 3
    %p284 = por %p282, %p283
    %p286 = scmp.ne.s32.totalorder %s269, %s285
    %p287 = scmp.eq.s32.totalorder %s21, 0
    %p288 = por %p286, %p287
    %p289 = scmp.le.s32.totalorder 1, %s15
    %p290 = scmp.lt.s32.totalorder %s15, 5
    %p291 = pnand %p289, %p290
    %p292 = pneg %p291
    // Predicated region
    $region9: #{convnext_block_1d.1} parent=5 // pred_check
      _
    $region10: #{convnext_block_1d.1} parent=5 // pred_check_branch
      %294 = sbr.rel (%p291) target = $region12
    $region11: #{convnext_block_1d.1} parent=5 // pred_region
      %s295 = ssub.s32 %s15, 1
      // Predicated region
      $region13: #{convnext_block_1d.1} parent=11 // pred_check
        %p296 = pneg %p148
      $region14: #{convnext_block_1d.1} parent=11 // pred_check_branch
        %298 = sbr.rel (%p296) target = $region16
      $region15: #{convnext_block_1d.1} parent=11 // pred_region
        _
      $region16: #{convnext_block_1d.1} parent=11 // pred_fallthru
        _
      // Predicated region
      $region17: #{convnext_block_1d.1} parent=11 // pred_check
        %p299 = pneg %p169
      $region18: #{convnext_block_1d.1} parent=11 // pred_check_branch
        %301 = sbr.rel (%p299) target = $region20
      $region19: #{convnext_block_1d.1} parent=11 // pred_region
        _
      $region20: #{convnext_block_1d.1} parent=11 // pred_fallthru
        _
      // Predicated region
      $region21: #{convnext_block_1d.1} parent=11 // pred_check
        %p302 = pneg %p190
      $region22: #{convnext_block_1d.1} parent=11 // pred_check_branch
        %304 = sbr.rel (%p302) target = $region24
      $region23: #{convnext_block_1d.1} parent=11 // pred_region
        _
      $region24: #{convnext_block_1d.1} parent=11 // pred_fallthru
        _
      // Predicated region
      $region25: #{convnext_block_1d.1} parent=11 // pred_check
        %p305 = pneg %p211
      $region26: #{convnext_block_1d.1} parent=11 // pred_check_branch
        %307 = sbr.rel (%p305) target = $region28
      $region27: #{convnext_block_1d.1} parent=11 // pred_region
        _
      $region28: #{convnext_block_1d.1} parent=11 // pred_fallthru
        _
      // Predicated region
      $region29: #{convnext_block_1d.1} parent=11 // pred_check
        %p308 = pneg %p232
      $region30: #{convnext_block_1d.1} parent=11 // pred_check_branch
        %310 = sbr.rel (%p308) target = $region32
      $region31: #{convnext_block_1d.1} parent=11 // pred_region
        _
      $region32: #{convnext_block_1d.1} parent=11 // pred_fallthru
        _
      // Predicated region
      $region33: #{convnext_block_1d.1} parent=11 // pred_check
        %p311 = pneg %p253
      $region34: #{convnext_block_1d.1} parent=11 // pred_check_branch
        %313 = sbr.rel (%p311) target = $region36
      $region35: #{convnext_block_1d.1} parent=11 // pred_region
        _
      $region36: #{convnext_block_1d.1} parent=11 // pred_fallthru
        _
    $region12: #{convnext_block_1d.1} parent=5 // pred_fallthru
      _
    %p314 = scmp.lt.s32.totalorder %s15, 4
    // Predicated region
    $region37: #{convnext_block_1d.1} parent=5 // pred_check
      %p315 = pneg %p314
    $region38: #{convnext_block_1d.1} parent=5 // pred_check_branch
      %317 = sbr.rel (%p315) target = $region40
    $region39: #{convnext_block_1d.1} parent=5 // pred_region
      // Predicated region
      $region41: #{convnext_block_1d.1} parent=39 // pred_check
        %p318 = pneg %p49
      $region42: #{convnext_block_1d.1} parent=39 // pred_check_branch
        %320 = sbr.rel (%p318) target = $region44
      $region43: #{convnext_block_1d.1} parent=39 // pred_region
        %s321 = smul.u32 32, %s23
        %p322 = scmp.lt.s32.totalorder %s22, 1
        %s323 = scalar_select %p322, %s22, 1
        %p324 = scmp.lt.s32.totalorder %s321, 63
        %s325 = scalar_select %p324, %s321, 63
        %s326 = smul.addr %s323, 64
        %s327 = sadd.s32 %s325, %s326
        %s328 = smul.addr %s327, 8
        %s329 = scalar_lea.vmem %s0, %s328
        %s330 = smul.u32 32, %s23
      $region44: #{convnext_block_1d.1} parent=39 // pred_fallthru
        _
      // Predicated region
      $region45: #{convnext_block_1d.1} parent=39 // pred_check
        %p331 = pneg %p85
      $region46: #{convnext_block_1d.1} parent=39 // pred_check_branch
        %333 = sbr.rel (%p331) target = $region48
      $region47: #{convnext_block_1d.1} parent=39 // pred_region
        %s334 = smul.u32 %s23, 32
        %s335 = ssub.s32 %s334, 1
        %p336 = scmp.gt.s32.totalorder %s335, 0
        %s337 = scalar_select %p336, %s335, 0
        %p338 = scmp.lt.s32.totalorder %s22, 1
        %s339 = scalar_select %p338, %s22, 1
        %p340 = scmp.lt.s32.totalorder %s337, 63
        %s341 = scalar_select %p340, %s337, 63
        %s342 = smul.addr %s339, 64
        %s343 = sadd.s32 %s341, %s342
        %s344 = smul.addr %s343, 8
        %s345 = scalar_lea.vmem %s1, %s344
        %s346 = smul.u32 %s23, 32
        %s347 = ssub.s32 %s346, 1
        %p348 = scmp.gt.s32.totalorder %s347, 0
        %s349 = scalar_select %p348, %s347, 0
      $region48: #{convnext_block_1d.1} parent=39 // pred_fallthru
        _
      // Predicated region
      $region49: #{convnext_block_1d.1} parent=39 // pred_check
        %p350 = pneg %p121
      $region50: #{convnext_block_1d.1} parent=39 // pred_check_branch
        %352 = sbr.rel (%p350) target = $region52
      $region51: #{convnext_block_1d.1} parent=39 // pred_region
        %s353 = sadd.s32 %s23, 1
        %s354 = smul.u32 %s353, 32
        %p355 = scmp.lt.s32.totalorder %s354, 63
        %s356 = scalar_select %p355, %s354, 63
        %p357 = scmp.lt.s32.totalorder %s22, 1
        %s358 = scalar_select %p357, %s22, 1
        %p359 = scmp.lt.s32.totalorder %s356, 63
        %s360 = scalar_select %p359, %s356, 63
        %s361 = smul.addr %s358, 64
        %s362 = sadd.s32 %s360, %s361
        %s363 = smul.addr %s362, 8
        %s364 = scalar_lea.vmem %s2, %s363
        %s365 = sadd.s32 %s23, 1
        %s366 = smul.u32 %s365, 32
        %p367 = scmp.lt.s32.totalorder %s366, 63
        %s368 = scalar_select %p367, %s366, 63
      $region52: #{convnext_block_1d.1} parent=39 // pred_fallthru
        _
    $region40: #{convnext_block_1d.1} parent=5 // pred_fallthru
      _
    %p369 = scmp.le.s32.totalorder 1, %s15
    %p370 = scmp.lt.s32.totalorder %s15, 5
    %p371 = pnand %p369, %p370
    %p372 = pneg %p371
    // Predicated region
    $region53: #{convnext_block_1d.1} parent=5 // pred_check
      _
    $region54: #{convnext_block_1d.1} parent=5 // pred_check_branch
      %374 = sbr.rel (%p371) target = $region56
    $region55: #{convnext_block_1d.1} parent=5 // pred_region
      %s375 = ssub.s32 %s15, 1
      %s376 = smul.u32 32, %s25
      %p377 = scmp.lt.s32.totalorder %s24, 1
      %s378 = scalar_select %p377, %s24, 1
      %p379 = scmp.lt.s32.totalorder %s376, 63
      %s380 = scalar_select %p379, %s376, 63
      %s381 = smul.addr %s378, 64
      %s382 = sadd.s32 %s380, %s381
      %s383 = smul.addr %s382, 8
      %s384 = scalar_lea.vmem %s0, %s383
      %p385 = pneg %p55
      %p386 = pneg %p52
      %s387 = smul.u32 %s25, 32
      %s388 = ssub.s32 %s387, 1
      %p389 = scmp.gt.s32.totalorder %s388, 0
      %s390 = scalar_select %p389, %s388, 0
      %p391 = scmp.lt.s32.totalorder %s24, 1
      %s392 = scalar_select %p391, %s24, 1
      %p393 = scmp.lt.s32.totalorder %s390, 63
      %s394 = scalar_select %p393, %s390, 63
      %s395 = smul.addr %s392, 64
      %s396 = sadd.s32 %s394, %s395
      %s397 = smul.addr %s396, 8
      %s398 = scalar_lea.vmem %s1, %s397
      %p399 = pneg %p91
      %p400 = pneg %p88
      %s401 = sadd.s32 %s25, 1
      %s402 = smul.u32 %s401, 32
      %p403 = scmp.lt.s32.totalorder %s402, 63
      %s404 = scalar_select %p403, %s402, 63
      %p405 = scmp.lt.s32.totalorder %s24, 1
      %s406 = scalar_select %p405, %s24, 1
      %p407 = scmp.lt.s32.totalorder %s404, 63
      %s408 = scalar_select %p407, %s404, 63
      %s409 = smul.addr %s406, 64
      %s410 = sadd.s32 %s408, %s409
      %s411 = smul.addr %s410, 8
      %s412 = scalar_lea.vmem %s2, %s411
      %p413 = pneg %p127
      %p414 = pneg %p124
      %p415 = pneg %p148
      %p416 = pneg %p145
      %p417 = pneg %p169
      %p418 = pneg %p166
      %p419 = pneg %p190
      %p420 = pneg %p187
      %p421 = pneg %p211
      %p422 = pneg %p208
      %p423 = pneg %p232
      %p424 = pneg %p229
      %p425 = pneg %p253
      %p426 = pneg %p250
      %p427 = pneg %p281
      %p428 = pneg %p278
      %s429 = smul.u32 32, %s25
      %p430 = scmp.lt.s32.totalorder %s24, 1
      %s431 = scalar_select %p430, %s24, 1
      %p432 = scmp.lt.s32.totalorder %s429, 63
      %s433 = scalar_select %p432, %s429, 63
      %s434 = smul.addr %s431, 64
      %s435 = sadd.s32 %s433, %s434
      %s436 = smul.addr %s435, 8
      %s437 = scalar_lea.vmem %s9, %s436
      %s438 = smul.u32 32, %s25
      %p439 = scmp.lt.s32.totalorder %s24, 1
      %s440 = scalar_select %p439, %s24, 1
      %p441 = scmp.lt.s32.totalorder %s438, 63
      %s442 = scalar_select %p441, %s438, 63
      %s443 = smul.addr %s440, 64
      %s444 = sadd.s32 %s442, %s443
      %s445 = smul.addr %s444, 8
      %s446 = scalar_lea.vmem %s0, %s445
      %s447 = smul.u32 32, %s25
      %s448 = smul.u32 %s25, 32
      %s449 = ssub.s32 %s448, 1
      %p450 = scmp.gt.s32.totalorder %s449, 0
      %s451 = scalar_select %p450, %s449, 0
      %p452 = scmp.lt.s32.totalorder %s24, 1
      %s453 = scalar_select %p452, %s24, 1
      %p454 = scmp.lt.s32.totalorder %s451, 63
      %s455 = scalar_select %p454, %s451, 63
      %s456 = smul.addr %s453, 64
      %s457 = sadd.s32 %s455, %s456
      %s458 = smul.addr %s457, 8
      %s459 = scalar_lea.vmem %s1, %s458
      %s460 = smul.u32 %s25, 32
      %s461 = ssub.s32 %s460, 1
      %p462 = scmp.gt.s32.totalorder %s461, 0
      %s463 = scalar_select %p462, %s461, 0
      %s464 = sadd.s32 %s25, 1
      %s465 = smul.u32 %s464, 32
      %p466 = scmp.lt.s32.totalorder %s465, 63
      %s467 = scalar_select %p466, %s465, 63
      %p468 = scmp.lt.s32.totalorder %s24, 1
      %s469 = scalar_select %p468, %s24, 1
      %p470 = scmp.lt.s32.totalorder %s467, 63
      %s471 = scalar_select %p470, %s467, 63
      %s472 = smul.addr %s469, 64
      %s473 = sadd.s32 %s471, %s472
      %s474 = smul.addr %s473, 8
      %s475 = scalar_lea.vmem %s2, %s474
      %s476 = sadd.s32 %s25, 1
      %s477 = smul.u32 %s476, 32
      %p478 = scmp.lt.s32.totalorder %s477, 63
      %s479 = scalar_select %p478, %s477, 63
      %s480 = smul.u32 32, %s25
      %p481 = scmp.lt.s32.totalorder %s24, 1
      %s482 = scalar_select %p481, %s24, 1
      %p483 = scmp.lt.s32.totalorder %s480, 63
      %s484 = scalar_select %p483, %s480, 63
      %s485 = smul.addr %s482, 64
      %s486 = sadd.s32 %s484, %s485
      %s487 = smul.addr %s486, 8
      %s488 = scalar_lea.vmem %s9, %s487
      %s489 = smul.u32 32, %s25
      %v490 = vld [vmem:[%s3] sm:$0x7f]
      %v491 = vld [vmem:[%s4] sm:$0x1]
      %v492 = vld [vmem:[%s6] sm:$0x3]
      %v493 = vld [vmem:[%s8] sm:$0x1]
      %v494 = vld [vmem:[%s446] sm:$0xff]
      %v495 = vld [vmem:[%s446 + $0x8] sm:$0xff]
      %v496 = vld [vmem:[%s446 + $0x10] sm:$0xff]
      %v497 = vld [vmem:[%s446 + $0x18] sm:$0xff]
      %v498 = vld [vmem:[%s446 + $0x20] sm:$0xff]
      %v499 = vld [vmem:[%s446 + $0x28] sm:$0xff]
      %v500 = vld [vmem:[%s446 + $0x30] sm:$0xff]
      %v501 = vld [vmem:[%s446 + $0x38] sm:$0xff]
      %v502 = vld [vmem:[%s446 + $0x40] sm:$0xff]
      %v503 = vld [vmem:[%s446 + $0x48] sm:$0xff]
      %v504 = vld [vmem:[%s446 + $0x50] sm:$0xff]
      %v505 = vld [vmem:[%s446 + $0x58] sm:$0xff]
      %v506 = vld [vmem:[%s446 + $0x60] sm:$0xff]
      %v507 = vld [vmem:[%s446 + $0x68] sm:$0xff]
      %v508 = vld [vmem:[%s446 + $0x70] sm:$0xff]
      %v509 = vld [vmem:[%s446 + $0x78] sm:$0xff]
      %v510 = vld [vmem:[%s446 + $0x80] sm:$0xff]
      %v511 = vld [vmem:[%s446 + $0x88] sm:$0xff]
      %v512 = vld [vmem:[%s446 + $0x90] sm:$0xff]
      %v513 = vld [vmem:[%s446 + $0x98] sm:$0xff]
      %v514 = vld [vmem:[%s446 + $0xa0] sm:$0xff]
      %v515 = vld [vmem:[%s446 + $0xa8] sm:$0xff]
      %v516 = vld [vmem:[%s446 + $0xb0] sm:$0xff]
      %v517 = vld [vmem:[%s446 + $0xb8] sm:$0xff]
      %v518 = vld [vmem:[%s446 + $0xc0] sm:$0xff]
      %v519 = vld [vmem:[%s446 + $0xc8] sm:$0xff]
      %v520 = vld [vmem:[%s446 + $0xd0] sm:$0xff]
      %v521 = vld [vmem:[%s446 + $0xd8] sm:$0xff]
      %v522 = vld [vmem:[%s446 + $0xe0] sm:$0xff]
      %v523 = vld [vmem:[%s446 + $0xe8] sm:$0xff]
      %v524 = vld [vmem:[%s446 + $0xf0] sm:$0xff]
      %v525 = vld [vmem:[%s446 + $0xf8] sm:$0xff]
      %p526 = scmp.gt.s32.totalorder %s25, 0
      // Predicated region
      $region57: #{convnext_block_1d.1} parent=55 // pred_check
        %p527 = pneg %p526
      $region58: #{convnext_block_1d.1} parent=55 // pred_check_branch
        %529 = sbr.rel (%p527) target = $region60
      $region59: #{convnext_block_1d.1} parent=55 // pred_region
        %v530 = vld [vmem:[%s459] sm:$0xff]
        %531 = vst [vmem:[#allocation2] sm:$0xff] %v530
      $region60: #{convnext_block_1d.1} parent=55 // pred_fallthru
        _
      %p532 = scmp.eq.s32.totalorder %s25, 0
      // Predicated region
      $region61: #{convnext_block_1d.1} parent=55 // pred_check
        %p533 = pneg %p532
      $region62: #{convnext_block_1d.1} parent=55 // pred_check_branch
        %535 = sbr.rel (%p533) target = $region64
      $region63: #{convnext_block_1d.1} parent=55 // pred_region
        %536 = vst [vmem:[#allocation2] sm:$0xff] 0.0
      $region64: #{convnext_block_1d.1} parent=55 // pred_fallthru
        _
      %537 = vst [vmem:[#allocation2 + $0x8] sm:$0xff] %v494
      %538 = vst [vmem:[#allocation2 + $0x10] sm:$0xff] %v495
      %539 = vst [vmem:[#allocation2 + $0x18] sm:$0xff] %v496
      %540 = vst [vmem:[#allocation2 + $0x20] sm:$0xff] %v497
      %541 = vst [vmem:[#allocation2 + $0x28] sm:$0xff] %v498
      %542 = vst [vmem:[#allocation2 + $0x30] sm:$0xff] %v499
      %543 = vst [vmem:[#allocation2 + $0x38] sm:$0xff] %v500
      %544 = vst [vmem:[#allocation2 + $0x40] sm:$0xff] %v501
      %545 = vst [vmem:[#allocation2 + $0x48] sm:$0xff] %v502
      %546 = vst [vmem:[#allocation2 + $0x50] sm:$0xff] %v503
      %547 = vst [vmem:[#allocation2 + $0x58] sm:$0xff] %v504
      %548 = vst [vmem:[#allocation2 + $0x60] sm:$0xff] %v505
      %549 = vst [vmem:[#allocation2 + $0x68] sm:$0xff] %v506
      %550 = vst [vmem:[#allocation2 + $0x70] sm:$0xff] %v507
      %551 = vst [vmem:[#allocation2 + $0x78] sm:$0xff] %v508
      %552 = vst [vmem:[#allocation2 + $0x80] sm:$0xff] %v509
      %553 = vst [vmem:[#allocation2 + $0x88] sm:$0xff] %v510
      %554 = vst [vmem:[#allocation2 + $0x90] sm:$0xff] %v511
      %555 = vst [vmem:[#allocation2 + $0x98] sm:$0xff] %v512
      %556 = vst [vmem:[#allocation2 + $0xa0] sm:$0xff] %v513
      %557 = vst [vmem:[#allocation2 + $0xa8] sm:$0xff] %v514
      %558 = vst [vmem:[#allocation2 + $0xb0] sm:$0xff] %v515
      %559 = vst [vmem:[#allocation2 + $0xb8] sm:$0xff] %v516
      %560 = vst [vmem:[#allocation2 + $0xc0] sm:$0xff] %v517
      %561 = vst [vmem:[#allocation2 + $0xc8] sm:$0xff] %v518
      %562 = vst [vmem:[#allocation2 + $0xd0] sm:$0xff] %v519
      %563 = vst [vmem:[#allocation2 + $0xd8] sm:$0xff] %v520
      %564 = vst [vmem:[#allocation2 + $0xe0] sm:$0xff] %v521
      %565 = vst [vmem:[#allocation2 + $0xe8] sm:$0xff] %v522
      %566 = vst [vmem:[#allocation2 + $0xf0] sm:$0xff] %v523
      %567 = vst [vmem:[#allocation2 + $0xf8] sm:$0xff] %v524
      %568 = vst [vmem:[#allocation2 + $0x100] sm:$0xff] %v525
      %p569 = scmp.lt.s32.totalorder %s25, 1
      // Predicated region
      $region65: #{convnext_block_1d.1} parent=55 // pred_check
        %p570 = pneg %p569
      $region66: #{convnext_block_1d.1} parent=55 // pred_check_branch
        %572 = sbr.rel (%p570) target = $region68
      $region67: #{convnext_block_1d.1} parent=55 // pred_region
        %v573 = vld [vmem:[%s475] sm:$0xff]
        %574 = vst [vmem:[#allocation2 + $0x108] sm:$0xff] %v573
      $region68: #{convnext_block_1d.1} parent=55 // pred_fallthru
        _
      %p575 = scmp.eq.s32.totalorder %s25, 1
      // Predicated region
      $region69: #{convnext_block_1d.1} parent=55 // pred_check
        %p576 = pneg %p575
      $region70: #{convnext_block_1d.1} parent=55 // pred_check_branch
        %578 = sbr.rel (%p576) target = $region72
      $region71: #{convnext_block_1d.1} parent=55 // pred_region
        %579 = vst [vmem:[#allocation2 + $0x108] sm:$0xff] 0.0
      $region72: #{convnext_block_1d.1} parent=55 // pred_fallthru
        _
      %v580 = vld [vmem:[#allocation2] sm:$0xff]
      %v581 = vld [vmem:[#allocation2 + $0x8] sm:$0xff]
      %v582 = vld [vmem:[#allocation2 + $0x10] sm:$0xff]
      %v583 = vld [vmem:[#allocation2 + $0x18] sm:$0xff]
      %v584 = vld [vmem:[#allocation2 + $0x20] sm:$0xff]
      %v585 = vld [vmem:[#allocation2 + $0x28] sm:$0xff]
      %v586 = vld [vmem:[#allocation2 + $0x30] sm:$0xff]
      %v587 = vld [vmem:[#allocation2 + $0x38] sm:$0xff]
      %v588 = vld [vmem:[#allocation2 + $0x40] sm:$0xff]
      %v589 = vld [vmem:[#allocation2 + $0x48] sm:$0xff]
      %v590 = vld [vmem:[#allocation2 + $0x50] sm:$0xff]
      %v591 = vld [vmem:[#allocation2 + $0x58] sm:$0xff]
      %v592 = vld [vmem:[#allocation2 + $0x60] sm:$0xff]
      %v593 = vld [vmem:[#allocation2 + $0x68] sm:$0xff]
      %v594 = vld [vmem:[#allocation2 + $0x70] sm:$0xff]
      %v595 = vld [vmem:[#allocation2 + $0x78] sm:$0xff]
      %v596 = vld [vmem:[#allocation2 + $0x80] sm:$0xff]
      %v597 = vld [vmem:[#allocation2 + $0x88] sm:$0xff]
      %v598 = vld [vmem:[#allocation2 + $0x90] sm:$0xff]
      %v599 = vld [vmem:[#allocation2 + $0x98] sm:$0xff]
      %v600 = vld [vmem:[#allocation2 + $0xa0] sm:$0xff]
      %v601 = vld [vmem:[#allocation2 + $0xa8] sm:$0xff]
      %v602 = vld [vmem:[#allocation2 + $0xb0] sm:$0xff]
      %v603 = vld [vmem:[#allocation2 + $0xb8] sm:$0xff]
      %v604 = vld [vmem:[#allocation2 + $0xc0] sm:$0xff]
      %v605 = vld [vmem:[#allocation2 + $0xc8] sm:$0xff]
      %v606 = vld [vmem:[#allocation2 + $0xd0] sm:$0xff]
      %v607 = vld [vmem:[#allocation2 + $0xd8] sm:$0xff]
      %v608 = vld [vmem:[#allocation2 + $0xe0] sm:$0xff]
      %v609 = vld [vmem:[#allocation2 + $0xe8] sm:$0xff]
      %v610 = vld [vmem:[#allocation2 + $0xf0] sm:$0xff]
      %v611 = vld [vmem:[#allocation2 + $0xf8] sm:$0xff]
      %v612 = vld [vmem:[#allocation2 + $0x100] sm:$0xff]
      %v613 = vld [vmem:[#allocation2 + $0x108] sm:$0xff]
      %v614 = vrot.slane %v580, 5
      %v615 = vrot.slane %v581, 5
      %v616 = vrot.slane %v582, 5
      %v617 = vrot.slane %v583, 5
      %v618 = vrot.slane %v584, 5
      %v619 = vrot.slane %v585, 5
      %v620 = vrot.slane %v586, 5
      %v621 = vrot.slane %v587, 5
      %v622 = vrot.slane %v588, 5
      %v623 = vrot.slane %v589, 5
      %v624 = vrot.slane %v590, 5
      %v625 = vrot.slane %v591, 5
      %v626 = vrot.slane %v592, 5
      %v627 = vrot.slane %v593, 5
      %v628 = vrot.slane %v594, 5
      %v629 = vrot.slane %v595, 5
      %v630 = vrot.slane %v596, 5
      %v631 = vrot.slane %v597, 5
      %v632 = vrot.slane %v598, 5
      %v633 = vrot.slane %v599, 5
      %v634 = vrot.slane %v600, 5
      %v635 = vrot.slane %v601, 5
      %v636 = vrot.slane %v602, 5
      %v637 = vrot.slane %v603, 5
      %v638 = vrot.slane %v604, 5
      %v639 = vrot.slane %v605, 5
      %v640 = vrot.slane %v606, 5
      %v641 = vrot.slane %v607, 5
      %v642 = vrot.slane %v608, 5
      %v643 = vrot.slane %v609, 5
      %v644 = vrot.slane %v610, 5
      %v645 = vrot.slane %v611, 5
      %v646 = vrot.slane %v612, 5
      %v647 = vlaneseq
      %v648 = vshrl.u32 %v647, 7
      %vm649 = vcmp.lt.s32.totalorder %v648, 3
      %v650 = vsel %vm649, %v645, %v646
      %v651 = vsel %vm649, %v644, %v645
      %v652 = vsel %vm649, %v643, %v644
      %v653 = vsel %vm649, %v642, %v643
      %v654 = vsel %vm649, %v641, %v642
      %v655 = vsel %vm649, %v640, %v641
      %v656 = vsel %vm649, %v639, %v640
      %v657 = vsel %vm649, %v638, %v639
      %v658 = vsel %vm649, %v637, %v638
      %v659 = vsel %vm649, %v636, %v637
      %v660 = vsel %vm649, %v635, %v636
      %v661 = vsel %vm649, %v634, %v635
      %v662 = vsel %vm649, %v633, %v634
      %v663 = vsel %vm649, %v632, %v633
      %v664 = vsel %vm649, %v631, %v632
      %v665 = vsel %vm649, %v630, %v631
      %v666 = vsel %vm649, %v629, %v630
      %v667 = vsel %vm649, %v628, %v629
      %v668 = vsel %vm649, %v627, %v628
      %v669 = vsel %vm649, %v626, %v627
      %v670 = vsel %vm649, %v625, %v626
      %v671 = vsel %vm649, %v624, %v625
      %v672 = vsel %vm649, %v623, %v624
      %v673 = vsel %vm649, %v622, %v623
      %v674 = vsel %vm649, %v621, %v622
      %v675 = vsel %vm649, %v620, %v621
      %v676 = vsel %vm649, %v619, %v620
      %v677 = vsel %vm649, %v618, %v619
      %v678 = vsel %vm649, %v617, %v618
      %v679 = vsel %vm649, %v616, %v617
      %v680 = vsel %vm649, %v615, %v616
      %v681 = vsel %vm649, %v614, %v615
      %v682 = vperm.slane %v490, 0
      %v683 = vmul.f32 %v681, %v682
      %v684 = vmul.f32 %v680, %v682
      %v685 = vmul.f32 %v679, %v682
      %v686 = vmul.f32 %v678, %v682
      %v687 = vmul.f32 %v677, %v682
      %v688 = vmul.f32 %v676, %v682
      %v689 = vmul.f32 %v675, %v682
      %v690 = vmul.f32 %v674, %v682
      %v691 = vmul.f32 %v673, %v682
      %v692 = vmul.f32 %v672, %v682
      %v693 = vmul.f32 %v671, %v682
      %v694 = vmul.f32 %v670, %v682
      %v695 = vmul.f32 %v669, %v682
      %v696 = vmul.f32 %v668, %v682
      %v697 = vmul.f32 %v667, %v682
      %v698 = vmul.f32 %v666, %v682
      %v699 = vmul.f32 %v665, %v682
      %v700 = vmul.f32 %v664, %v682
      %v701 = vmul.f32 %v663, %v682
      %v702 = vmul.f32 %v662, %v682
      %v703 = vmul.f32 %v661, %v682
      %v704 = vmul.f32 %v660, %v682
      %v705 = vmul.f32 %v659, %v682
      %v706 = vmul.f32 %v658, %v682
      %v707 = vmul.f32 %v657, %v682
      %v708 = vmul.f32 %v656, %v682
      %v709 = vmul.f32 %v655, %v682
      %v710 = vmul.f32 %v654, %v682
      %v711 = vmul.f32 %v653, %v682
      %v712 = vmul.f32 %v652, %v682
      %v713 = vmul.f32 %v651, %v682
      %v714 = vmul.f32 %v650, %v682
      %v715 = vadd.f32 %v683, 0.0
      %v716 = vadd.f32 %v684, 0.0
      %v717 = vadd.f32 %v685, 0.0
      %v718 = vadd.f32 %v686, 0.0
      %v719 = vadd.f32 %v687, 0.0
      %v720 = vadd.f32 %v688, 0.0
      %v721 = vadd.f32 %v689, 0.0
      %v722 = vadd.f32 %v690, 0.0
      %v723 = vadd.f32 %v691, 0.0
      %v724 = vadd.f32 %v692, 0.0
      %v725 = vadd.f32 %v693, 0.0
      %v726 = vadd.f32 %v694, 0.0
      %v727 = vadd.f32 %v695, 0.0
      %v728 = vadd.f32 %v696, 0.0
      %v729 = vadd.f32 %v697, 0.0
      %v730 = vadd.f32 %v698, 0.0
      %v731 = vadd.f32 %v699, 0.0
      %v732 = vadd.f32 %v700, 0.0
      %v733 = vadd.f32 %v701, 0.0
      %v734 = vadd.f32 %v702, 0.0
      %v735 = vadd.f32 %v703, 0.0
      %v736 = vadd.f32 %v704, 0.0
      %v737 = vadd.f32 %v705, 0.0
      %v738 = vadd.f32 %v706, 0.0
      %v739 = vadd.f32 %v707, 0.0
      %v740 = vadd.f32 %v708, 0.0
      %v741 = vadd.f32 %v709, 0.0
      %v742 = vadd.f32 %v710, 0.0
      %v743 = vadd.f32 %v711, 0.0
      %v744 = vadd.f32 %v712, 0.0
      %v745 = vadd.f32 %v713, 0.0
      %v746 = vadd.f32 %v714, 0.0
      %v747 = vrot.slane %v580, 6
      %v748 = vrot.slane %v581, 6
      %v749 = vrot.slane %v582, 6
      %v750 = vrot.slane %v583, 6
      %v751 = vrot.slane %v584, 6
      %v752 = vrot.slane %v585, 6
      %v753 = vrot.slane %v586, 6
      %v754 = vrot.slane %v587, 6
      %v755 = vrot.slane %v588, 6
      %v756 = vrot.slane %v589, 6
      %v757 = vrot.slane %v590, 6
      %v758 = vrot.slane %v591, 6
      %v759 = vrot.slane %v592, 6
      %v760 = vrot.slane %v593, 6
      %v761 = vrot.slane %v594, 6
      %v762 = vrot.slane %v595, 6
      %v763 = vrot.slane %v596, 6
      %v764 = vrot.slane %v597, 6
      %v765 = vrot.slane %v598, 6
      %v766 = vrot.slane %v599, 6
      %v767 = vrot.slane %v600, 6
      %v768 = vrot.slane %v601, 6
      %v769 = vrot.slane %v602, 6
      %v770 = vrot.slane %v603, 6
      %v771 = vrot.slane %v604, 6
      %v772 = vrot.slane %v605, 6
      %v773 = vrot.slane %v606, 6
      %v774 = vrot.slane %v607, 6
      %v775 = vrot.slane %v608, 6
      %v776 = vrot.slane %v609, 6
      %v777 = vrot.slane %v610, 6
      %v778 = vrot.slane %v611, 6
      %v779 = vrot.slane %v612, 6
      %vm780 = vcmp.lt.s32.totalorder %v648, 2
      %v781 = vsel %vm780, %v778, %v779
      %v782 = vsel %vm780, %v777, %v778
      %v783 = vsel %vm780, %v776, %v777
      %v784 = vsel %vm780, %v775, %v776
      %v785 = vsel %vm780, %v774, %v775
      %v786 = vsel %vm780, %v773, %v774
      %v787 = vsel %vm780, %v772, %v773
      %v788 = vsel %vm780, %v771, %v772
      %v789 = vsel %vm780, %v770, %v771
      %v790 = vsel %vm780, %v769, %v770
      %v791 = vsel %vm780, %v768, %v769
      %v792 = vsel %vm780, %v767, %v768
      %v793 = vsel %vm780, %v766, %v767
      %v794 = vsel %vm780, %v765, %v766
      %v795 = vsel %vm780, %v764, %v765
      %v796 = vsel %vm780, %v763, %v764
      %v797 = vsel %vm780, %v762, %v763
      %v798 = vsel %vm780, %v761, %v762
      %v799 = vsel %vm780, %v760, %v761
      %v800 = vsel %vm780, %v759, %v760
      %v801 = vsel %vm780, %v758, %v759
      %v802 = vsel %vm780, %v757, %v758
      %v803 = vsel %vm780, %v756, %v757
      %v804 = vsel %vm780, %v755, %v756
      %v805 = vsel %vm780, %v754, %v755
      %v806 = vsel %vm780, %v753, %v754
      %v807 = vsel %vm780, %v752, %v753
      %v808 = vsel %vm780, %v751, %v752
      %v809 = vsel %vm780, %v750, %v751
      %v810 = vsel %vm780, %v749, %v750
      %v811 = vsel %vm780, %v748, %v749
      %v812 = vsel %vm780, %v747, %v748
      %v813 = vperm.slane %v490, 1
      %v814 = vmul.f32 %v812, %v813
      %v815 = vmul.f32 %v811, %v813
      %v816 = vmul.f32 %v810, %v813
      %v817 = vmul.f32 %v809, %v813
      %v818 = vmul.f32 %v808, %v813
      %v819 = vmul.f32 %v807, %v813
      %v820 = vmul.f32 %v806, %v813
      %v821 = vmul.f32 %v805, %v813
      %v822 = vmul.f32 %v804, %v813
      %v823 = vmul.f32 %v803, %v813
      %v824 = vmul.f32 %v802, %v813
      %v825 = vmul.f32 %v801, %v813
      %v826 = vmul.f32 %v800, %v813
      %v827 = vmul.f32 %v799, %v813
      %v828 = vmul.f32 %v798, %v813
      %v829 = vmul.f32 %v797, %v813
      %v830 = vmul.f32 %v796, %v813
      %v831 = vmul.f32 %v795, %v813
      %v832 = vmul.f32 %v794, %v813
      %v833 = vmul.f32 %v793, %v813
      %v834 = vmul.f32 %v792, %v813
      %v835 = vmul.f32 %v791, %v813
      %v836 = vmul.f32 %v790, %v813
      %v837 = vmul.f32 %v789, %v813
      %v838 = vmul.f32 %v788, %v813
      %v839 = vmul.f32 %v787, %v813
      %v840 = vmul.f32 %v786, %v813
      %v841 = vmul.f32 %v785, %v813
      %v842 = vmul.f32 %v784, %v813
      %v843 = vmul.f32 %v783, %v813
      %v844 = vmul.f32 %v782, %v813
      %v845 = vmul.f32 %v781, %v813
      %v846 = vadd.f32 %v715, %v814
      %v847 = vadd.f32 %v716, %v815
      %v848 = vadd.f32 %v717, %v816
      %v849 = vadd.f32 %v718, %v817
      %v850 = vadd.f32 %v719, %v818
      %v851 = vadd.f32 %v720, %v819
      %v852 = vadd.f32 %v721, %v820
      %v853 = vadd.f32 %v722, %v821
      %v854 = vadd.f32 %v723, %v822
      %v855 = vadd.f32 %v724, %v823
      %v856 = vadd.f32 %v725, %v824
      %v857 = vadd.f32 %v726, %v825
      %v858 = vadd.f32 %v727, %v826
      %v859 = vadd.f32 %v728, %v827
      %v860 = vadd.f32 %v729, %v828
      %v861 = vadd.f32 %v730, %v829
      %v862 = vadd.f32 %v731, %v830
      %v863 = vadd.f32 %v732, %v831
      %v864 = vadd.f32 %v733, %v832
      %v865 = vadd.f32 %v734, %v833
      %v866 = vadd.f32 %v735, %v834
      %v867 = vadd.f32 %v736, %v835
      %v868 = vadd.f32 %v737, %v836
      %v869 = vadd.f32 %v738, %v837
      %v870 = vadd.f32 %v739, %v838
      %v871 = vadd.f32 %v740, %v839
      %v872 = vadd.f32 %v741, %v840
      %v873 = vadd.f32 %v742, %v841
      %v874 = vadd.f32 %v743, %v842
      %v875 = vadd.f32 %v744, %v843
      %v876 = vadd.f32 %v745, %v844
      %v877 = vadd.f32 %v746, %v845
      %v878 = vrot.slane %v580, 7
      %v879 = vrot.slane %v581, 7
      %v880 = vrot.slane %v582, 7
      %v881 = vrot.slane %v583, 7
      %v882 = vrot.slane %v584, 7
      %v883 = vrot.slane %v585, 7
      %v884 = vrot.slane %v586, 7
      %v885 = vrot.slane %v587, 7
      %v886 = vrot.slane %v588, 7
      %v887 = vrot.slane %v589, 7
      %v888 = vrot.slane %v590, 7
      %v889 = vrot.slane %v591, 7
      %v890 = vrot.slane %v592, 7
      %v891 = vrot.slane %v593, 7
      %v892 = vrot.slane %v594, 7
      %v893 = vrot.slane %v595, 7
      %v894 = vrot.slane %v596, 7
      %v895 = vrot.slane %v597, 7
      %v896 = vrot.slane %v598, 7
      %v897 = vrot.slane %v599, 7
      %v898 = vrot.slane %v600, 7
      %v899 = vrot.slane %v601, 7
      %v900 = vrot.slane %v602, 7
      %v901 = vrot.slane %v603, 7
      %v902 = vrot.slane %v604, 7
      %v903 = vrot.slane %v605, 7
      %v904 = vrot.slane %v606, 7
      %v905 = vrot.slane %v607, 7
      %v906 = vrot.slane %v608, 7
      %v907 = vrot.slane %v609, 7
      %v908 = vrot.slane %v610, 7
      %v909 = vrot.slane %v611, 7
      %v910 = vrot.slane %v612, 7
      %vm911 = vcmp.lt.s32.totalorder %v648, 1
      %v912 = vsel %vm911, %v909, %v910
      %v913 = vsel %vm911, %v908, %v909
      %v914 = vsel %vm911, %v907, %v908
      %v915 = vsel %vm911, %v906, %v907
      %v916 = vsel %vm911, %v905, %v906
      %v917 = vsel %vm911, %v904, %v905
      %v918 = vsel %vm911, %v903, %v904
      %v919 = vsel %vm911, %v902, %v903
      %v920 = vsel %vm911, %v901, %v902
      %v921 = vsel %vm911, %v900, %v901
      %v922 = vsel %vm911, %v899, %v900
      %v923 = vsel %vm911, %v898, %v899
      %v924 = vsel %vm911, %v897, %v898
      %v925 = vsel %vm911, %v896, %v897
      %v926 = vsel %vm911, %v895, %v896
      %v927 = vsel %vm911, %v894, %v895
      %v928 = vsel %vm911, %v893, %v894
      %v929 = vsel %vm911, %v892, %v893
      %v930 = vsel %vm911, %v891, %v892
      %v931 = vsel %vm911, %v890, %v891
      %v932 = vsel %vm911, %v889, %v890
      %v933 = vsel %vm911, %v888, %v889
      %v934 = vsel %vm911, %v887, %v888
      %v935 = vsel %vm911, %v886, %v887
      %v936 = vsel %vm911, %v885, %v886
      %v937 = vsel %vm911, %v884, %v885
      %v938 = vsel %vm911, %v883, %v884
      %v939 = vsel %vm911, %v882, %v883
      %v940 = vsel %vm911, %v881, %v882
      %v941 = vsel %vm911, %v880, %v881
      %v942 = vsel %vm911, %v879, %v880
      %v943 = vsel %vm911, %v878, %v879
      %v944 = vperm.slane %v490, 2
      %v945 = vmul.f32 %v943, %v944
      %v946 = vmul.f32 %v942, %v944
      %v947 = vmul.f32 %v941, %v944
      %v948 = vmul.f32 %v940, %v944
      %v949 = vmul.f32 %v939, %v944
      %v950 = vmul.f32 %v938, %v944
      %v951 = vmul.f32 %v937, %v944
      %v952 = vmul.f32 %v936, %v944
      %v953 = vmul.f32 %v935, %v944
      %v954 = vmul.f32 %v934, %v944
      %v955 = vmul.f32 %v933, %v944
      %v956 = vmul.f32 %v932, %v944
      %v957 = vmul.f32 %v931, %v944
      %v958 = vmul.f32 %v930, %v944
      %v959 = vmul.f32 %v929, %v944
      %v960 = vmul.f32 %v928, %v944
      %v961 = vmul.f32 %v927, %v944
      %v962 = vmul.f32 %v926, %v944
      %v963 = vmul.f32 %v925, %v944
      %v964 = vmul.f32 %v924, %v944
      %v965 = vmul.f32 %v923, %v944
      %v966 = vmul.f32 %v922, %v944
      %v967 = vmul.f32 %v921, %v944
      %v968 = vmul.f32 %v920, %v944
      %v969 = vmul.f32 %v919, %v944
      %v970 = vmul.f32 %v918, %v944
      %v971 = vmul.f32 %v917, %v944
      %v972 = vmul.f32 %v916, %v944
      %v973 = vmul.f32 %v915, %v944
      %v974 = vmul.f32 %v914, %v944
      %v975 = vmul.f32 %v913, %v944
      %v976 = vmul.f32 %v912, %v944
      %v977 = vadd.f32 %v846, %v945
      %v978 = vadd.f32 %v847, %v946
      %v979 = vadd.f32 %v848, %v947
      %v980 = vadd.f32 %v849, %v948
      %v981 = vadd.f32 %v850, %v949
      %v982 = vadd.f32 %v851, %v950
      %v983 = vadd.f32 %v852, %v951
      %v984 = vadd.f32 %v853, %v952
      %v985 = vadd.f32 %v854, %v953
      %v986 = vadd.f32 %v855, %v954
      %v987 = vadd.f32 %v856, %v955
      %v988 = vadd.f32 %v857, %v956
      %v989 = vadd.f32 %v858, %v957
      %v990 = vadd.f32 %v859, %v958
      %v991 = vadd.f32 %v860, %v959
      %v992 = vadd.f32 %v861, %v960
      %v993 = vadd.f32 %v862, %v961
      %v994 = vadd.f32 %v863, %v962
      %v995 = vadd.f32 %v864, %v963
      %v996 = vadd.f32 %v865, %v964
      %v997 = vadd.f32 %v866, %v965
      %v998 = vadd.f32 %v867, %v966
      %v999 = vadd.f32 %v868, %v967
      %v1000 = vadd.f32 %v869, %v968
      %v1001 = vadd.f32 %v870, %v969
      %v1002 = vadd.f32 %v871, %v970
      %v1003 = vadd.f32 %v872, %v971
      %v1004 = vadd.f32 %v873, %v972
      %v1005 = vadd.f32 %v874, %v973
      %v1006 = vadd.f32 %v875, %v974
      %v1007 = vadd.f32 %v876, %v975
      %v1008 = vadd.f32 %v877, %v976
      %v1009 = vperm.slane %v490, 3
      %v1010 = vmul.f32 %v494, %v1009
      %v1011 = vmul.f32 %v495, %v1009
      %v1012 = vmul.f32 %v496, %v1009
      %v1013 = vmul.f32 %v497, %v1009
      %v1014 = vmul.f32 %v498, %v1009
      %v1015 = vmul.f32 %v499, %v1009
      %v1016 = vmul.f32 %v500, %v1009
      %v1017 = vmul.f32 %v501, %v1009
      %v1018 = vmul.f32 %v502, %v1009
      %v1019 = vmul.f32 %v503, %v1009
      %v1020 = vmul.f32 %v504, %v1009
      %v1021 = vmul.f32 %v505, %v1009
      %v1022 = vmul.f32 %v506, %v1009
      %v1023 = vmul.f32 %v507, %v1009
      %v1024 = vmul.f32 %v508, %v1009
      %v1025 = vmul.f32 %v509, %v1009
      %v1026 = vmul.f32 %v510, %v1009
      %v1027 = vmul.f32 %v511, %v1009
      %v1028 = vmul.f32 %v512, %v1009
      %v1029 = vmul.f32 %v513, %v1009
      %v1030 = vmul.f32 %v514, %v1009
      %v1031 = vmul.f32 %v515, %v1009
      %v1032 = vmul.f32 %v516, %v1009
      %v1033 = vmul.f32 %v517, %v1009
      %v1034 = vmul.f32 %v518, %v1009
      %v1035 = vmul.f32 %v519, %v1009
      %v1036 = vmul.f32 %v520, %v1009
      %v1037 = vmul.f32 %v521, %v1009
      %v1038 = vmul.f32 %v522, %v1009
      %v1039 = vmul.f32 %v523, %v1009
      %v1040 = vmul.f32 %v524, %v1009
      %v1041 = vmul.f32 %v525, %v1009
      %v1042 = vadd.f32 %v977, %v1010
      %v1043 = vadd.f32 %v978, %v1011
      %v1044 = vadd.f32 %v979, %v1012
      %v1045 = vadd.f32 %v980, %v1013
      %v1046 = vadd.f32 %v981, %v1014
      %v1047 = vadd.f32 %v982, %v1015
      %v1048 = vadd.f32 %v983, %v1016
      %v1049 = vadd.f32 %v984, %v1017
      %v1050 = vadd.f32 %v985, %v1018
      %v1051 = vadd.f32 %v986, %v1019
      %v1052 = vadd.f32 %v987, %v1020
      %v1053 = vadd.f32 %v988, %v1021
      %v1054 = vadd.f32 %v989, %v1022
      %v1055 = vadd.f32 %v990, %v1023
      %v1056 = vadd.f32 %v991, %v1024
      %v1057 = vadd.f32 %v992, %v1025
      %v1058 = vadd.f32 %v993, %v1026
      %v1059 = vadd.f32 %v994, %v1027
      %v1060 = vadd.f32 %v995, %v1028
      %v1061 = vadd.f32 %v996, %v1029
      %v1062 = vadd.f32 %v997, %v1030
      %v1063 = vadd.f32 %v998, %v1031
      %v1064 = vadd.f32 %v999, %v1032
      %v1065 = vadd.f32 %v1000, %v1033
      %v1066 = vadd.f32 %v1001, %v1034
      %v1067 = vadd.f32 %v1002, %v1035
      %v1068 = vadd.f32 %v1003, %v1036
      %v1069 = vadd.f32 %v1004, %v1037
      %v1070 = vadd.f32 %v1005, %v1038
      %v1071 = vadd.f32 %v1006, %v1039
      %v1072 = vadd.f32 %v1007, %v1040
      %v1073 = vadd.f32 %v1008, %v1041
      %v1074 = vrot.slane %v581, 1
      %v1075 = vrot.slane %v582, 1
      %v1076 = vrot.slane %v583, 1
      %v1077 = vrot.slane %v584, 1
      %v1078 = vrot.slane %v585, 1
      %v1079 = vrot.slane %v586, 1
      %v1080 = vrot.slane %v587, 1
      %v1081 = vrot.slane %v588, 1
      %v1082 = vrot.slane %v589, 1
      %v1083 = vrot.slane %v590, 1
      %v1084 = vrot.slane %v591, 1
      %v1085 = vrot.slane %v592, 1
      %v1086 = vrot.slane %v593, 1
      %v1087 = vrot.slane %v594, 1
      %v1088 = vrot.slane %v595, 1
      %v1089 = vrot.slane %v596, 1
      %v1090 = vrot.slane %v597, 1
      %v1091 = vrot.slane %v598, 1
      %v1092 = vrot.slane %v599, 1
      %v1093 = vrot.slane %v600, 1
      %v1094 = vrot.slane %v601, 1
      %v1095 = vrot.slane %v602, 1
      %v1096 = vrot.slane %v603, 1
      %v1097 = vrot.slane %v604, 1
      %v1098 = vrot.slane %v605, 1
      %v1099 = vrot.slane %v606, 1
      %v1100 = vrot.slane %v607, 1
      %v1101 = vrot.slane %v608, 1
      %v1102 = vrot.slane %v609, 1
      %v1103 = vrot.slane %v610, 1
      %v1104 = vrot.slane %v611, 1
      %v1105 = vrot.slane %v612, 1
      %v1106 = vrot.slane %v613, 1
      %vm1107 = vcmp.lt.s32.totalorder %v648, 7
      %v1108 = vsel %vm1107, %v1105, %v1106
      %v1109 = vsel %vm1107, %v1104, %v1105
      %v1110 = vsel %vm1107, %v1103, %v1104
      %v1111 = vsel %vm1107, %v1102, %v1103
      %v1112 = vsel %vm1107, %v1101, %v1102
      %v1113 = vsel %vm1107, %v1100, %v1101
      %v1114 = vsel %vm1107, %v1099, %v1100
      %v1115 = vsel %vm1107, %v1098, %v1099
      %v1116 = vsel %vm1107, %v1097, %v1098
      %v1117 = vsel %vm1107, %v1096, %v1097
      %v1118 = vsel %vm1107, %v1095, %v1096
      %v1119 = vsel %vm1107, %v1094, %v1095
      %v1120 = vsel %vm1107, %v1093, %v1094
      %v1121 = vsel %vm1107, %v1092, %v1093
      %v1122 = vsel %vm1107, %v1091, %v1092
      %v1123 = vsel %vm1107, %v1090, %v1091
      %v1124 = vsel %vm1107, %v1089, %v1090
      %v1125 = vsel %vm1107, %v1088, %v1089
      %v1126 = vsel %vm1107, %v1087, %v1088
      %v1127 = vsel %vm1107, %v1086, %v1087
      %v1128 = vsel %vm1107, %v1085, %v1086
      %v1129 = vsel %vm1107, %v1084, %v1085
      %v1130 = vsel %vm1107, %v1083, %v1084
      %v1131 = vsel %vm1107, %v1082, %v1083
      %v1132 = vsel %vm1107, %v1081, %v1082
      %v1133 = vsel %vm1107, %v1080, %v1081
      %v1134 = vsel %vm1107, %v1079, %v1080
      %v1135 = vsel %vm1107, %v1078, %v1079
      %v1136 = vsel %vm1107, %v1077, %v1078
      %v1137 = vsel %vm1107, %v1076, %v1077
      %v1138 = vsel %vm1107, %v1075, %v1076
      %v1139 = vsel %vm1107, %v1074, %v1075
      %v1140 = vperm.slane %v490, 4
      %v1141 = vmul.f32 %v1139, %v1140
      %v1142 = vmul.f32 %v1138, %v1140
      %v1143 = vmul.f32 %v1137, %v1140
      %v1144 = vmul.f32 %v1136, %v1140
      %v1145 = vmul.f32 %v1135, %v1140
      %v1146 = vmul.f32 %v1134, %v1140
      %v1147 = vmul.f32 %v1133, %v1140
      %v1148 = vmul.f32 %v1132, %v1140
      %v1149 = vmul.f32 %v1131, %v1140
      %v1150 = vmul.f32 %v1130, %v1140
      %v1151 = vmul.f32 %v1129, %v1140
      %v1152 = vmul.f32 %v1128, %v1140
      %v1153 = vmul.f32 %v1127, %v1140
      %v1154 = vmul.f32 %v1126, %v1140
      %v1155 = vmul.f32 %v1125, %v1140
      %v1156 = vmul.f32 %v1124, %v1140
      %v1157 = vmul.f32 %v1123, %v1140
      %v1158 = vmul.f32 %v1122, %v1140
      %v1159 = vmul.f32 %v1121, %v1140
      %v1160 = vmul.f32 %v1120, %v1140
      %v1161 = vmul.f32 %v1119, %v1140
      %v1162 = vmul.f32 %v1118, %v1140
      %v1163 = vmul.f32 %v1117, %v1140
      %v1164 = vmul.f32 %v1116, %v1140
      %v1165 = vmul.f32 %v1115, %v1140
      %v1166 = vmul.f32 %v1114, %v1140
      %v1167 = vmul.f32 %v1113, %v1140
      %v1168 = vmul.f32 %v1112, %v1140
      %v1169 = vmul.f32 %v1111, %v1140
      %v1170 = vmul.f32 %v1110, %v1140
      %v1171 = vmul.f32 %v1109, %v1140
      %v1172 = vmul.f32 %v1108, %v1140
      %v1173 = vadd.f32 %v1042, %v1141
      %v1174 = vadd.f32 %v1043, %v1142
      %v1175 = vadd.f32 %v1044, %v1143
      %v1176 = vadd.f32 %v1045, %v1144
      %v1177 = vadd.f32 %v1046, %v1145
      %v1178 = vadd.f32 %v1047, %v1146
      %v1179 = vadd.f32 %v1048, %v1147
      %v1180 = vadd.f32 %v1049, %v1148
      %v1181 = vadd.f32 %v1050, %v1149
      %v1182 = vadd.f32 %v1051, %v1150
      %v1183 = vadd.f32 %v1052, %v1151
      %v1184 = vadd.f32 %v1053, %v1152
      %v1185 = vadd.f32 %v1054, %v1153
      %v1186 = vadd.f32 %v1055, %v1154
      %v1187 = vadd.f32 %v1056, %v1155
      %v1188 = vadd.f32 %v1057, %v1156
      %v1189 = vadd.f32 %v1058, %v1157
      %v1190 = vadd.f32 %v1059, %v1158
      %v1191 = vadd.f32 %v1060, %v1159
      %v1192 = vadd.f32 %v1061, %v1160
      %v1193 = vadd.f32 %v1062, %v1161
      %v1194 = vadd.f32 %v1063, %v1162
      %v1195 = vadd.f32 %v1064, %v1163
      %v1196 = vadd.f32 %v1065, %v1164
      %v1197 = vadd.f32 %v1066, %v1165
      %v1198 = vadd.f32 %v1067, %v1166
      %v1199 = vadd.f32 %v1068, %v1167
      %v1200 = vadd.f32 %v1069, %v1168
      %v1201 = vadd.f32 %v1070, %v1169
      %v1202 = vadd.f32 %v1071, %v1170
      %v1203 = vadd.f32 %v1072, %v1171
      %v1204 = vadd.f32 %v1073, %v1172
      %v1205 = vrot.slane %v581, 2
      %v1206 = vrot.slane %v582, 2
      %v1207 = vrot.slane %v583, 2
      %v1208 = vrot.slane %v584, 2
      %v1209 = vrot.slane %v585, 2
      %v1210 = vrot.slane %v586, 2
      %v1211 = vrot.slane %v587, 2
      %v1212 = vrot.slane %v588, 2
      %v1213 = vrot.slane %v589, 2
      %v1214 = vrot.slane %v590, 2
      %v1215 = vrot.slane %v591, 2
      %v1216 = vrot.slane %v592, 2
      %v1217 = vrot.slane %v593, 2
      %v1218 = vrot.slane %v594, 2
      %v1219 = vrot.slane %v595, 2
      %v1220 = vrot.slane %v596, 2
      %v1221 = vrot.slane %v597, 2
      %v1222 = vrot.slane %v598, 2
      %v1223 = vrot.slane %v599, 2
      %v1224 = vrot.slane %v600, 2
      %v1225 = vrot.slane %v601, 2
      %v1226 = vrot.slane %v602, 2
      %v1227 = vrot.slane %v603, 2
      %v1228 = vrot.slane %v604, 2
      %v1229 = vrot.slane %v605, 2
      %v1230 = vrot.slane %v606, 2
      %v1231 = vrot.slane %v607, 2
      %v1232 = vrot.slane %v608, 2
      %v1233 = vrot.slane %v609, 2
      %v1234 = vrot.slane %v610, 2
      %v1235 = vrot.slane %v611, 2
      %v1236 = vrot.slane %v612, 2
      %v1237 = vrot.slane %v613, 2
      %vm1238 = vcmp.lt.s32.totalorder %v648, 6
      %v1239 = vsel %vm1238, %v1236, %v1237
      %v1240 = vsel %vm1238, %v1235, %v1236
      %v1241 = vsel %vm1238, %v1234, %v1235
      %v1242 = vsel %vm1238, %v1233, %v1234
      %v1243 = vsel %vm1238, %v1232, %v1233
      %v1244 = vsel %vm1238, %v1231, %v1232
      %v1245 = vsel %vm1238, %v1230, %v1231
      %v1246 = vsel %vm1238, %v1229, %v1230
      %v1247 = vsel %vm1238, %v1228, %v1229
      %v1248 = vsel %vm1238, %v1227, %v1228
      %v1249 = vsel %vm1238, %v1226, %v1227
      %v1250 = vsel %vm1238, %v1225, %v1226
      %v1251 = vsel %vm1238, %v1224, %v1225
      %v1252 = vsel %vm1238, %v1223, %v1224
      %v1253 = vsel %vm1238, %v1222, %v1223
      %v1254 = vsel %vm1238, %v1221, %v1222
      %v1255 = vsel %vm1238, %v1220, %v1221
      %v1256 = vsel %vm1238, %v1219, %v1220
      %v1257 = vsel %vm1238, %v1218, %v1219
      %v1258 = vsel %vm1238, %v1217, %v1218
      %v1259 = vsel %vm1238, %v1216, %v1217
      %v1260 = vsel %vm1238, %v1215, %v1216
      %v1261 = vsel %vm1238, %v1214, %v1215
      %v1262 = vsel %vm1238, %v1213, %v1214
      %v1263 = vsel %vm1238, %v1212, %v1213
      %v1264 = vsel %vm1238, %v1211, %v1212
      %v1265 = vsel %vm1238, %v1210, %v1211
      %v1266 = vsel %vm1238, %v1209, %v1210
      %v1267 = vsel %vm1238, %v1208, %v1209
      %v1268 = vsel %vm1238, %v1207, %v1208
      %v1269 = vsel %vm1238, %v1206, %v1207
      %v1270 = vsel %vm1238, %v1205, %v1206
      %v1271 = vperm.slane %v490, 5
      %v1272 = vmul.f32 %v1270, %v1271
      %v1273 = vmul.f32 %v1269, %v1271
      %v1274 = vmul.f32 %v1268, %v1271
      %v1275 = vmul.f32 %v1267, %v1271
      %v1276 = vmul.f32 %v1266, %v1271
      %v1277 = vmul.f32 %v1265, %v1271
      %v1278 = vmul.f32 %v1264, %v1271
      %v1279 = vmul.f32 %v1263, %v1271
      %v1280 = vmul.f32 %v1262, %v1271
      %v1281 = vmul.f32 %v1261, %v1271
      %v1282 = vmul.f32 %v1260, %v1271
      %v1283 = vmul.f32 %v1259, %v1271
      %v1284 = vmul.f32 %v1258, %v1271
      %v1285 = vmul.f32 %v1257, %v1271
      %v1286 = vmul.f32 %v1256, %v1271
      %v1287 = vmul.f32 %v1255, %v1271
      %v1288 = vmul.f32 %v1254, %v1271
      %v1289 = vmul.f32 %v1253, %v1271
      %v1290 = vmul.f32 %v1252, %v1271
      %v1291 = vmul.f32 %v1251, %v1271
      %v1292 = vmul.f32 %v1250, %v1271
      %v1293 = vmul.f32 %v1249, %v1271
      %v1294 = vmul.f32 %v1248, %v1271
      %v1295 = vmul.f32 %v1247, %v1271
      %v1296 = vmul.f32 %v1246, %v1271
      %v1297 = vmul.f32 %v1245, %v1271
      %v1298 = vmul.f32 %v1244, %v1271
      %v1299 = vmul.f32 %v1243, %v1271
      %v1300 = vmul.f32 %v1242, %v1271
      %v1301 = vmul.f32 %v1241, %v1271
      %v1302 = vmul.f32 %v1240, %v1271
      %v1303 = vmul.f32 %v1239, %v1271
      %v1304 = vadd.f32 %v1173, %v1272
      %v1305 = vadd.f32 %v1174, %v1273
      %v1306 = vadd.f32 %v1175, %v1274
      %v1307 = vadd.f32 %v1176, %v1275
      %v1308 = vadd.f32 %v1177, %v1276
      %v1309 = vadd.f32 %v1178, %v1277
      %v1310 = vadd.f32 %v1179, %v1278
      %v1311 = vadd.f32 %v1180, %v1279
      %v1312 = vadd.f32 %v1181, %v1280
      %v1313 = vadd.f32 %v1182, %v1281
      %v1314 = vadd.f32 %v1183, %v1282
      %v1315 = vadd.f32 %v1184, %v1283
      %v1316 = vadd.f32 %v1185, %v1284
      %v1317 = vadd.f32 %v1186, %v1285
      %v1318 = vadd.f32 %v1187, %v1286
      %v1319 = vadd.f32 %v1188, %v1287
      %v1320 = vadd.f32 %v1189, %v1288
      %v1321 = vadd.f32 %v1190, %v1289
      %v1322 = vadd.f32 %v1191, %v1290
      %v1323 = vadd.f32 %v1192, %v1291
      %v1324 = vadd.f32 %v1193, %v1292
      %v1325 = vadd.f32 %v1194, %v1293
      %v1326 = vadd.f32 %v1195, %v1294
      %v1327 = vadd.f32 %v1196, %v1295
      %v1328 = vadd.f32 %v1197, %v1296
      %v1329 = vadd.f32 %v1198, %v1297
      %v1330 = vadd.f32 %v1199, %v1298
      %v1331 = vadd.f32 %v1200, %v1299
      %v1332 = vadd.f32 %v1201, %v1300
      %v1333 = vadd.f32 %v1202, %v1301
      %v1334 = vadd.f32 %v1203, %v1302
      %v1335 = vadd.f32 %v1204, %v1303
      %v1336 = vrot.slane %v581, 3
      %v1337 = vrot.slane %v582, 3
      %v1338 = vrot.slane %v583, 3
      %v1339 = vrot.slane %v584, 3
      %v1340 = vrot.slane %v585, 3
      %v1341 = vrot.slane %v586, 3
      %v1342 = vrot.slane %v587, 3
      %v1343 = vrot.slane %v588, 3
      %v1344 = vrot.slane %v589, 3
      %v1345 = vrot.slane %v590, 3
      %v1346 = vrot.slane %v591, 3
      %v1347 = vrot.slane %v592, 3
      %v1348 = vrot.slane %v593, 3
      %v1349 = vrot.slane %v594, 3
      %v1350 = vrot.slane %v595, 3
      %v1351 = vrot.slane %v596, 3
      %v1352 = vrot.slane %v597, 3
      %v1353 = vrot.slane %v598, 3
      %v1354 = vrot.slane %v599, 3
      %v1355 = vrot.slane %v600, 3
      %v1356 = vrot.slane %v601, 3
      %v1357 = vrot.slane %v602, 3
      %v1358 = vrot.slane %v603, 3
      %v1359 = vrot.slane %v604, 3
      %v1360 = vrot.slane %v605, 3
      %v1361 = vrot.slane %v606, 3
      %v1362 = vrot.slane %v607, 3
      %v1363 = vrot.slane %v608, 3
      %v1364 = vrot.slane %v609, 3
      %v1365 = vrot.slane %v610, 3
      %v1366 = vrot.slane %v611, 3
      %v1367 = vrot.slane %v612, 3
      %v1368 = vrot.slane %v613, 3
      %vm1369 = vcmp.lt.s32.totalorder %v648, 5
      %v1370 = vsel %vm1369, %v1367, %v1368
      %v1371 = vsel %vm1369, %v1366, %v1367
      %v1372 = vsel %vm1369, %v1365, %v1366
      %v1373 = vsel %vm1369, %v1364, %v1365
      %v1374 = vsel %vm1369, %v1363, %v1364
      %v1375 = vsel %vm1369, %v1362, %v1363
      %v1376 = vsel %vm1369, %v1361, %v1362
      %v1377 = vsel %vm1369, %v1360, %v1361
      %v1378 = vsel %vm1369, %v1359, %v1360
      %v1379 = vsel %vm1369, %v1358, %v1359
      %v1380 = vsel %vm1369, %v1357, %v1358
      %v1381 = vsel %vm1369, %v1356, %v1357
      %v1382 = vsel %vm1369, %v1355, %v1356
      %v1383 = vsel %vm1369, %v1354, %v1355
      %v1384 = vsel %vm1369, %v1353, %v1354
      %v1385 = vsel %vm1369, %v1352, %v1353
      %v1386 = vsel %vm1369, %v1351, %v1352
      %v1387 = vsel %vm1369, %v1350, %v1351
      %v1388 = vsel %vm1369, %v1349, %v1350
      %v1389 = vsel %vm1369, %v1348, %v1349
      %v1390 = vsel %vm1369, %v1347, %v1348
      %v1391 = vsel %vm1369, %v1346, %v1347
      %v1392 = vsel %vm1369, %v1345, %v1346
      %v1393 = vsel %vm1369, %v1344, %v1345
      %v1394 = vsel %vm1369, %v1343, %v1344
      %v1395 = vsel %vm1369, %v1342, %v1343
      %v1396 = vsel %vm1369, %v1341, %v1342
      %v1397 = vsel %vm1369, %v1340, %v1341
      %v1398 = vsel %vm1369, %v1339, %v1340
      %v1399 = vsel %vm1369, %v1338, %v1339
      %v1400 = vsel %vm1369, %v1337, %v1338
      %v1401 = vsel %vm1369, %v1336, %v1337
      %v1402 = vperm.slane %v490, 6
      %v1403 = vmul.f32 %v1401, %v1402
      %v1404 = vmul.f32 %v1400, %v1402
      %v1405 = vmul.f32 %v1399, %v1402
      %v1406 = vmul.f32 %v1398, %v1402
      %v1407 = vmul.f32 %v1397, %v1402
      %v1408 = vmul.f32 %v1396, %v1402
      %v1409 = vmul.f32 %v1395, %v1402
      %v1410 = vmul.f32 %v1394, %v1402
      %v1411 = vmul.f32 %v1393, %v1402
      %v1412 = vmul.f32 %v1392, %v1402
      %v1413 = vmul.f32 %v1391, %v1402
      %v1414 = vmul.f32 %v1390, %v1402
      %v1415 = vmul.f32 %v1389, %v1402
      %v1416 = vmul.f32 %v1388, %v1402
      %v1417 = vmul.f32 %v1387, %v1402
      %v1418 = vmul.f32 %v1386, %v1402
      %v1419 = vmul.f32 %v1385, %v1402
      %v1420 = vmul.f32 %v1384, %v1402
      %v1421 = vmul.f32 %v1383, %v1402
      %v1422 = vmul.f32 %v1382, %v1402
      %v1423 = vmul.f32 %v1381, %v1402
      %v1424 = vmul.f32 %v1380, %v1402
      %v1425 = vmul.f32 %v1379, %v1402
      %v1426 = vmul.f32 %v1378, %v1402
      %v1427 = vmul.f32 %v1377, %v1402
      %v1428 = vmul.f32 %v1376, %v1402
      %v1429 = vmul.f32 %v1375, %v1402
      %v1430 = vmul.f32 %v1374, %v1402
      %v1431 = vmul.f32 %v1373, %v1402
      %v1432 = vmul.f32 %v1372, %v1402
      %v1433 = vmul.f32 %v1371, %v1402
      %v1434 = vmul.f32 %v1370, %v1402
      %v1435 = vadd.f32 %v1304, %v1403
      %v1436 = vadd.f32 %v1305, %v1404
      %v1437 = vadd.f32 %v1306, %v1405
      %v1438 = vadd.f32 %v1307, %v1406
      %v1439 = vadd.f32 %v1308, %v1407
      %v1440 = vadd.f32 %v1309, %v1408
      %v1441 = vadd.f32 %v1310, %v1409
      %v1442 = vadd.f32 %v1311, %v1410
      %v1443 = vadd.f32 %v1312, %v1411
      %v1444 = vadd.f32 %v1313, %v1412
      %v1445 = vadd.f32 %v1314, %v1413
      %v1446 = vadd.f32 %v1315, %v1414
      %v1447 = vadd.f32 %v1316, %v1415
      %v1448 = vadd.f32 %v1317, %v1416
      %v1449 = vadd.f32 %v1318, %v1417
      %v1450 = vadd.f32 %v1319, %v1418
      %v1451 = vadd.f32 %v1320, %v1419
      %v1452 = vadd.f32 %v1321, %v1420
      %v1453 = vadd.f32 %v1322, %v1421
      %v1454 = vadd.f32 %v1323, %v1422
      %v1455 = vadd.f32 %v1324, %v1423
      %v1456 = vadd.f32 %v1325, %v1424
      %v1457 = vadd.f32 %v1326, %v1425
      %v1458 = vadd.f32 %v1327, %v1426
      %v1459 = vadd.f32 %v1328, %v1427
      %v1460 = vadd.f32 %v1329, %v1428
      %v1461 = vadd.f32 %v1330, %v1429
      %v1462 = vadd.f32 %v1331, %v1430
      %v1463 = vadd.f32 %v1332, %v1431
      %v1464 = vadd.f32 %v1333, %v1432
      %v1465 = vadd.f32 %v1334, %v1433
      %v1466 = vadd.f32 %v1335, %v1434
      %v1468 = vperm.slane %v491, 0
      %v1470 = vadd.f32 %v1435, %v1468
      %v1471 = vadd.f32 %v1436, %v1468
      %v1472 = vadd.f32 %v1437, %v1468
      %v1473 = vadd.f32 %v1438, %v1468
      %v1474 = vadd.f32 %v1439, %v1468
      %v1475 = vadd.f32 %v1440, %v1468
      %v1476 = vadd.f32 %v1441, %v1468
      %v1477 = vadd.f32 %v1442, %v1468
      %v1478 = vadd.f32 %v1443, %v1468
      %v1479 = vadd.f32 %v1444, %v1468
      %v1480 = vadd.f32 %v1445, %v1468
      %v1481 = vadd.f32 %v1446, %v1468
      %v1482 = vadd.f32 %v1447, %v1468
      %v1483 = vadd.f32 %v1448, %v1468
      %v1484 = vadd.f32 %v1449, %v1468
      %v1485 = vadd.f32 %v1450, %v1468
      %v1486 = vadd.f32 %v1451, %v1468
      %v1487 = vadd.f32 %v1452, %v1468
      %v1488 = vadd.f32 %v1453, %v1468
      %v1489 = vadd.f32 %v1454, %v1468
      %v1490 = vadd.f32 %v1455, %v1468
      %v1491 = vadd.f32 %v1456, %v1468
      %v1492 = vadd.f32 %v1457, %v1468
      %v1493 = vadd.f32 %v1458, %v1468
      %v1494 = vadd.f32 %v1459, %v1468
      %v1495 = vadd.f32 %v1460, %v1468
      %v1496 = vadd.f32 %v1461, %v1468
      %v1497 = vadd.f32 %v1462, %v1468
      %v1498 = vadd.f32 %v1463, %v1468
      %v1499 = vadd.f32 %v1464, %v1468
      %v1500 = vadd.f32 %v1465, %v1468
      %v1501 = vadd.f32 %v1466, %v1468
      %1502 = vadd.xlane.f32.xlu0 %v1470
      %v1503 = vpop.xlane.xlu0 %1502
      %1504 = vadd.xlane.f32.xlu0 %v1471
      %v1505 = vpop.xlane.xlu0 %1504
      %1506 = vadd.xlane.f32.xlu0 %v1472
      %v1507 = vpop.xlane.xlu0 %1506
      %1508 = vadd.xlane.f32.xlu0 %v1473
      %v1509 = vpop.xlane.xlu0 %1508
      %1510 = vadd.xlane.f32.xlu0 %v1474
      %v1511 = vpop.xlane.xlu0 %1510
      %1512 = vadd.xlane.f32.xlu0 %v1475
      %v1513 = vpop.xlane.xlu0 %1512
      %1514 = vadd.xlane.f32.xlu0 %v1476
      %v1515 = vpop.xlane.xlu0 %1514
      %1516 = vadd.xlane.f32.xlu0 %v1477
      %v1517 = vpop.xlane.xlu0 %1516
      %1518 = vadd.xlane.f32.xlu0 %v1478
      %v1519 = vpop.xlane.xlu0 %1518
      %1520 = vadd.xlane.f32.xlu0 %v1479
      %v1521 = vpop.xlane.xlu0 %1520
      %1522 = vadd.xlane.f32.xlu0 %v1480
      %v1523 = vpop.xlane.xlu0 %1522
      %1524 = vadd.xlane.f32.xlu0 %v1481
      %v1525 = vpop.xlane.xlu0 %1524
      %1526 = vadd.xlane.f32.xlu0 %v1482
      %v1527 = vpop.xlane.xlu0 %1526
      %1528 = vadd.xlane.f32.xlu0 %v1483
      %v1529 = vpop.xlane.xlu0 %1528
      %1530 = vadd.xlane.f32.xlu0 %v1484
      %v1531 = vpop.xlane.xlu0 %1530
      %1532 = vadd.xlane.f32.xlu0 %v1485
      %v1533 = vpop.xlane.xlu0 %1532
      %1534 = vadd.xlane.f32.xlu0 %v1486
      %v1535 = vpop.xlane.xlu0 %1534
      %1536 = vadd.xlane.f32.xlu0 %v1487
      %v1537 = vpop.xlane.xlu0 %1536
      %1538 = vadd.xlane.f32.xlu0 %v1488
      %v1539 = vpop.xlane.xlu0 %1538
      %1540 = vadd.xlane.f32.xlu0 %v1489
      %v1541 = vpop.xlane.xlu0 %1540
      %1542 = vadd.xlane.f32.xlu0 %v1490
      %v1543 = vpop.xlane.xlu0 %1542
      %1544 = vadd.xlane.f32.xlu0 %v1491
      %v1545 = vpop.xlane.xlu0 %1544
      %1546 = vadd.xlane.f32.xlu0 %v1492
      %v1547 = vpop.xlane.xlu0 %1546
      %1548 = vadd.xlane.f32.xlu0 %v1493
      %v1549 = vpop.xlane.xlu0 %1548
      %1550 = vadd.xlane.f32.xlu0 %v1494
      %v1551 = vpop.xlane.xlu0 %1550
      %1552 = vadd.xlane.f32.xlu0 %v1495
      %v1553 = vpop.xlane.xlu0 %1552
      %1554 = vadd.xlane.f32.xlu0 %v1496
      %v1555 = vpop.xlane.xlu0 %1554
      %1556 = vadd.xlane.f32.xlu0 %v1497
      %v1557 = vpop.xlane.xlu0 %1556
      %1558 = vadd.xlane.f32.xlu0 %v1498
      %v1559 = vpop.xlane.xlu0 %1558
      %1560 = vadd.xlane.f32.xlu0 %v1499
      %v1561 = vpop.xlane.xlu0 %1560
      %1562 = vadd.xlane.f32.xlu0 %v1500
      %v1563 = vpop.xlane.xlu0 %1562
      %1564 = vadd.xlane.f32.xlu0 %v1501
      %v1565 = vpop.xlane.xlu0 %1564
      %v1566 = vrcp.pop 128.0
      %v1567 = vmul.f32 128.0, %v1566
      %v1568 = vsub.f32 1.0, %v1567
      %v1569 = vmul.f32 %v1566, %v1568
      %v1570 = vadd.f32 %v1566, %v1569
      %vm1571 = vweird.f32 %v1566
      %v1572 = vsel %vm1571, %v1566, %v1570
      %v1573 = vmul.f32 %v1503, %v1572
      %v1574 = vmul.f32 %v1505, %v1572
      %v1575 = vmul.f32 %v1507, %v1572
      %v1576 = vmul.f32 %v1509, %v1572
      %v1577 = vmul.f32 %v1511, %v1572
      %v1578 = vmul.f32 %v1513, %v1572
      %v1579 = vmul.f32 %v1515, %v1572
      %v1580 = vmul.f32 %v1517, %v1572
      %v1581 = vmul.f32 %v1519, %v1572
      %v1582 = vmul.f32 %v1521, %v1572
      %v1583 = vmul.f32 %v1523, %v1572
      %v1584 = vmul.f32 %v1525, %v1572
      %v1585 = vmul.f32 %v1527, %v1572
      %v1586 = vmul.f32 %v1529, %v1572
      %v1587 = vmul.f32 %v1531, %v1572
      %v1588 = vmul.f32 %v1533, %v1572
      %v1589 = vmul.f32 %v1535, %v1572
      %v1590 = vmul.f32 %v1537, %v1572
      %v1591 = vmul.f32 %v1539, %v1572
      %v1592 = vmul.f32 %v1541, %v1572
      %v1593 = vmul.f32 %v1543, %v1572
      %v1594 = vmul.f32 %v1545, %v1572
      %v1595 = vmul.f32 %v1547, %v1572
      %v1596 = vmul.f32 %v1549, %v1572
      %v1597 = vmul.f32 %v1551, %v1572
      %v1598 = vmul.f32 %v1553, %v1572
      %v1599 = vmul.f32 %v1555, %v1572
      %v1600 = vmul.f32 %v1557, %v1572
      %v1601 = vmul.f32 %v1559, %v1572
      %v1602 = vmul.f32 %v1561, %v1572
      %v1603 = vmul.f32 %v1563, %v1572
      %v1604 = vmul.f32 %v1565, %v1572
      %v1605 = vmul.f32 %v1470, %v1470
      %v1606 = vmul.f32 %v1471, %v1471
      %v1607 = vmul.f32 %v1472, %v1472
      %v1608 = vmul.f32 %v1473, %v1473
      %v1609 = vmul.f32 %v1474, %v1474
      %v1610 = vmul.f32 %v1475, %v1475
      %v1611 = vmul.f32 %v1476, %v1476
      %v1612 = vmul.f32 %v1477, %v1477
      %v1613 = vmul.f32 %v1478, %v1478
      %v1614 = vmul.f32 %v1479, %v1479
      %v1615 = vmul.f32 %v1480, %v1480
      %v1616 = vmul.f32 %v1481, %v1481
      %v1617 = vmul.f32 %v1482, %v1482
      %v1618 = vmul.f32 %v1483, %v1483
      %v1619 = vmul.f32 %v1484, %v1484
      %v1620 = vmul.f32 %v1485, %v1485
      %v1621 = vmul.f32 %v1486, %v1486
      %v1622 = vmul.f32 %v1487, %v1487
      %v1623 = vmul.f32 %v1488, %v1488
      %v1624 = vmul.f32 %v1489, %v1489
      %v1625 = vmul.f32 %v1490, %v1490
      %v1626 = vmul.f32 %v1491, %v1491
      %v1627 = vmul.f32 %v1492, %v1492
      %v1628 = vmul.f32 %v1493, %v1493
      %v1629 = vmul.f32 %v1494, %v1494
      %v1630 = vmul.f32 %v1495, %v1495
      %v1631 = vmul.f32 %v1496, %v1496
      %v1632 = vmul.f32 %v1497, %v1497
      %v1633 = vmul.f32 %v1498, %v1498
      %v1634 = vmul.f32 %v1499, %v1499
      %v1635 = vmul.f32 %v1500, %v1500
      %v1636 = vmul.f32 %v1501, %v1501
      %1637 = vadd.xlane.f32.xlu0 %v1605
      %v1638 = vpop.xlane.xlu0 %1637
      %1639 = vadd.xlane.f32.xlu0 %v1606
      %v1640 = vpop.xlane.xlu0 %1639
      %1641 = vadd.xlane.f32.xlu0 %v1607
      %v1642 = vpop.xlane.xlu0 %1641
      %1643 = vadd.xlane.f32.xlu0 %v1608
      %v1644 = vpop.xlane.xlu0 %1643
      %1645 = vadd.xlane.f32.xlu0 %v1609
      %v1646 = vpop.xlane.xlu0 %1645
      %1647 = vadd.xlane.f32.xlu0 %v1610
      %v1648 = vpop.xlane.xlu0 %1647
      %1649 = vadd.xlane.f32.xlu0 %v1611
      %v1650 = vpop.xlane.xlu0 %1649
      %1651 = vadd.xlane.f32.xlu0 %v1612
      %v1652 = vpop.xlane.xlu0 %1651
      %1653 = vadd.xlane.f32.xlu0 %v1613
      %v1654 = vpop.xlane.xlu0 %1653
      %1655 = vadd.xlane.f32.xlu0 %v1614
      %v1656 = vpop.xlane.xlu0 %1655
      %1657 = vadd.xlane.f32.xlu0 %v1615
      %v1658 = vpop.xlane.xlu0 %1657
      %1659 = vadd.xlane.f32.xlu0 %v1616
      %v1660 = vpop.xlane.xlu0 %1659
      %1661 = vadd.xlane.f32.xlu0 %v1617
      %v1662 = vpop.xlane.xlu0 %1661
      %1663 = vadd.xlane.f32.xlu0 %v1618
      %v1664 = vpop.xlane.xlu0 %1663
      %1665 = vadd.xlane.f32.xlu0 %v1619
      %v1666 = vpop.xlane.xlu0 %1665
      %1667 = vadd.xlane.f32.xlu0 %v1620
      %v1668 = vpop.xlane.xlu0 %1667
      %1669 = vadd.xlane.f32.xlu0 %v1621
      %v1670 = vpop.xlane.xlu0 %1669
      %1671 = vadd.xlane.f32.xlu0 %v1622
      %v1672 = vpop.xlane.xlu0 %1671
      %1673 = vadd.xlane.f32.xlu0 %v1623
      %v1674 = vpop.xlane.xlu0 %1673
      %1675 = vadd.xlane.f32.xlu0 %v1624
      %v1676 = vpop.xlane.xlu0 %1675
      %1677 = vadd.xlane.f32.xlu0 %v1625
      %v1678 = vpop.xlane.xlu0 %1677
      %1679 = vadd.xlane.f32.xlu0 %v1626
      %v1680 = vpop.xlane.xlu0 %1679
      %1681 = vadd.xlane.f32.xlu0 %v1627
      %v1682 = vpop.xlane.xlu0 %1681
      %1683 = vadd.xlane.f32.xlu0 %v1628
      %v1684 = vpop.xlane.xlu0 %1683
      %1685 = vadd.xlane.f32.xlu0 %v1629
      %v1686 = vpop.xlane.xlu0 %1685
      %1687 = vadd.xlane.f32.xlu0 %v1630
      %v1688 = vpop.xlane.xlu0 %1687
      %1689 = vadd.xlane.f32.xlu0 %v1631
      %v1690 = vpop.xlane.xlu0 %1689
      %1691 = vadd.xlane.f32.xlu0 %v1632
      %v1692 = vpop.xlane.xlu0 %1691
      %1693 = vadd.xlane.f32.xlu0 %v1633
      %v1694 = vpop.xlane.xlu0 %1693
      %1695 = vadd.xlane.f32.xlu0 %v1634
      %v1696 = vpop.xlane.xlu0 %1695
      %1697 = vadd.xlane.f32.xlu0 %v1635
      %v1698 = vpop.xlane.xlu0 %1697
      %1699 = vadd.xlane.f32.xlu0 %v1636
      %v1700 = vpop.xlane.xlu0 %1699
      %v1701 = vmul.f32 %v1638, %v1572
      %v1702 = vmul.f32 %v1640, %v1572
      %v1703 = vmul.f32 %v1642, %v1572
      %v1704 = vmul.f32 %v1644, %v1572
      %v1705 = vmul.f32 %v1646, %v1572
      %v1706 = vmul.f32 %v1648, %v1572
      %v1707 = vmul.f32 %v1650, %v1572
      %v1708 = vmul.f32 %v1652, %v1572
      %v1709 = vmul.f32 %v1654, %v1572
      %v1710 = vmul.f32 %v1656, %v1572
      %v1711 = vmul.f32 %v1658, %v1572
      %v1712 = vmul.f32 %v1660, %v1572
      %v1713 = vmul.f32 %v1662, %v1572
      %v1714 = vmul.f32 %v1664, %v1572
      %v1715 = vmul.f32 %v1666, %v1572
      %v1716 = vmul.f32 %v1668, %v1572
      %v1717 = vmul.f32 %v1670, %v1572
      %v1718 = vmul.f32 %v1672, %v1572
      %v1719 = vmul.f32 %v1674, %v1572
      %v1720 = vmul.f32 %v1676, %v1572
      %v1721 = vmul.f32 %v1678, %v1572
      %v1722 = vmul.f32 %v1680, %v1572
      %v1723 = vmul.f32 %v1682, %v1572
      %v1724 = vmul.f32 %v1684, %v1572
      %v1725 = vmul.f32 %v1686, %v1572
      %v1726 = vmul.f32 %v1688, %v1572
      %v1727 = vmul.f32 %v1690, %v1572
      %v1728 = vmul.f32 %v1692, %v1572
      %v1729 = vmul.f32 %v1694, %v1572
      %v1730 = vmul.f32 %v1696, %v1572
      %v1731 = vmul.f32 %v1698, %v1572
      %v1732 = vmul.f32 %v1700, %v1572
      %v1733 = vmul.f32 %v1573, %v1573
      %v1734 = vmul.f32 %v1574, %v1574
      %v1735 = vmul.f32 %v1575, %v1575
      %v1736 = vmul.f32 %v1576, %v1576
      %v1737 = vmul.f32 %v1577, %v1577
      %v1738 = vmul.f32 %v1578, %v1578
      %v1739 = vmul.f32 %v1579, %v1579
      %v1740 = vmul.f32 %v1580, %v1580
      %v1741 = vmul.f32 %v1581, %v1581
      %v1742 = vmul.f32 %v1582, %v1582
      %v1743 = vmul.f32 %v1583, %v1583
      %v1744 = vmul.f32 %v1584, %v1584
      %v1745 = vmul.f32 %v1585, %v1585
      %v1746 = vmul.f32 %v1586, %v1586
      %v1747 = vmul.f32 %v1587, %v1587
      %v1748 = vmul.f32 %v1588, %v1588
      %v1749 = vmul.f32 %v1589, %v1589
      %v1750 = vmul.f32 %v1590, %v1590
      %v1751 = vmul.f32 %v1591, %v1591
      %v1752 = vmul.f32 %v1592, %v1592
      %v1753 = vmul.f32 %v1593, %v1593
      %v1754 = vmul.f32 %v1594, %v1594
      %v1755 = vmul.f32 %v1595, %v1595
      %v1756 = vmul.f32 %v1596, %v1596
      %v1757 = vmul.f32 %v1597, %v1597
      %v1758 = vmul.f32 %v1598, %v1598
      %v1759 = vmul.f32 %v1599, %v1599
      %v1760 = vmul.f32 %v1600, %v1600
      %v1761 = vmul.f32 %v1601, %v1601
      %v1762 = vmul.f32 %v1602, %v1602
      %v1763 = vmul.f32 %v1603, %v1603
      %v1764 = vmul.f32 %v1604, %v1604
      %v1765 = vsub.f32 %v1701, %v1733
      %v1766 = vsub.f32 %v1702, %v1734
      %v1767 = vsub.f32 %v1703, %v1735
      %v1768 = vsub.f32 %v1704, %v1736
      %v1769 = vsub.f32 %v1705, %v1737
      %v1770 = vsub.f32 %v1706, %v1738
      %v1771 = vsub.f32 %v1707, %v1739
      %v1772 = vsub.f32 %v1708, %v1740
      %v1773 = vsub.f32 %v1709, %v1741
      %v1774 = vsub.f32 %v1710, %v1742
      %v1775 = vsub.f32 %v1711, %v1743
      %v1776 = vsub.f32 %v1712, %v1744
      %v1777 = vsub.f32 %v1713, %v1745
      %v1778 = vsub.f32 %v1714, %v1746
      %v1779 = vsub.f32 %v1715, %v1747
      %v1780 = vsub.f32 %v1716, %v1748
      %v1781 = vsub.f32 %v1717, %v1749
      %v1782 = vsub.f32 %v1718, %v1750
      %v1783 = vsub.f32 %v1719, %v1751
      %v1784 = vsub.f32 %v1720, %v1752
      %v1785 = vsub.f32 %v1721, %v1753
      %v1786 = vsub.f32 %v1722, %v1754
      %v1787 = vsub.f32 %v1723, %v1755
      %v1788 = vsub.f32 %v1724, %v1756
      %v1789 = vsub.f32 %v1725, %v1757
      %v1790 = vsub.f32 %v1726, %v1758
      %v1791 = vsub.f32 %v1727, %v1759
      %v1792 = vsub.f32 %v1728, %v1760
      %v1793 = vsub.f32 %v1729, %v1761
      %v1794 = vsub.f32 %v1730, %v1762
      %v1795 = vsub.f32 %v1731, %v1763
      %v1796 = vsub.f32 %v1732, %v1764
      %v1797 = vsub.f32 %v1470, %v1573
      %v1798 = vsub.f32 %v1471, %v1574
      %v1799 = vsub.f32 %v1472, %v1575
      %v1800 = vsub.f32 %v1473, %v1576
      %v1801 = vsub.f32 %v1474, %v1577
      %v1802 = vsub.f32 %v1475, %v1578
      %v1803 = vsub.f32 %v1476, %v1579
      %v1804 = vsub.f32 %v1477, %v1580
      %v1805 = vsub.f32 %v1478, %v1581
      %v1806 = vsub.f32 %v1479, %v1582
      %v1807 = vsub.f32 %v1480, %v1583
      %v1808 = vsub.f32 %v1481, %v1584
      %v1809 = vsub.f32 %v1482, %v1585
      %v1810 = vsub.f32 %v1483, %v1586
      %v1811 = vsub.f32 %v1484, %v1587
      %v1812 = vsub.f32 %v1485, %v1588
      %v1813 = vsub.f32 %v1486, %v1589
      %v1814 = vsub.f32 %v1487, %v1590
      %v1815 = vsub.f32 %v1488, %v1591
      %v1816 = vsub.f32 %v1489, %v1592
      %v1817 = vsub.f32 %v1490, %v1593
      %v1818 = vsub.f32 %v1491, %v1594
      %v1819 = vsub.f32 %v1492, %v1595
      %v1820 = vsub.f32 %v1493, %v1596
      %v1821 = vsub.f32 %v1494, %v1597
      %v1822 = vsub.f32 %v1495, %v1598
      %v1823 = vsub.f32 %v1496, %v1599
      %v1824 = vsub.f32 %v1497, %v1600
      %v1825 = vsub.f32 %v1498, %v1601
      %v1826 = vsub.f32 %v1499, %v1602
      %v1827 = vsub.f32 %v1500, %v1603
      %v1828 = vsub.f32 %v1501, %v1604
      %v1829 = vadd.f32 %v1765, 1e-05
      %v1830 = vadd.f32 %v1766, 1e-05
      %v1831 = vadd.f32 %v1767, 1e-05
      %v1832 = vadd.f32 %v1768, 1e-05
      %v1833 = vadd.f32 %v1769, 1e-05
      %v1834 = vadd.f32 %v1770, 1e-05
      %v1835 = vadd.f32 %v1771, 1e-05
      %v1836 = vadd.f32 %v1772, 1e-05
      %v1837 = vadd.f32 %v1773, 1e-05
      %v1838 = vadd.f32 %v1774, 1e-05
      %v1839 = vadd.f32 %v1775, 1e-05
      %v1840 = vadd.f32 %v1776, 1e-05
      %v1841 = vadd.f32 %v1777, 1e-05
      %v1842 = vadd.f32 %v1778, 1e-05
      %v1843 = vadd.f32 %v1779, 1e-05
      %v1844 = vadd.f32 %v1780, 1e-05
      %v1845 = vadd.f32 %v1781, 1e-05
      %v1846 = vadd.f32 %v1782, 1e-05
      %v1847 = vadd.f32 %v1783, 1e-05
      %v1848 = vadd.f32 %v1784, 1e-05
      %v1849 = vadd.f32 %v1785, 1e-05
      %v1850 = vadd.f32 %v1786, 1e-05
      %v1851 = vadd.f32 %v1787, 1e-05
      %v1852 = vadd.f32 %v1788, 1e-05
      %v1853 = vadd.f32 %v1789, 1e-05
      %v1854 = vadd.f32 %v1790, 1e-05
      %v1855 = vadd.f32 %v1791, 1e-05
      %v1856 = vadd.f32 %v1792, 1e-05
      %v1857 = vadd.f32 %v1793, 1e-05
      %v1858 = vadd.f32 %v1794, 1e-05
      %v1859 = vadd.f32 %v1795, 1e-05
      %v1860 = vadd.f32 %v1796, 1e-05
      %v1861 = vrsqrt.pop %v1829
      %v1862 = vmul.f32 %v1861, %v1829
      %v1863 = vmul.f32 %v1862, %v1861
      %v1864 = vmul.f32 0.5, %v1863
      %v1865 = vsub.f32 1.5, %v1864
      %v1866 = vmul.f32 %v1861, %v1865
      %vm1867 = vweird.f32 %v1829
      %vm1868 = vweird.f32 %v1861
      %vm1869 = vmor %vm1867, %vm1868
      %v1870 = vsel %vm1869, %v1861, %v1866
      %v1871 = vrsqrt.pop %v1830
      %v1872 = vmul.f32 %v1871, %v1830
      %v1873 = vmul.f32 %v1872, %v1871
      %v1874 = vmul.f32 0.5, %v1873
      %v1875 = vsub.f32 1.5, %v1874
      %v1876 = vmul.f32 %v1871, %v1875
      %vm1877 = vweird.f32 %v1830
      %vm1878 = vweird.f32 %v1871
      %vm1879 = vmor %vm1877, %vm1878
      %v1880 = vsel %vm1879, %v1871, %v1876
      %v1881 = vrsqrt.pop %v1831
      %v1882 = vmul.f32 %v1881, %v1831
      %v1883 = vmul.f32 %v1882, %v1881
      %v1884 = vmul.f32 0.5, %v1883
      %v1885 = vsub.f32 1.5, %v1884
      %v1886 = vmul.f32 %v1881, %v1885
      %vm1887 = vweird.f32 %v1831
      %vm1888 = vweird.f32 %v1881
      %vm1889 = vmor %vm1887, %vm1888
      %v1890 = vsel %vm1889, %v1881, %v1886
      %v1891 = vrsqrt.pop %v1832
      %v1892 = vmul.f32 %v1891, %v1832
      %v1893 = vmul.f32 %v1892, %v1891
      %v1894 = vmul.f32 0.5, %v1893
      %v1895 = vsub.f32 1.5, %v1894
      %v1896 = vmul.f32 %v1891, %v1895
      %vm1897 = vweird.f32 %v1832
      %vm1898 = vweird.f32 %v1891
      %vm1899 = vmor %vm1897, %vm1898
      %v1900 = vsel %vm1899, %v1891, %v1896
      %v1901 = vrsqrt.pop %v1833
      %v1902 = vmul.f32 %v1901, %v1833
      %v1903 = vmul.f32 %v1902, %v1901
      %v1904 = vmul.f32 0.5, %v1903
      %v1905 = vsub.f32 1.5, %v1904
      %v1906 = vmul.f32 %v1901, %v1905
      %vm1907 = vweird.f32 %v1833
      %vm1908 = vweird.f32 %v1901
      %vm1909 = vmor %vm1907, %vm1908
      %v1910 = vsel %vm1909, %v1901, %v1906
      %v1911 = vrsqrt.pop %v1834
      %v1912 = vmul.f32 %v1911, %v1834
      %v1913 = vmul.f32 %v1912, %v1911
      %v1914 = vmul.f32 0.5, %v1913
      %v1915 = vsub.f32 1.5, %v1914
      %v1916 = vmul.f32 %v1911, %v1915
      %vm1917 = vweird.f32 %v1834
      %vm1918 = vweird.f32 %v1911
      %vm1919 = vmor %vm1917, %vm1918
      %v1920 = vsel %vm1919, %v1911, %v1916
      %v1921 = vrsqrt.pop %v1835
      %v1922 = vmul.f32 %v1921, %v1835
      %v1923 = vmul.f32 %v1922, %v1921
      %v1924 = vmul.f32 0.5, %v1923
      %v1925 = vsub.f32 1.5, %v1924
      %v1926 = vmul.f32 %v1921, %v1925
      %vm1927 = vweird.f32 %v1835
      %vm1928 = vweird.f32 %v1921
      %vm1929 = vmor %vm1927, %vm1928
      %v1930 = vsel %vm1929, %v1921, %v1926
      %v1931 = vrsqrt.pop %v1836
      %v1932 = vmul.f32 %v1931, %v1836
      %v1933 = vmul.f32 %v1932, %v1931
      %v1934 = vmul.f32 0.5, %v1933
      %v1935 = vsub.f32 1.5, %v1934
      %v1936 = vmul.f32 %v1931, %v1935
      %vm1937 = vweird.f32 %v1836
      %vm1938 = vweird.f32 %v1931
      %vm1939 = vmor %vm1937, %vm1938
      %v1940 = vsel %vm1939, %v1931, %v1936
      %v1941 = vrsqrt.pop %v1837
      %v1942 = vmul.f32 %v1941, %v1837
      %v1943 = vmul.f32 %v1942, %v1941
      %v1944 = vmul.f32 0.5, %v1943
      %v1945 = vsub.f32 1.5, %v1944
      %v1946 = vmul.f32 %v1941, %v1945
      %vm1947 = vweird.f32 %v1837
      %vm1948 = vweird.f32 %v1941
      %vm1949 = vmor %vm1947, %vm1948
      %v1950 = vsel %vm1949, %v1941, %v1946
      %v1951 = vrsqrt.pop %v1838
      %v1952 = vmul.f32 %v1951, %v1838
      %v1953 = vmul.f32 %v1952, %v1951
      %v1954 = vmul.f32 0.5, %v1953
      %v1955 = vsub.f32 1.5, %v1954
      %v1956 = vmul.f32 %v1951, %v1955
      %vm1957 = vweird.f32 %v1838
      %vm1958 = vweird.f32 %v1951
      %vm1959 = vmor %vm1957, %vm1958
      %v1960 = vsel %vm1959, %v1951, %v1956
      %v1961 = vrsqrt.pop %v1839
      %v1962 = vmul.f32 %v1961, %v1839
      %v1963 = vmul.f32 %v1962, %v1961
      %v1964 = vmul.f32 0.5, %v1963
      %v1965 = vsub.f32 1.5, %v1964
      %v1966 = vmul.f32 %v1961, %v1965
      %vm1967 = vweird.f32 %v1839
      %vm1968 = vweird.f32 %v1961
      %vm1969 = vmor %vm1967, %vm1968
      %v1970 = vsel %vm1969, %v1961, %v1966
      %v1971 = vrsqrt.pop %v1840
      %v1972 = vmul.f32 %v1971, %v1840
      %v1973 = vmul.f32 %v1972, %v1971
      %v1974 = vmul.f32 0.5, %v1973
      %v1975 = vsub.f32 1.5, %v1974
      %v1976 = vmul.f32 %v1971, %v1975
      %vm1977 = vweird.f32 %v1840
      %vm1978 = vweird.f32 %v1971
      %vm1979 = vmor %vm1977, %vm1978
      %v1980 = vsel %vm1979, %v1971, %v1976
      %v1981 = vrsqrt.pop %v1841
      %v1982 = vmul.f32 %v1981, %v1841
      %v1983 = vmul.f32 %v1982, %v1981
      %v1984 = vmul.f32 0.5, %v1983
      %v1985 = vsub.f32 1.5, %v1984
      %v1986 = vmul.f32 %v1981, %v1985
      %vm1987 = vweird.f32 %v1841
      %vm1988 = vweird.f32 %v1981
      %vm1989 = vmor %vm1987, %vm1988
      %v1990 = vsel %vm1989, %v1981, %v1986
      %v1991 = vrsqrt.pop %v1842
      %v1992 = vmul.f32 %v1991, %v1842
      %v1993 = vmul.f32 %v1992, %v1991
      %v1994 = vmul.f32 0.5, %v1993
      %v1995 = vsub.f32 1.5, %v1994
      %v1996 = vmul.f32 %v1991, %v1995
      %vm1997 = vweird.f32 %v1842
      %vm1998 = vweird.f32 %v1991
      %vm1999 = vmor %vm1997, %vm1998
      %v2000 = vsel %vm1999, %v1991, %v1996
      %v2001 = vrsqrt.pop %v1843
      %v2002 = vmul.f32 %v2001, %v1843
      %v2003 = vmul.f32 %v2002, %v2001
      %v2004 = vmul.f32 0.5, %v2003
      %v2005 = vsub.f32 1.5, %v2004
      %v2006 = vmul.f32 %v2001, %v2005
      %vm2007 = vweird.f32 %v1843
      %vm2008 = vweird.f32 %v2001
      %vm2009 = vmor %vm2007, %vm2008
      %v2010 = vsel %vm2009, %v2001, %v2006
      %v2011 = vrsqrt.pop %v1844
      %v2012 = vmul.f32 %v2011, %v1844
      %v2013 = vmul.f32 %v2012, %v2011
      %v2014 = vmul.f32 0.5, %v2013
      %v2015 = vsub.f32 1.5, %v2014
      %v2016 = vmul.f32 %v2011, %v2015
      %vm2017 = vweird.f32 %v1844
      %vm2018 = vweird.f32 %v2011
      %vm2019 = vmor %vm2017, %vm2018
      %v2020 = vsel %vm2019, %v2011, %v2016
      %v2021 = vrsqrt.pop %v1845
      %v2022 = vmul.f32 %v2021, %v1845
      %v2023 = vmul.f32 %v2022, %v2021
      %v2024 = vmul.f32 0.5, %v2023
      %v2025 = vsub.f32 1.5, %v2024
      %v2026 = vmul.f32 %v2021, %v2025
      %vm2027 = vweird.f32 %v1845
      %vm2028 = vweird.f32 %v2021
      %vm2029 = vmor %vm2027, %vm2028
      %v2030 = vsel %vm2029, %v2021, %v2026
      %v2031 = vrsqrt.pop %v1846
      %v2032 = vmul.f32 %v2031, %v1846
      %v2033 = vmul.f32 %v2032, %v2031
      %v2034 = vmul.f32 0.5, %v2033
      %v2035 = vsub.f32 1.5, %v2034
      %v2036 = vmul.f32 %v2031, %v2035
      %vm2037 = vweird.f32 %v1846
      %vm2038 = vweird.f32 %v2031
      %vm2039 = vmor %vm2037, %vm2038
      %v2040 = vsel %vm2039, %v2031, %v2036
      %v2041 = vrsqrt.pop %v1847
      %v2042 = vmul.f32 %v2041, %v1847
      %v2043 = vmul.f32 %v2042, %v2041
      %v2044 = vmul.f32 0.5, %v2043
      %v2045 = vsub.f32 1.5, %v2044
      %v2046 = vmul.f32 %v2041, %v2045
      %vm2047 = vweird.f32 %v1847
      %vm2048 = vweird.f32 %v2041
      %vm2049 = vmor %vm2047, %vm2048
      %v2050 = vsel %vm2049, %v2041, %v2046
      %v2051 = vrsqrt.pop %v1848
      %v2052 = vmul.f32 %v2051, %v1848
      %v2053 = vmul.f32 %v2052, %v2051
      %v2054 = vmul.f32 0.5, %v2053
      %v2055 = vsub.f32 1.5, %v2054
      %v2056 = vmul.f32 %v2051, %v2055
      %vm2057 = vweird.f32 %v1848
      %vm2058 = vweird.f32 %v2051
      %vm2059 = vmor %vm2057, %vm2058
      %v2060 = vsel %vm2059, %v2051, %v2056
      %v2061 = vrsqrt.pop %v1849
      %v2062 = vmul.f32 %v2061, %v1849
      %v2063 = vmul.f32 %v2062, %v2061
      %v2064 = vmul.f32 0.5, %v2063
      %v2065 = vsub.f32 1.5, %v2064
      %v2066 = vmul.f32 %v2061, %v2065
      %vm2067 = vweird.f32 %v1849
      %vm2068 = vweird.f32 %v2061
      %vm2069 = vmor %vm2067, %vm2068
      %v2070 = vsel %vm2069, %v2061, %v2066
      %v2071 = vrsqrt.pop %v1850
      %v2072 = vmul.f32 %v2071, %v1850
      %v2073 = vmul.f32 %v2072, %v2071
      %v2074 = vmul.f32 0.5, %v2073
      %v2075 = vsub.f32 1.5, %v2074
      %v2076 = vmul.f32 %v2071, %v2075
      %vm2077 = vweird.f32 %v1850
      %vm2078 = vweird.f32 %v2071
      %vm2079 = vmor %vm2077, %vm2078
      %v2080 = vsel %vm2079, %v2071, %v2076
      %v2081 = vrsqrt.pop %v1851
      %v2082 = vmul.f32 %v2081, %v1851
      %v2083 = vmul.f32 %v2082, %v2081
      %v2084 = vmul.f32 0.5, %v2083
      %v2085 = vsub.f32 1.5, %v2084
      %v2086 = vmul.f32 %v2081, %v2085
      %vm2087 = vweird.f32 %v1851
      %vm2088 = vweird.f32 %v2081
      %vm2089 = vmor %vm2087, %vm2088
      %v2090 = vsel %vm2089, %v2081, %v2086
      %v2091 = vrsqrt.pop %v1852
      %v2092 = vmul.f32 %v2091, %v1852
      %v2093 = vmul.f32 %v2092, %v2091
      %v2094 = vmul.f32 0.5, %v2093
      %v2095 = vsub.f32 1.5, %v2094
      %v2096 = vmul.f32 %v2091, %v2095
      %vm2097 = vweird.f32 %v1852
      %vm2098 = vweird.f32 %v2091
      %vm2099 = vmor %vm2097, %vm2098
      %v2100 = vsel %vm2099, %v2091, %v2096
      %v2101 = vrsqrt.pop %v1853
      %v2102 = vmul.f32 %v2101, %v1853
      %v2103 = vmul.f32 %v2102, %v2101
      %v2104 = vmul.f32 0.5, %v2103
      %v2105 = vsub.f32 1.5, %v2104
      %v2106 = vmul.f32 %v2101, %v2105
      %vm2107 = vweird.f32 %v1853
      %vm2108 = vweird.f32 %v2101
      %vm2109 = vmor %vm2107, %vm2108
      %v2110 = vsel %vm2109, %v2101, %v2106
      %v2111 = vrsqrt.pop %v1854
      %v2112 = vmul.f32 %v2111, %v1854
      %v2113 = vmul.f32 %v2112, %v2111
      %v2114 = vmul.f32 0.5, %v2113
      %v2115 = vsub.f32 1.5, %v2114
      %v2116 = vmul.f32 %v2111, %v2115
      %vm2117 = vweird.f32 %v1854
      %vm2118 = vweird.f32 %v2111
      %vm2119 = vmor %vm2117, %vm2118
      %v2120 = vsel %vm2119, %v2111, %v2116
      %v2121 = vrsqrt.pop %v1855
      %v2122 = vmul.f32 %v2121, %v1855
      %v2123 = vmul.f32 %v2122, %v2121
      %v2124 = vmul.f32 0.5, %v2123
      %v2125 = vsub.f32 1.5, %v2124
      %v2126 = vmul.f32 %v2121, %v2125
      %vm2127 = vweird.f32 %v1855
      %vm2128 = vweird.f32 %v2121
      %vm2129 = vmor %vm2127, %vm2128
      %v2130 = vsel %vm2129, %v2121, %v2126
      %v2131 = vrsqrt.pop %v1856
      %v2132 = vmul.f32 %v2131, %v1856
      %v2133 = vmul.f32 %v2132, %v2131
      %v2134 = vmul.f32 0.5, %v2133
      %v2135 = vsub.f32 1.5, %v2134
      %v2136 = vmul.f32 %v2131, %v2135
      %vm2137 = vweird.f32 %v1856
      %vm2138 = vweird.f32 %v2131
      %vm2139 = vmor %vm2137, %vm2138
      %v2140 = vsel %vm2139, %v2131, %v2136
      %v2141 = vrsqrt.pop %v1857
      %v2142 = vmul.f32 %v2141, %v1857
      %v2143 = vmul.f32 %v2142, %v2141
      %v2144 = vmul.f32 0.5, %v2143
      %v2145 = vsub.f32 1.5, %v2144
      %v2146 = vmul.f32 %v2141, %v2145
      %vm2147 = vweird.f32 %v1857
      %vm2148 = vweird.f32 %v2141
      %vm2149 = vmor %vm2147, %vm2148
      %v2150 = vsel %vm2149, %v2141, %v2146
      %v2151 = vrsqrt.pop %v1858
      %v2152 = vmul.f32 %v2151, %v1858
      %v2153 = vmul.f32 %v2152, %v2151
      %v2154 = vmul.f32 0.5, %v2153
      %v2155 = vsub.f32 1.5, %v2154
      %v2156 = vmul.f32 %v2151, %v2155
      %vm2157 = vweird.f32 %v1858
      %vm2158 = vweird.f32 %v2151
      %vm2159 = vmor %vm2157, %vm2158
      %v2160 = vsel %vm2159, %v2151, %v2156
      %v2161 = vrsqrt.pop %v1859
      %v2162 = vmul.f32 %v2161, %v1859
      %v2163 = vmul.f32 %v2162, %v2161
      %v2164 = vmul.f32 0.5, %v2163
      %v2165 = vsub.f32 1.5, %v2164
      %v2166 = vmul.f32 %v2161, %v2165
      %vm2167 = vweird.f32 %v1859
      %vm2168 = vweird.f32 %v2161
      %vm2169 = vmor %vm2167, %vm2168
      %v2170 = vsel %vm2169, %v2161, %v2166
      %v2171 = vrsqrt.pop %v1860
      %v2172 = vmul.f32 %v2171, %v1860
      %v2173 = vmul.f32 %v2172, %v2171
      %v2174 = vmul.f32 0.5, %v2173
      %v2175 = vsub.f32 1.5, %v2174
      %v2176 = vmul.f32 %v2171, %v2175
      %vm2177 = vweird.f32 %v1860
      %vm2178 = vweird.f32 %v2171
      %vm2179 = vmor %vm2177, %vm2178
      %v2180 = vsel %vm2179, %v2171, %v2176
      %v2181 = vmul.f32 %v1797, %v1870
      %v2182 = vmul.f32 %v1798, %v1880
      %v2183 = vmul.f32 %v1799, %v1890
      %v2184 = vmul.f32 %v1800, %v1900
      %v2185 = vmul.f32 %v1801, %v1910
      %v2186 = vmul.f32 %v1802, %v1920
      %v2187 = vmul.f32 %v1803, %v1930
      %v2188 = vmul.f32 %v1804, %v1940
      %v2189 = vmul.f32 %v1805, %v1950
      %v2190 = vmul.f32 %v1806, %v1960
      %v2191 = vmul.f32 %v1807, %v1970
      %v2192 = vmul.f32 %v1808, %v1980
      %v2193 = vmul.f32 %v1809, %v1990
      %v2194 = vmul.f32 %v1810, %v2000
      %v2195 = vmul.f32 %v1811, %v2010
      %v2196 = vmul.f32 %v1812, %v2020
      %v2197 = vmul.f32 %v1813, %v2030
      %v2198 = vmul.f32 %v1814, %v2040
      %v2199 = vmul.f32 %v1815, %v2050
      %v2200 = vmul.f32 %v1816, %v2060
      %v2201 = vmul.f32 %v1817, %v2070
      %v2202 = vmul.f32 %v1818, %v2080
      %v2203 = vmul.f32 %v1819, %v2090
      %v2204 = vmul.f32 %v1820, %v2100
      %v2205 = vmul.f32 %v1821, %v2110
      %v2206 = vmul.f32 %v1822, %v2120
      %v2207 = vmul.f32 %v1823, %v2130
      %v2208 = vmul.f32 %v1824, %v2140
      %v2209 = vmul.f32 %v1825, %v2150
      %v2210 = vmul.f32 %v1826, %v2160
      %v2211 = vmul.f32 %v1827, %v2170
      %v2212 = vmul.f32 %v1828, %v2180
      %v2213 = vpack.c.bf16 %v2182, %v2181
      %v2214 = vpack.c.bf16 %v2184, %v2183
      %v2215 = vpack.c.bf16 %v2186, %v2185
      %v2216 = vpack.c.bf16 %v2188, %v2187
      %v2217 = vpack.c.bf16 %v2190, %v2189
      %v2218 = vpack.c.bf16 %v2192, %v2191
      %v2219 = vpack.c.bf16 %v2194, %v2193
      %v2220 = vpack.c.bf16 %v2196, %v2195
      %v2221 = vpack.c.bf16 %v2198, %v2197
      %v2222 = vpack.c.bf16 %v2200, %v2199
      %v2223 = vpack.c.bf16 %v2202, %v2201
      %v2224 = vpack.c.bf16 %v2204, %v2203
      %v2225 = vpack.c.bf16 %v2206, %v2205
      %v2226 = vpack.c.bf16 %v2208, %v2207
      %v2227 = vpack.c.bf16 %v2210, %v2209
      %v2228 = vpack.c.bf16 %v2212, %v2211
      %v2229 = vld [vmem:[%s5] sm:$0xff]
      %v2230 = vld [vmem:[%s5 + $0x8] sm:$0xff]
      %v2231 = vld [vmem:[%s5 + $0x10] sm:$0xff]
      %v2232 = vld [vmem:[%s5 + $0x18] sm:$0xff]
      %v2233 = vld [vmem:[%s5 + $0x20] sm:$0xff]
      %v2234 = vld [vmem:[%s5 + $0x28] sm:$0xff]
      %v2235 = vld [vmem:[%s5 + $0x30] sm:$0xff]
      %v2236 = vld [vmem:[%s5 + $0x38] sm:$0xff]
      %v2237 = vld [vmem:[%s5 + $0x40] sm:$0xff]
      %v2238 = vld [vmem:[%s5 + $0x48] sm:$0xff]
      %v2239 = vld [vmem:[%s5 + $0x50] sm:$0xff]
      %v2240 = vld [vmem:[%s5 + $0x58] sm:$0xff]
      %v2241 = vld [vmem:[%s5 + $0x60] sm:$0xff]
      %v2242 = vld [vmem:[%s5 + $0x68] sm:$0xff]
      %v2243 = vld [vmem:[%s5 + $0x70] sm:$0xff]
      %v2244 = vld [vmem:[%s5 + $0x78] sm:$0xff]
      %v2246 = vperm.slane %v492, 0
      %v2247 = vperm.slane %v492, 1
      %v2266 = vunpack.c.l.b16 %v2229
      %v2267 = vunpack.c.h.b16 %v2229
      %v2268 = vunpack.c.l.b16 %v2230
      %v2269 = vunpack.c.h.b16 %v2230
      %v2270 = vunpack.c.l.b16 %v2231
      %v2271 = vunpack.c.h.b16 %v2231
      %v2272 = vunpack.c.l.b16 %v2232
      %v2273 = vunpack.c.h.b16 %v2232
      %v2274 = vunpack.c.l.b16 %v2233
      %v2275 = vunpack.c.h.b16 %v2233
      %v2276 = vunpack.c.l.b16 %v2234
      %v2277 = vunpack.c.h.b16 %v2234
      %v2278 = vunpack.c.l.b16 %v2235
      %v2279 = vunpack.c.h.b16 %v2235
      %v2280 = vunpack.c.l.b16 %v2236
      %v2281 = vunpack.c.h.b16 %v2236
      %v2282 = vunpack.c.l.b16 %v2237
      %v2283 = vunpack.c.h.b16 %v2237
      %v2284 = vunpack.c.l.b16 %v2238
      %v2285 = vunpack.c.h.b16 %v2238
      %v2286 = vunpack.c.l.b16 %v2239
      %v2287 = vunpack.c.h.b16 %v2239
      %v2288 = vunpack.c.l.b16 %v2240
      %v2289 = vunpack.c.h.b16 %v2240
      %v2290 = vunpack.c.l.b16 %v2241
      %v2291 = vunpack.c.h.b16 %v2241
      %v2292 = vunpack.c.l.b16 %v2242
      %v2293 = vunpack.c.h.b16 %v2242
      %v2294 = vunpack.c.l.b16 %v2243
      %v2295 = vunpack.c.h.b16 %v2243
      %v2296 = vunpack.c.l.b16 %v2244
      %v2297 = vunpack.c.h.b16 %v2244
      %v2298 = vpack.c.b16 %v2268, %v2266
      %v2299 = vpack.c.b16 %v2269, %v2267
      %v2300 = vpack.c.b16 %v2272, %v2270
      %v2301 = vpack.c.b16 %v2273, %v2271
      %v2302 = vpack.c.b16 %v2276, %v2274
      %v2303 = vpack.c.b16 %v2277, %v2275
      %v2304 = vpack.c.b16 %v2280, %v2278
      %v2305 = vpack.c.b16 %v2281, %v2279
      %v2306 = vpack.c.b16 %v2284, %v2282
      %v2307 = vpack.c.b16 %v2285, %v2283
      %v2308 = vpack.c.b16 %v2288, %v2286
      %v2309 = vpack.c.b16 %v2289, %v2287
      %v2310 = vpack.c.b16 %v2292, %v2290
      %v2311 = vpack.c.b16 %v2293, %v2291
      %v2312 = vpack.c.b16 %v2296, %v2294
      %v2313 = vpack.c.b16 %v2297, %v2295
      %2330 = vmatpush.bf16.msra.mxu0 %v2312
      %2331 = vmatpush.bf16.msra.mxu0 %v2310
      %2332 = vmatpush.bf16.msra.mxu0 %v2308
      %2333 = vmatpush.bf16.msra.mxu0 %v2306
      %2334 = vmatpush.bf16.msra.mxu0 %v2304
      %2335 = vmatpush.bf16.msra.mxu0 %v2302
      %2336 = vmatpush.bf16.msra.mxu0 %v2300
      %2337 = vmatpush.bf16.msra.mxu0 %v2298
      %2338 = vmatmul.bf16.gmra.mxu0 %v2213
      %v2339 = vpop.f32.mrf.mxu0
      %v2340 = vadd.f32 %v2246, %v2339
      %v2341 = vpop.f32.mrf.mxu0
      %v2342 = vadd.f32 %v2246, %v2341
      %2343 = vmatmul.bf16.gmra.mxu0 %v2214
      %v2344 = vpop.f32.mrf.mxu0
      %v2345 = vadd.f32 %v2246, %v2344
      %v2346 = vpop.f32.mrf.mxu0
      %v2347 = vadd.f32 %v2246, %v2346
      %2348 = vmatmul.bf16.gmra.mxu0 %v2215
      %v2349 = vpop.f32.mrf.mxu0
      %v2350 = vadd.f32 %v2246, %v2349
      %v2351 = vpop.f32.mrf.mxu0
      %v2352 = vadd.f32 %v2246, %v2351
      %2353 = vmatmul.bf16.gmra.mxu0 %v2216
      %v2354 = vpop.f32.mrf.mxu0
      %v2355 = vadd.f32 %v2246, %v2354
      %v2356 = vpop.f32.mrf.mxu0
      %v2357 = vadd.f32 %v2246, %v2356
      %2358 = vmatmul.bf16.gmra.mxu0 %v2217
      %v2359 = vpop.f32.mrf.mxu0
      %v2360 = vadd.f32 %v2246, %v2359
      %v2361 = vpop.f32.mrf.mxu0
      %v2362 = vadd.f32 %v2246, %v2361
      %2363 = vmatmul.bf16.gmra.mxu0 %v2218
      %v2364 = vpop.f32.mrf.mxu0
      %v2365 = vadd.f32 %v2246, %v2364
      %v2366 = vpop.f32.mrf.mxu0
      %v2367 = vadd.f32 %v2246, %v2366
      %2368 = vmatmul.bf16.gmra.mxu0 %v2219
      %v2369 = vpop.f32.mrf.mxu0
      %v2370 = vadd.f32 %v2246, %v2369
      %v2371 = vpop.f32.mrf.mxu0
      %v2372 = vadd.f32 %v2246, %v2371
      %2373 = vmatmul.bf16.gmra.mxu0 %v2220
      %v2374 = vpop.f32.mrf.mxu0
      %v2375 = vadd.f32 %v2246, %v2374
      %v2376 = vpop.f32.mrf.mxu0
      %v2377 = vadd.f32 %v2246, %v2376
      %2378 = vmatmul.bf16.gmra.mxu0 %v2221
      %v2379 = vpop.f32.mrf.mxu0
      %v2380 = vadd.f32 %v2246, %v2379
      %v2381 = vpop.f32.mrf.mxu0
      %v2382 = vadd.f32 %v2246, %v2381
      %2383 = vmatmul.bf16.gmra.mxu0 %v2222
      %v2384 = vpop.f32.mrf.mxu0
      %v2385 = vadd.f32 %v2246, %v2384
      %v2386 = vpop.f32.mrf.mxu0
      %v2387 = vadd.f32 %v2246, %v2386
      %2388 = vmatmul.bf16.gmra.mxu0 %v2223
      %v2389 = vpop.f32.mrf.mxu0
      %v2390 = vadd.f32 %v2246, %v2389
      %v2391 = vpop.f32.mrf.mxu0
      %v2392 = vadd.f32 %v2246, %v2391
      %2393 = vmatmul.bf16.gmra.mxu0 %v2224
      %v2394 = vpop.f32.mrf.mxu0
      %v2395 = vadd.f32 %v2246, %v2394
      %v2396 = vpop.f32.mrf.mxu0
      %v2397 = vadd.f32 %v2246, %v2396
      %2398 = vmatmul.bf16.gmra.mxu0 %v2225
      %v2399 = vpop.f32.mrf.mxu0
      %v2400 = vadd.f32 %v2246, %v2399
      %v2401 = vpop.f32.mrf.mxu0
      %v2402 = vadd.f32 %v2246, %v2401
      %2403 = vmatmul.bf16.gmra.mxu0 %v2226
      %v2404 = vpop.f32.mrf.mxu0
      %v2405 = vadd.f32 %v2246, %v2404
      %v2406 = vpop.f32.mrf.mxu0
      %v2407 = vadd.f32 %v2246, %v2406
      %2408 = vmatmul.bf16.gmra.mxu0 %v2227
      %v2409 = vpop.f32.mrf.mxu0
      %v2410 = vadd.f32 %v2246, %v2409
      %v2411 = vpop.f32.mrf.mxu0
      %v2412 = vadd.f32 %v2246, %v2411
      %2413 = vmatmul.bf16.gmra.mxu0 %v2228
      %v2414 = vpop.f32.mrf.mxu0
      %v2415 = vadd.f32 %v2246, %v2414
      %v2416 = vpop.f32.mrf.mxu0
      %v2417 = vadd.f32 %v2246, %v2416
      %2418 = vdwg.mxu0
      %2419 = vmatpush.bf16.msra.mxu0 %v2313
      %2420 = vmatpush.bf16.msra.mxu0 %v2311
      %2421 = vmatpush.bf16.msra.mxu0 %v2309
      %2422 = vmatpush.bf16.msra.mxu0 %v2307
      %2423 = vmatpush.bf16.msra.mxu0 %v2305
      %2424 = vmatpush.bf16.msra.mxu0 %v2303
      %2425 = vmatpush.bf16.msra.mxu0 %v2301
      %2426 = vmatpush.bf16.msra.mxu0 %v2299
      %2427 = vmatmul.bf16.gmra.mxu0 %v2213
      %v2428 = vpop.f32.mrf.mxu0
      %v2429 = vadd.f32 %v2247, %v2428
      %v2430 = vpop.f32.mrf.mxu0
      %v2431 = vadd.f32 %v2247, %v2430
      %2432 = vmatmul.bf16.gmra.mxu0 %v2214
      %v2433 = vpop.f32.mrf.mxu0
      %v2434 = vadd.f32 %v2247, %v2433
      %v2435 = vpop.f32.mrf.mxu0
      %v2436 = vadd.f32 %v2247, %v2435
      %2437 = vmatmul.bf16.gmra.mxu0 %v2215
      %v2438 = vpop.f32.mrf.mxu0
      %v2439 = vadd.f32 %v2247, %v2438
      %v2440 = vpop.f32.mrf.mxu0
      %v2441 = vadd.f32 %v2247, %v2440
      %2442 = vmatmul.bf16.gmra.mxu0 %v2216
      %v2443 = vpop.f32.mrf.mxu0
      %v2444 = vadd.f32 %v2247, %v2443
      %v2445 = vpop.f32.mrf.mxu0
      %v2446 = vadd.f32 %v2247, %v2445
      %2447 = vmatmul.bf16.gmra.mxu0 %v2217
      %v2448 = vpop.f32.mrf.mxu0
      %v2449 = vadd.f32 %v2247, %v2448
      %v2450 = vpop.f32.mrf.mxu0
      %v2451 = vadd.f32 %v2247, %v2450
      %2452 = vmatmul.bf16.gmra.mxu0 %v2218
      %v2453 = vpop.f32.mrf.mxu0
      %v2454 = vadd.f32 %v2247, %v2453
      %v2455 = vpop.f32.mrf.mxu0
      %v2456 = vadd.f32 %v2247, %v2455
      %2457 = vmatmul.bf16.gmra.mxu0 %v2219
      %v2458 = vpop.f32.mrf.mxu0
      %v2459 = vadd.f32 %v2247, %v2458
      %v2460 = vpop.f32.mrf.mxu0
      %v2461 = vadd.f32 %v2247, %v2460
      %2462 = vmatmul.bf16.gmra.mxu0 %v2220
      %v2463 = vpop.f32.mrf.mxu0
      %v2464 = vadd.f32 %v2247, %v2463
      %v2465 = vpop.f32.mrf.mxu0
      %v2466 = vadd.f32 %v2247, %v2465
      %2467 = vmatmul.bf16.gmra.mxu0 %v2221
      %v2468 = vpop.f32.mrf.mxu0
      %v2469 = vadd.f32 %v2247, %v2468
      %v2470 = vpop.f32.mrf.mxu0
      %v2471 = vadd.f32 %v2247, %v2470
      %2472 = vmatmul.bf16.gmra.mxu0 %v2222
      %v2473 = vpop.f32.mrf.mxu0
      %v2474 = vadd.f32 %v2247, %v2473
      %v2475 = vpop.f32.mrf.mxu0
      %v2476 = vadd.f32 %v2247, %v2475
      %2477 = vmatmul.bf16.gmra.mxu0 %v2223
      %v2478 = vpop.f32.mrf.mxu0
      %v2479 = vadd.f32 %v2247, %v2478
      %v2480 = vpop.f32.mrf.mxu0
      %v2481 = vadd.f32 %v2247, %v2480
      %2482 = vmatmul.bf16.gmra.mxu0 %v2224
      %v2483 = vpop.f32.mrf.mxu0
      %v2484 = vadd.f32 %v2247, %v2483
      %v2485 = vpop.f32.mrf.mxu0
      %v2486 = vadd.f32 %v2247, %v2485
      %2487 = vmatmul.bf16.gmra.mxu0 %v2225
      %v2488 = vpop.f32.mrf.mxu0
      %v2489 = vadd.f32 %v2247, %v2488
      %v2490 = vpop.f32.mrf.mxu0
      %v2491 = vadd.f32 %v2247, %v2490
      %2492 = vmatmul.bf16.gmra.mxu0 %v2226
      %v2493 = vpop.f32.mrf.mxu0
      %v2494 = vadd.f32 %v2247, %v2493
      %v2495 = vpop.f32.mrf.mxu0
      %v2496 = vadd.f32 %v2247, %v2495
      %2497 = vmatmul.bf16.gmra.mxu0 %v2227
      %v2498 = vpop.f32.mrf.mxu0
      %v2499 = vadd.f32 %v2247, %v2498
      %v2500 = vpop.f32.mrf.mxu0
      %v2501 = vadd.f32 %v2247, %v2500
      %2502 = vmatmul.bf16.gmra.mxu0 %v2228
      %v2503 = vpop.f32.mrf.mxu0
      %v2504 = vadd.f32 %v2247, %v2503
      %v2505 = vpop.f32.mrf.mxu0
      %v2506 = vadd.f32 %v2247, %v2505
      %2507 = vdwg.mxu0
      %v2508 = vmul.f32 %v2340, %v2340
      %v2509 = vmul.f32 %v2429, %v2429
      %v2510 = vmul.f32 %v2342, %v2342
      %v2511 = vmul.f32 %v2431, %v2431
      %v2512 = vmul.f32 %v2345, %v2345
      %v2513 = vmul.f32 %v2434, %v2434
      %v2514 = vmul.f32 %v2347, %v2347
      %v2515 = vmul.f32 %v2436, %v2436
      %v2516 = vmul.f32 %v2350, %v2350
      %v2517 = vmul.f32 %v2439, %v2439
      %v2518 = vmul.f32 %v2352, %v2352
      %v2519 = vmul.f32 %v2441, %v2441
      %v2520 = vmul.f32 %v2355, %v2355
      %v2521 = vmul.f32 %v2444, %v2444
      %v2522 = vmul.f32 %v2357, %v2357
      %v2523 = vmul.f32 %v2446, %v2446
      %v2524 = vmul.f32 %v2360, %v2360
      %v2525 = vmul.f32 %v2449, %v2449
      %v2526 = vmul.f32 %v2362, %v2362
      %v2527 = vmul.f32 %v2451, %v2451
      %v2528 = vmul.f32 %v2365, %v2365
      %v2529 = vmul.f32 %v2454, %v2454
      %v2530 = vmul.f32 %v2367, %v2367
      %v2531 = vmul.f32 %v2456, %v2456
      %v2532 = vmul.f32 %v2370, %v2370
      %v2533 = vmul.f32 %v2459, %v2459
      %v2534 = vmul.f32 %v2372, %v2372
      %v2535 = vmul.f32 %v2461, %v2461
      %v2536 = vmul.f32 %v2375, %v2375
      %v2537 = vmul.f32 %v2464, %v2464
      %v2538 = vmul.f32 %v2377, %v2377
      %v2539 = vmul.f32 %v2466, %v2466
      %v2540 = vmul.f32 %v2380, %v2380
      %v2541 = vmul.f32 %v2469, %v2469
      %v2542 = vmul.f32 %v2382, %v2382
      %v2543 = vmul.f32 %v2471, %v2471
      %v2544 = vmul.f32 %v2385, %v2385
      %v2545 = vmul.f32 %v2474, %v2474
      %v2546 = vmul.f32 %v2387, %v2387
      %v2547 = vmul.f32 %v2476, %v2476
      %v2548 = vmul.f32 %v2390, %v2390
      %v2549 = vmul.f32 %v2479, %v2479
      %v2550 = vmul.f32 %v2392, %v2392
      %v2551 = vmul.f32 %v2481, %v2481
      %v2552 = vmul.f32 %v2395, %v2395
      %v2553 = vmul.f32 %v2484, %v2484
      %v2554 = vmul.f32 %v2397, %v2397
      %v2555 = vmul.f32 %v2486, %v2486
      %v2556 = vmul.f32 %v2400, %v2400
      %v2557 = vmul.f32 %v2489, %v2489
      %v2558 = vmul.f32 %v2402, %v2402
      %v2559 = vmul.f32 %v2491, %v2491
      %v2560 = vmul.f32 %v2405, %v2405
      %v2561 = vmul.f32 %v2494, %v2494
      %v2562 = vmul.f32 %v2407, %v2407
      %v2563 = vmul.f32 %v2496, %v2496
      %v2564 = vmul.f32 %v2410, %v2410
      %v2565 = vmul.f32 %v2499, %v2499
      %v2566 = vmul.f32 %v2412, %v2412
      %v2567 = vmul.f32 %v2501, %v2501
      %v2568 = vmul.f32 %v2415, %v2415
      %v2569 = vmul.f32 %v2504, %v2504
      %v2570 = vmul.f32 %v2417, %v2417
      %v2571 = vmul.f32 %v2506, %v2506
      %v2572 = vmul.f32 %v2340, %v2508
      %v2573 = vmul.f32 %v2429, %v2509
      %v2574 = vmul.f32 %v2342, %v2510
      %v2575 = vmul.f32 %v2431, %v2511
      %v2576 = vmul.f32 %v2345, %v2512
      %v2577 = vmul.f32 %v2434, %v2513
      %v2578 = vmul.f32 %v2347, %v2514
      %v2579 = vmul.f32 %v2436, %v2515
      %v2580 = vmul.f32 %v2350, %v2516
      %v2581 = vmul.f32 %v2439, %v2517
      %v2582 = vmul.f32 %v2352, %v2518
      %v2583 = vmul.f32 %v2441, %v2519
      %v2584 = vmul.f32 %v2355, %v2520
      %v2585 = vmul.f32 %v2444, %v2521
      %v2586 = vmul.f32 %v2357, %v2522
      %v2587 = vmul.f32 %v2446, %v2523
      %v2588 = vmul.f32 %v2360, %v2524
      %v2589 = vmul.f32 %v2449, %v2525
      %v2590 = vmul.f32 %v2362, %v2526
      %v2591 = vmul.f32 %v2451, %v2527
      %v2592 = vmul.f32 %v2365, %v2528
      %v2593 = vmul.f32 %v2454, %v2529
      %v2594 = vmul.f32 %v2367, %v2530
      %v2595 = vmul.f32 %v2456, %v2531
      %v2596 = vmul.f32 %v2370, %v2532
      %v2597 = vmul.f32 %v2459, %v2533
      %v2598 = vmul.f32 %v2372, %v2534
      %v2599 = vmul.f32 %v2461, %v2535
      %v2600 = vmul.f32 %v2375, %v2536
      %v2601 = vmul.f32 %v2464, %v2537
      %v2602 = vmul.f32 %v2377, %v2538
      %v2603 = vmul.f32 %v2466, %v2539
      %v2604 = vmul.f32 %v2380, %v2540
      %v2605 = vmul.f32 %v2469, %v2541
      %v2606 = vmul.f32 %v2382, %v2542
      %v2607 = vmul.f32 %v2471, %v2543
      %v2608 = vmul.f32 %v2385, %v2544
      %v2609 = vmul.f32 %v2474, %v2545
      %v2610 = vmul.f32 %v2387, %v2546
      %v2611 = vmul.f32 %v2476, %v2547
      %v2612 = vmul.f32 %v2390, %v2548
      %v2613 = vmul.f32 %v2479, %v2549
      %v2614 = vmul.f32 %v2392, %v2550
      %v2615 = vmul.f32 %v2481, %v2551
      %v2616 = vmul.f32 %v2395, %v2552
      %v2617 = vmul.f32 %v2484, %v2553
      %v2618 = vmul.f32 %v2397, %v2554
      %v2619 = vmul.f32 %v2486, %v2555
      %v2620 = vmul.f32 %v2400, %v2556
      %v2621 = vmul.f32 %v2489, %v2557
      %v2622 = vmul.f32 %v2402, %v2558
      %v2623 = vmul.f32 %v2491, %v2559
      %v2624 = vmul.f32 %v2405, %v2560
      %v2625 = vmul.f32 %v2494, %v2561
      %v2626 = vmul.f32 %v2407, %v2562
      %v2627 = vmul.f32 %v2496, %v2563
      %v2628 = vmul.f32 %v2410, %v2564
      %v2629 = vmul.f32 %v2499, %v2565
      %v2630 = vmul.f32 %v2412, %v2566
      %v2631 = vmul.f32 %v2501, %v2567
      %v2632 = vmul.f32 %v2415, %v2568
      %v2633 = vmul.f32 %v2504, %v2569
      %v2634 = vmul.f32 %v2417, %v2570
      %v2635 = vmul.f32 %v2506, %v2571
      %v2636 = vmul.f32 %v2572, 0.044715
      %v2637 = vmul.f32 %v2573, 0.044715
      %v2638 = vmul.f32 %v2574, 0.044715
      %v2639 = vmul.f32 %v2575, 0.044715
      %v2640 = vmul.f32 %v2576, 0.044715
      %v2641 = vmul.f32 %v2577, 0.044715
      %v2642 = vmul.f32 %v2578, 0.044715
      %v2643 = vmul.f32 %v2579, 0.044715
      %v2644 = vmul.f32 %v2580, 0.044715
      %v2645 = vmul.f32 %v2581, 0.044715
      %v2646 = vmul.f32 %v2582, 0.044715
      %v2647 = vmul.f32 %v2583, 0.044715
      %v2648 = vmul.f32 %v2584, 0.044715
      %v2649 = vmul.f32 %v2585, 0.044715
      %v2650 = vmul.f32 %v2586, 0.044715
      %v2651 = vmul.f32 %v2587, 0.044715
      %v2652 = vmul.f32 %v2588, 0.044715
      %v2653 = vmul.f32 %v2589, 0.044715
      %v2654 = vmul.f32 %v2590, 0.044715
      %v2655 = vmul.f32 %v2591, 0.044715
      %v2656 = vmul.f32 %v2592, 0.044715
      %v2657 = vmul.f32 %v2593, 0.044715
      %v2658 = vmul.f32 %v2594, 0.044715
      %v2659 = vmul.f32 %v2595, 0.044715
      %v2660 = vmul.f32 %v2596, 0.044715
      %v2661 = vmul.f32 %v2597, 0.044715
      %v2662 = vmul.f32 %v2598, 0.044715
      %v2663 = vmul.f32 %v2599, 0.044715
      %v2664 = vmul.f32 %v2600, 0.044715
      %v2665 = vmul.f32 %v2601, 0.044715
      %v2666 = vmul.f32 %v2602, 0.044715
      %v2667 = vmul.f32 %v2603, 0.044715
      %v2668 = vmul.f32 %v2604, 0.044715
      %v2669 = vmul.f32 %v2605, 0.044715
      %v2670 = vmul.f32 %v2606, 0.044715
      %v2671 = vmul.f32 %v2607, 0.044715
      %v2672 = vmul.f32 %v2608, 0.044715
      %v2673 = vmul.f32 %v2609, 0.044715
      %v2674 = vmul.f32 %v2610, 0.044715
      %v2675 = vmul.f32 %v2611, 0.044715
      %v2676 = vmul.f32 %v2612, 0.044715
      %v2677 = vmul.f32 %v2613, 0.044715
      %v2678 = vmul.f32 %v2614, 0.044715
      %v2679 = vmul.f32 %v2615, 0.044715
      %v2680 = vmul.f32 %v2616, 0.044715
      %v2681 = vmul.f32 %v2617, 0.044715
      %v2682 = vmul.f32 %v2618, 0.044715
      %v2683 = vmul.f32 %v2619, 0.044715
      %v2684 = vmul.f32 %v2620, 0.044715
      %v2685 = vmul.f32 %v2621, 0.044715
      %v2686 = vmul.f32 %v2622, 0.044715
      %v2687 = vmul.f32 %v2623, 0.044715
      %v2688 = vmul.f32 %v2624, 0.044715
      %v2689 = vmul.f32 %v2625, 0.044715
      %v2690 = vmul.f32 %v2626, 0.044715
      %v2691 = vmul.f32 %v2627, 0.044715
      %v2692 = vmul.f32 %v2628, 0.044715
      %v2693 = vmul.f32 %v2629, 0.044715
      %v2694 = vmul.f32 %v2630, 0.044715
      %v2695 = vmul.f32 %v2631, 0.044715
      %v2696 = vmul.f32 %v2632, 0.044715
      %v2697 = vmul.f32 %v2633, 0.044715
      %v2698 = vmul.f32 %v2634, 0.044715
      %v2699 = vmul.f32 %v2635, 0.044715
      %v2700 = vadd.f32 %v2340, %v2636
      %v2701 = vadd.f32 %v2429, %v2637
      %v2702 = vadd.f32 %v2342, %v2638
      %v2703 = vadd.f32 %v2431, %v2639
      %v2704 = vadd.f32 %v2345, %v2640
      %v2705 = vadd.f32 %v2434, %v2641
      %v2706 = vadd.f32 %v2347, %v2642
      %v2707 = vadd.f32 %v2436, %v2643
      %v2708 = vadd.f32 %v2350, %v2644
      %v2709 = vadd.f32 %v2439, %v2645
      %v2710 = vadd.f32 %v2352, %v2646
      %v2711 = vadd.f32 %v2441, %v2647
      %v2712 = vadd.f32 %v2355, %v2648
      %v2713 = vadd.f32 %v2444, %v2649
      %v2714 = vadd.f32 %v2357, %v2650
      %v2715 = vadd.f32 %v2446, %v2651
      %v2716 = vadd.f32 %v2360, %v2652
      %v2717 = vadd.f32 %v2449, %v2653
      %v2718 = vadd.f32 %v2362, %v2654
      %v2719 = vadd.f32 %v2451, %v2655
      %v2720 = vadd.f32 %v2365, %v2656
      %v2721 = vadd.f32 %v2454, %v2657
      %v2722 = vadd.f32 %v2367, %v2658
      %v2723 = vadd.f32 %v2456, %v2659
      %v2724 = vadd.f32 %v2370, %v2660
      %v2725 = vadd.f32 %v2459, %v2661
      %v2726 = vadd.f32 %v2372, %v2662
      %v2727 = vadd.f32 %v2461, %v2663
      %v2728 = vadd.f32 %v2375, %v2664
      %v2729 = vadd.f32 %v2464, %v2665
      %v2730 = vadd.f32 %v2377, %v2666
      %v2731 = vadd.f32 %v2466, %v2667
      %v2732 = vadd.f32 %v2380, %v2668
      %v2733 = vadd.f32 %v2469, %v2669
      %v2734 = vadd.f32 %v2382, %v2670
      %v2735 = vadd.f32 %v2471, %v2671
      %v2736 = vadd.f32 %v2385, %v2672
      %v2737 = vadd.f32 %v2474, %v2673
      %v2738 = vadd.f32 %v2387, %v2674
      %v2739 = vadd.f32 %v2476, %v2675
      %v2740 = vadd.f32 %v2390, %v2676
      %v2741 = vadd.f32 %v2479, %v2677
      %v2742 = vadd.f32 %v2392, %v2678
      %v2743 = vadd.f32 %v2481, %v2679
      %v2744 = vadd.f32 %v2395, %v2680
      %v2745 = vadd.f32 %v2484, %v2681
      %v2746 = vadd.f32 %v2397, %v2682
      %v2747 = vadd.f32 %v2486, %v2683
      %v2748 = vadd.f32 %v2400, %v2684
      %v2749 = vadd.f32 %v2489, %v2685
      %v2750 = vadd.f32 %v2402, %v2686
      %v2751 = vadd.f32 %v2491, %v2687
      %v2752 = vadd.f32 %v2405, %v2688
      %v2753 = vadd.f32 %v2494, %v2689
      %v2754 = vadd.f32 %v2407, %v2690
      %v2755 = vadd.f32 %v2496, %v2691
      %v2756 = vadd.f32 %v2410, %v2692
      %v2757 = vadd.f32 %v2499, %v2693
      %v2758 = vadd.f32 %v2412, %v2694
      %v2759 = vadd.f32 %v2501, %v2695
      %v2760 = vadd.f32 %v2415, %v2696
      %v2761 = vadd.f32 %v2504, %v2697
      %v2762 = vadd.f32 %v2417, %v2698
      %v2763 = vadd.f32 %v2506, %v2699
      %v2764 = vmul.f32 %v2700, 0.7978846
      %v2765 = vmul.f32 %v2701, 0.7978846
      %v2766 = vmul.f32 %v2702, 0.7978846
      %v2767 = vmul.f32 %v2703, 0.7978846
      %v2768 = vmul.f32 %v2704, 0.7978846
      %v2769 = vmul.f32 %v2705, 0.7978846
      %v2770 = vmul.f32 %v2706, 0.7978846
      %v2771 = vmul.f32 %v2707, 0.7978846
      %v2772 = vmul.f32 %v2708, 0.7978846
      %v2773 = vmul.f32 %v2709, 0.7978846
      %v2774 = vmul.f32 %v2710, 0.7978846
      %v2775 = vmul.f32 %v2711, 0.7978846
      %v2776 = vmul.f32 %v2712, 0.7978846
      %v2777 = vmul.f32 %v2713, 0.7978846
      %v2778 = vmul.f32 %v2714, 0.7978846
      %v2779 = vmul.f32 %v2715, 0.7978846
      %v2780 = vmul.f32 %v2716, 0.7978846
      %v2781 = vmul.f32 %v2717, 0.7978846
      %v2782 = vmul.f32 %v2718, 0.7978846
      %v2783 = vmul.f32 %v2719, 0.7978846
      %v2784 = vmul.f32 %v2720, 0.7978846
      %v2785 = vmul.f32 %v2721, 0.7978846
      %v2786 = vmul.f32 %v2722, 0.7978846
      %v2787 = vmul.f32 %v2723, 0.7978846
      %v2788 = vmul.f32 %v2724, 0.7978846
      %v2789 = vmul.f32 %v2725, 0.7978846
      %v2790 = vmul.f32 %v2726, 0.7978846
      %v2791 = vmul.f32 %v2727, 0.7978846
      %v2792 = vmul.f32 %v2728, 0.7978846
      %v2793 = vmul.f32 %v2729, 0.7978846
      %v2794 = vmul.f32 %v2730, 0.7978846
      %v2795 = vmul.f32 %v2731, 0.7978846
      %v2796 = vmul.f32 %v2732, 0.7978846
      %v2797 = vmul.f32 %v2733, 0.7978846
      %v2798 = vmul.f32 %v2734, 0.7978846
      %v2799 = vmul.f32 %v2735, 0.7978846
      %v2800 = vmul.f32 %v2736, 0.7978846
      %v2801 = vmul.f32 %v2737, 0.7978846
      %v2802 = vmul.f32 %v2738, 0.7978846
      %v2803 = vmul.f32 %v2739, 0.7978846
      %v2804 = vmul.f32 %v2740, 0.7978846
      %v2805 = vmul.f32 %v2741, 0.7978846
      %v2806 = vmul.f32 %v2742, 0.7978846
      %v2807 = vmul.f32 %v2743, 0.7978846
      %v2808 = vmul.f32 %v2744, 0.7978846
      %v2809 = vmul.f32 %v2745, 0.7978846
      %v2810 = vmul.f32 %v2746, 0.7978846
      %v2811 = vmul.f32 %v2747, 0.7978846
      %v2812 = vmul.f32 %v2748, 0.7978846
      %v2813 = vmul.f32 %v2749, 0.7978846
      %v2814 = vmul.f32 %v2750, 0.7978846
      %v2815 = vmul.f32 %v2751, 0.7978846
      %v2816 = vmul.f32 %v2752, 0.7978846
      %v2817 = vmul.f32 %v2753, 0.7978846
      %v2818 = vmul.f32 %v2754, 0.7978846
      %v2819 = vmul.f32 %v2755, 0.7978846
      %v2820 = vmul.f32 %v2756, 0.7978846
      %v2821 = vmul.f32 %v2757, 0.7978846
      %v2822 = vmul.f32 %v2758, 0.7978846
      %v2823 = vmul.f32 %v2759, 0.7978846
      %v2824 = vmul.f32 %v2760, 0.7978846
      %v2825 = vmul.f32 %v2761, 0.7978846
      %v2826 = vmul.f32 %v2762, 0.7978846
      %v2827 = vmul.f32 %v2763, 0.7978846
      %v2828 = vtanh.pop %v2764
      %v2829 = vtanh.pop %v2765
      %v2830 = vtanh.pop %v2766
      %v2831 = vtanh.pop %v2767
      %v2832 = vtanh.pop %v2768
      %v2833 = vtanh.pop %v2769
      %v2834 = vtanh.pop %v2770
      %v2835 = vtanh.pop %v2771
      %v2836 = vtanh.pop %v2772
      %v2837 = vtanh.pop %v2773
      %v2838 = vtanh.pop %v2774
      %v2839 = vtanh.pop %v2775
      %v2840 = vtanh.pop %v2776
      %v2841 = vtanh.pop %v2777
      %v2842 = vtanh.pop %v2778
      %v2843 = vtanh.pop %v2779
      %v2844 = vtanh.pop %v2780
      %v2845 = vtanh.pop %v2781
      %v2846 = vtanh.pop %v2782
      %v2847 = vtanh.pop %v2783
      %v2848 = vtanh.pop %v2784
      %v2849 = vtanh.pop %v2785
      %v2850 = vtanh.pop %v2786
      %v2851 = vtanh.pop %v2787
      %v2852 = vtanh.pop %v2788
      %v2853 = vtanh.pop %v2789
      %v2854 = vtanh.pop %v2790
      %v2855 = vtanh.pop %v2791
      %v2856 = vtanh.pop %v2792
      %v2857 = vtanh.pop %v2793
      %v2858 = vtanh.pop %v2794
      %v2859 = vtanh.pop %v2795
      %v2860 = vtanh.pop %v2796
      %v2861 = vtanh.pop %v2797
      %v2862 = vtanh.pop %v2798
      %v2863 = vtanh.pop %v2799
      %v2864 = vtanh.pop %v2800
      %v2865 = vtanh.pop %v2801
      %v2866 = vtanh.pop %v2802
      %v2867 = vtanh.pop %v2803
      %v2868 = vtanh.pop %v2804
      %v2869 = vtanh.pop %v2805
      %v2870 = vtanh.pop %v2806
      %v2871 = vtanh.pop %v2807
      %v2872 = vtanh.pop %v2808
      %v2873 = vtanh.pop %v2809
      %v2874 = vtanh.pop %v2810
      %v2875 = vtanh.pop %v2811
      %v2876 = vtanh.pop %v2812
      %v2877 = vtanh.pop %v2813
      %v2878 = vtanh.pop %v2814
      %v2879 = vtanh.pop %v2815
      %v2880 = vtanh.pop %v2816
      %v2881 = vtanh.pop %v2817
      %v2882 = vtanh.pop %v2818
      %v2883 = vtanh.pop %v2819
      %v2884 = vtanh.pop %v2820
      %v2885 = vtanh.pop %v2821
      %v2886 = vtanh.pop %v2822
      %v2887 = vtanh.pop %v2823
      %v2888 = vtanh.pop %v2824
      %v2889 = vtanh.pop %v2825
      %v2890 = vtanh.pop %v2826
      %v2891 = vtanh.pop %v2827
      %v2892 = vadd.f32 %v2828, 1.0
      %v2893 = vadd.f32 %v2829, 1.0
      %v2894 = vadd.f32 %v2830, 1.0
      %v2895 = vadd.f32 %v2831, 1.0
      %v2896 = vadd.f32 %v2832, 1.0
      %v2897 = vadd.f32 %v2833, 1.0
      %v2898 = vadd.f32 %v2834, 1.0
      %v2899 = vadd.f32 %v2835, 1.0
      %v2900 = vadd.f32 %v2836, 1.0
      %v2901 = vadd.f32 %v2837, 1.0
      %v2902 = vadd.f32 %v2838, 1.0
      %v2903 = vadd.f32 %v2839, 1.0
      %v2904 = vadd.f32 %v2840, 1.0
      %v2905 = vadd.f32 %v2841, 1.0
      %v2906 = vadd.f32 %v2842, 1.0
      %v2907 = vadd.f32 %v2843, 1.0
      %v2908 = vadd.f32 %v2844, 1.0
      %v2909 = vadd.f32 %v2845, 1.0
      %v2910 = vadd.f32 %v2846, 1.0
      %v2911 = vadd.f32 %v2847, 1.0
      %v2912 = vadd.f32 %v2848, 1.0
      %v2913 = vadd.f32 %v2849, 1.0
      %v2914 = vadd.f32 %v2850, 1.0
      %v2915 = vadd.f32 %v2851, 1.0
      %v2916 = vadd.f32 %v2852, 1.0
      %v2917 = vadd.f32 %v2853, 1.0
      %v2918 = vadd.f32 %v2854, 1.0
      %v2919 = vadd.f32 %v2855, 1.0
      %v2920 = vadd.f32 %v2856, 1.0
      %v2921 = vadd.f32 %v2857, 1.0
      %v2922 = vadd.f32 %v2858, 1.0
      %v2923 = vadd.f32 %v2859, 1.0
      %v2924 = vadd.f32 %v2860, 1.0
      %v2925 = vadd.f32 %v2861, 1.0
      %v2926 = vadd.f32 %v2862, 1.0
      %v2927 = vadd.f32 %v2863, 1.0
      %v2928 = vadd.f32 %v2864, 1.0
      %v2929 = vadd.f32 %v2865, 1.0
      %v2930 = vadd.f32 %v2866, 1.0
      %v2931 = vadd.f32 %v2867, 1.0
      %v2932 = vadd.f32 %v2868, 1.0
      %v2933 = vadd.f32 %v2869, 1.0
      %v2934 = vadd.f32 %v2870, 1.0
      %v2935 = vadd.f32 %v2871, 1.0
      %v2936 = vadd.f32 %v2872, 1.0
      %v2937 = vadd.f32 %v2873, 1.0
      %v2938 = vadd.f32 %v2874, 1.0
      %v2939 = vadd.f32 %v2875, 1.0
      %v2940 = vadd.f32 %v2876, 1.0
      %v2941 = vadd.f32 %v2877, 1.0
      %v2942 = vadd.f32 %v2878, 1.0
      %v2943 = vadd.f32 %v2879, 1.0
      %v2944 = vadd.f32 %v2880, 1.0
      %v2945 = vadd.f32 %v2881, 1.0
      %v2946 = vadd.f32 %v2882, 1.0
      %v2947 = vadd.f32 %v2883, 1.0
      %v2948 = vadd.f32 %v2884, 1.0
      %v2949 = vadd.f32 %v2885, 1.0
      %v2950 = vadd.f32 %v2886, 1.0
      %v2951 = vadd.f32 %v2887, 1.0
      %v2952 = vadd.f32 %v2888, 1.0
      %v2953 = vadd.f32 %v2889, 1.0
      %v2954 = vadd.f32 %v2890, 1.0
      %v2955 = vadd.f32 %v2891, 1.0
      %v2956 = vmul.f32 %v2892, 0.5
      %v2957 = vmul.f32 %v2893, 0.5
      %v2958 = vmul.f32 %v2894, 0.5
      %v2959 = vmul.f32 %v2895, 0.5
      %v2960 = vmul.f32 %v2896, 0.5
      %v2961 = vmul.f32 %v2897, 0.5
      %v2962 = vmul.f32 %v2898, 0.5
      %v2963 = vmul.f32 %v2899, 0.5
      %v2964 = vmul.f32 %v2900, 0.5
      %v2965 = vmul.f32 %v2901, 0.5
      %v2966 = vmul.f32 %v2902, 0.5
      %v2967 = vmul.f32 %v2903, 0.5
      %v2968 = vmul.f32 %v2904, 0.5
      %v2969 = vmul.f32 %v2905, 0.5
      %v2970 = vmul.f32 %v2906, 0.5
      %v2971 = vmul.f32 %v2907, 0.5
      %v2972 = vmul.f32 %v2908, 0.5
      %v2973 = vmul.f32 %v2909, 0.5
      %v2974 = vmul.f32 %v2910, 0.5
      %v2975 = vmul.f32 %v2911, 0.5
      %v2976 = vmul.f32 %v2912, 0.5
      %v2977 = vmul.f32 %v2913, 0.5
      %v2978 = vmul.f32 %v2914, 0.5
      %v2979 = vmul.f32 %v2915, 0.5
      %v2980 = vmul.f32 %v2916, 0.5
      %v2981 = vmul.f32 %v2917, 0.5
      %v2982 = vmul.f32 %v2918, 0.5
      %v2983 = vmul.f32 %v2919, 0.5
      %v2984 = vmul.f32 %v2920, 0.5
      %v2985 = vmul.f32 %v2921, 0.5
      %v2986 = vmul.f32 %v2922, 0.5
      %v2987 = vmul.f32 %v2923, 0.5
      %v2988 = vmul.f32 %v2924, 0.5
      %v2989 = vmul.f32 %v2925, 0.5
      %v2990 = vmul.f32 %v2926, 0.5
      %v2991 = vmul.f32 %v2927, 0.5
      %v2992 = vmul.f32 %v2928, 0.5
      %v2993 = vmul.f32 %v2929, 0.5
      %v2994 = vmul.f32 %v2930, 0.5
      %v2995 = vmul.f32 %v2931, 0.5
      %v2996 = vmul.f32 %v2932, 0.5
      %v2997 = vmul.f32 %v2933, 0.5
      %v2998 = vmul.f32 %v2934, 0.5
      %v2999 = vmul.f32 %v2935, 0.5
      %v3000 = vmul.f32 %v2936, 0.5
      %v3001 = vmul.f32 %v2937, 0.5
      %v3002 = vmul.f32 %v2938, 0.5
      %v3003 = vmul.f32 %v2939, 0.5
      %v3004 = vmul.f32 %v2940, 0.5
      %v3005 = vmul.f32 %v2941, 0.5
      %v3006 = vmul.f32 %v2942, 0.5
      %v3007 = vmul.f32 %v2943, 0.5
      %v3008 = vmul.f32 %v2944, 0.5
      %v3009 = vmul.f32 %v2945, 0.5
      %v3010 = vmul.f32 %v2946, 0.5
      %v3011 = vmul.f32 %v2947, 0.5
      %v3012 = vmul.f32 %v2948, 0.5
      %v3013 = vmul.f32 %v2949, 0.5
      %v3014 = vmul.f32 %v2950, 0.5
      %v3015 = vmul.f32 %v2951, 0.5
      %v3016 = vmul.f32 %v2952, 0.5
      %v3017 = vmul.f32 %v2953, 0.5
      %v3018 = vmul.f32 %v2954, 0.5
      %v3019 = vmul.f32 %v2955, 0.5
      %v3020 = vmul.f32 %v2340, %v2956
      %v3021 = vmul.f32 %v2429, %v2957
      %v3022 = vmul.f32 %v2342, %v2958
      %v3023 = vmul.f32 %v2431, %v2959
      %v3024 = vmul.f32 %v2345, %v2960
      %v3025 = vmul.f32 %v2434, %v2961
      %v3026 = vmul.f32 %v2347, %v2962
      %v3027 = vmul.f32 %v2436, %v2963
      %v3028 = vmul.f32 %v2350, %v2964
      %v3029 = vmul.f32 %v2439, %v2965
      %v3030 = vmul.f32 %v2352, %v2966
      %v3031 = vmul.f32 %v2441, %v2967
      %v3032 = vmul.f32 %v2355, %v2968
      %v3033 = vmul.f32 %v2444, %v2969
      %v3034 = vmul.f32 %v2357, %v2970
      %v3035 = vmul.f32 %v2446, %v2971
      %v3036 = vmul.f32 %v2360, %v2972
      %v3037 = vmul.f32 %v2449, %v2973
      %v3038 = vmul.f32 %v2362, %v2974
      %v3039 = vmul.f32 %v2451, %v2975
      %v3040 = vmul.f32 %v2365, %v2976
      %v3041 = vmul.f32 %v2454, %v2977
      %v3042 = vmul.f32 %v2367, %v2978
      %v3043 = vmul.f32 %v2456, %v2979
      %v3044 = vmul.f32 %v2370, %v2980
      %v3045 = vmul.f32 %v2459, %v2981
      %v3046 = vmul.f32 %v2372, %v2982
      %v3047 = vmul.f32 %v2461, %v2983
      %v3048 = vmul.f32 %v2375, %v2984
      %v3049 = vmul.f32 %v2464, %v2985
      %v3050 = vmul.f32 %v2377, %v2986
      %v3051 = vmul.f32 %v2466, %v2987
      %v3052 = vmul.f32 %v2380, %v2988
      %v3053 = vmul.f32 %v2469, %v2989
      %v3054 = vmul.f32 %v2382, %v2990
      %v3055 = vmul.f32 %v2471, %v2991
      %v3056 = vmul.f32 %v2385, %v2992
      %v3057 = vmul.f32 %v2474, %v2993
      %v3058 = vmul.f32 %v2387, %v2994
      %v3059 = vmul.f32 %v2476, %v2995
      %v3060 = vmul.f32 %v2390, %v2996
      %v3061 = vmul.f32 %v2479, %v2997
      %v3062 = vmul.f32 %v2392, %v2998
      %v3063 = vmul.f32 %v2481, %v2999
      %v3064 = vmul.f32 %v2395, %v3000
      %v3065 = vmul.f32 %v2484, %v3001
      %v3066 = vmul.f32 %v2397, %v3002
      %v3067 = vmul.f32 %v2486, %v3003
      %v3068 = vmul.f32 %v2400, %v3004
      %v3069 = vmul.f32 %v2489, %v3005
      %v3070 = vmul.f32 %v2402, %v3006
      %v3071 = vmul.f32 %v2491, %v3007
      %v3072 = vmul.f32 %v2405, %v3008
      %v3073 = vmul.f32 %v2494, %v3009
      %v3074 = vmul.f32 %v2407, %v3010
      %v3075 = vmul.f32 %v2496, %v3011
      %v3076 = vmul.f32 %v2410, %v3012
      %v3077 = vmul.f32 %v2499, %v3013
      %v3078 = vmul.f32 %v2412, %v3014
      %v3079 = vmul.f32 %v2501, %v3015
      %v3080 = vmul.f32 %v2415, %v3016
      %v3081 = vmul.f32 %v2504, %v3017
      %v3082 = vmul.f32 %v2417, %v3018
      %v3083 = vmul.f32 %v2506, %v3019
      %v3084 = vpack.c.bf16 %v3022, %v3020
      %v3085 = vpack.c.bf16 %v3023, %v3021
      %v3086 = vpack.c.bf16 %v3026, %v3024
      %v3087 = vpack.c.bf16 %v3027, %v3025
      %v3088 = vpack.c.bf16 %v3030, %v3028
      %v3089 = vpack.c.bf16 %v3031, %v3029
      %v3090 = vpack.c.bf16 %v3034, %v3032
      %v3091 = vpack.c.bf16 %v3035, %v3033
      %v3092 = vpack.c.bf16 %v3038, %v3036
      %v3093 = vpack.c.bf16 %v3039, %v3037
      %v3094 = vpack.c.bf16 %v3042, %v3040
      %v3095 = vpack.c.bf16 %v3043, %v3041
      %v3096 = vpack.c.bf16 %v3046, %v3044
      %v3097 = vpack.c.bf16 %v3047, %v3045
      %v3098 = vpack.c.bf16 %v3050, %v3048
      %v3099 = vpack.c.bf16 %v3051, %v3049
      %v3100 = vpack.c.bf16 %v3054, %v3052
      %v3101 = vpack.c.bf16 %v3055, %v3053
      %v3102 = vpack.c.bf16 %v3058, %v3056
      %v3103 = vpack.c.bf16 %v3059, %v3057
      %v3104 = vpack.c.bf16 %v3062, %v3060
      %v3105 = vpack.c.bf16 %v3063, %v3061
      %v3106 = vpack.c.bf16 %v3066, %v3064
      %v3107 = vpack.c.bf16 %v3067, %v3065
      %v3108 = vpack.c.bf16 %v3070, %v3068
      %v3109 = vpack.c.bf16 %v3071, %v3069
      %v3110 = vpack.c.bf16 %v3074, %v3072
      %v3111 = vpack.c.bf16 %v3075, %v3073
      %v3112 = vpack.c.bf16 %v3078, %v3076
      %v3113 = vpack.c.bf16 %v3079, %v3077
      %v3114 = vpack.c.bf16 %v3082, %v3080
      %v3115 = vpack.c.bf16 %v3083, %v3081
      %v3116 = vld [vmem:[%s7] sm:$0xf]
      %v3117 = vld [vmem:[%s7 + $0x4] sm:$0xf]
      %v3118 = vld [vmem:[%s7 + $0x8] sm:$0xf]
      %v3119 = vld [vmem:[%s7 + $0xc] sm:$0xf]
      %v3120 = vld [vmem:[%s7 + $0x10] sm:$0xf]
      %v3121 = vld [vmem:[%s7 + $0x14] sm:$0xf]
      %v3122 = vld [vmem:[%s7 + $0x18] sm:$0xf]
      %v3123 = vld [vmem:[%s7 + $0x1c] sm:$0xf]
      %v3124 = vld [vmem:[%s7 + $0x20] sm:$0xf]
      %v3125 = vld [vmem:[%s7 + $0x24] sm:$0xf]
      %v3126 = vld [vmem:[%s7 + $0x28] sm:$0xf]
      %v3127 = vld [vmem:[%s7 + $0x2c] sm:$0xf]
      %v3128 = vld [vmem:[%s7 + $0x30] sm:$0xf]
      %v3129 = vld [vmem:[%s7 + $0x34] sm:$0xf]
      %v3130 = vld [vmem:[%s7 + $0x38] sm:$0xf]
      %v3131 = vld [vmem:[%s7 + $0x3c] sm:$0xf]
      %v3132 = vld [vmem:[%s7 + $0x40] sm:$0xf]
      %v3133 = vld [vmem:[%s7 + $0x44] sm:$0xf]
      %v3134 = vld [vmem:[%s7 + $0x48] sm:$0xf]
      %v3135 = vld [vmem:[%s7 + $0x4c] sm:$0xf]
      %v3136 = vld [vmem:[%s7 + $0x50] sm:$0xf]
      %v3137 = vld [vmem:[%s7 + $0x54] sm:$0xf]
      %v3138 = vld [vmem:[%s7 + $0x58] sm:$0xf]
      %v3139 = vld [vmem:[%s7 + $0x5c] sm:$0xf]
      %v3140 = vld [vmem:[%s7 + $0x60] sm:$0xf]
      %v3141 = vld [vmem:[%s7 + $0x64] sm:$0xf]
      %v3142 = vld [vmem:[%s7 + $0x68] sm:$0xf]
      %v3143 = vld [vmem:[%s7 + $0x6c] sm:$0xf]
      %v3144 = vld [vmem:[%s7 + $0x70] sm:$0xf]
      %v3145 = vld [vmem:[%s7 + $0x74] sm:$0xf]
      %v3146 = vld [vmem:[%s7 + $0x78] sm:$0xf]
      %v3147 = vld [vmem:[%s7 + $0x7c] sm:$0xf]
      %v3149 = vperm.slane %v493, 0
      %v3183 = vunpack.c.l.b16 %v3116
      %v3184 = vunpack.c.l.b16 %v3117
      %v3185 = vunpack.c.l.b16 %v3118
      %v3186 = vunpack.c.l.b16 %v3119
      %v3187 = vunpack.c.l.b16 %v3120
      %v3188 = vunpack.c.l.b16 %v3121
      %v3189 = vunpack.c.l.b16 %v3122
      %v3190 = vunpack.c.l.b16 %v3123
      %v3191 = vunpack.c.l.b16 %v3124
      %v3192 = vunpack.c.l.b16 %v3125
      %v3193 = vunpack.c.l.b16 %v3126
      %v3194 = vunpack.c.l.b16 %v3127
      %v3195 = vunpack.c.l.b16 %v3128
      %v3196 = vunpack.c.l.b16 %v3129
      %v3197 = vunpack.c.l.b16 %v3130
      %v3198 = vunpack.c.l.b16 %v3131
      %v3199 = vunpack.c.l.b16 %v3132
      %v3200 = vunpack.c.l.b16 %v3133
      %v3201 = vunpack.c.l.b16 %v3134
      %v3202 = vunpack.c.l.b16 %v3135
      %v3203 = vunpack.c.l.b16 %v3136
      %v3204 = vunpack.c.l.b16 %v3137
      %v3205 = vunpack.c.l.b16 %v3138
      %v3206 = vunpack.c.l.b16 %v3139
      %v3207 = vunpack.c.l.b16 %v3140
      %v3208 = vunpack.c.l.b16 %v3141
      %v3209 = vunpack.c.l.b16 %v3142
      %v3210 = vunpack.c.l.b16 %v3143
      %v3211 = vunpack.c.l.b16 %v3144
      %v3212 = vunpack.c.l.b16 %v3145
      %v3213 = vunpack.c.l.b16 %v3146
      %v3214 = vunpack.c.l.b16 %v3147
      %v3215 = vpack.c.b16 %v3184, %v3183
      %v3216 = vpack.c.b16 %v3186, %v3185
      %v3217 = vpack.c.b16 %v3188, %v3187
      %v3218 = vpack.c.b16 %v3190, %v3189
      %v3219 = vpack.c.b16 %v3192, %v3191
      %v3220 = vpack.c.b16 %v3194, %v3193
      %v3221 = vpack.c.b16 %v3196, %v3195
      %v3222 = vpack.c.b16 %v3198, %v3197
      %v3223 = vpack.c.b16 %v3200, %v3199
      %v3224 = vpack.c.b16 %v3202, %v3201
      %v3225 = vpack.c.b16 %v3204, %v3203
      %v3226 = vpack.c.b16 %v3206, %v3205
      %v3227 = vpack.c.b16 %v3208, %v3207
      %v3228 = vpack.c.b16 %v3210, %v3209
      %v3229 = vpack.c.b16 %v3212, %v3211
      %v3230 = vpack.c.b16 %v3214, %v3213
      %3247 = vmatpush.bf16.msra.mxu0 %v3222
      %3248 = vmatpush.bf16.msra.mxu0 %v3221
      %3249 = vmatpush.bf16.msra.mxu0 %v3220
      %3250 = vmatpush.bf16.msra.mxu0 %v3219
      %3251 = vmatpush.bf16.msra.mxu0 %v3218
      %3252 = vmatpush.bf16.msra.mxu0 %v3217
      %3253 = vmatpush.bf16.msra.mxu0 %v3216
      %3254 = vmatpush.bf16.msra.mxu0 %v3215
      %3255 = vmatmul.bf16.gmra.mxu0 %v3084
      %v3256 = vpop.f32.mrf.mxu0
      %v3257 = vadd.f32 %v3149, %v3256
      %v3258 = vpop.f32.mrf.mxu0
      %v3259 = vadd.f32 %v3149, %v3258
      %3260 = vmatmul.bf16.gmra.mxu0 %v3086
      %v3261 = vpop.f32.mrf.mxu0
      %v3262 = vadd.f32 %v3149, %v3261
      %v3263 = vpop.f32.mrf.mxu0
      %v3264 = vadd.f32 %v3149, %v3263
      %3265 = vmatmul.bf16.gmra.mxu0 %v3088
      %v3266 = vpop.f32.mrf.mxu0
      %v3267 = vadd.f32 %v3149, %v3266
      %v3268 = vpop.f32.mrf.mxu0
      %v3269 = vadd.f32 %v3149, %v3268
      %3270 = vmatmul.bf16.gmra.mxu0 %v3090
      %v3271 = vpop.f32.mrf.mxu0
      %v3272 = vadd.f32 %v3149, %v3271
      %v3273 = vpop.f32.mrf.mxu0
      %v3274 = vadd.f32 %v3149, %v3273
      %3275 = vmatmul.bf16.gmra.mxu0 %v3092
      %v3276 = vpop.f32.mrf.mxu0
      %v3277 = vadd.f32 %v3149, %v3276
      %v3278 = vpop.f32.mrf.mxu0
      %v3279 = vadd.f32 %v3149, %v3278
      %3280 = vmatmul.bf16.gmra.mxu0 %v3094
      %v3281 = vpop.f32.mrf.mxu0
      %v3282 = vadd.f32 %v3149, %v3281
      %v3283 = vpop.f32.mrf.mxu0
      %v3284 = vadd.f32 %v3149, %v3283
      %3285 = vmatmul.bf16.gmra.mxu0 %v3096
      %v3286 = vpop.f32.mrf.mxu0
      %v3287 = vadd.f32 %v3149, %v3286
      %v3288 = vpop.f32.mrf.mxu0
      %v3289 = vadd.f32 %v3149, %v3288
      %3290 = vmatmul.bf16.gmra.mxu0 %v3098
      %v3291 = vpop.f32.mrf.mxu0
      %v3292 = vadd.f32 %v3149, %v3291
      %v3293 = vpop.f32.mrf.mxu0
      %v3294 = vadd.f32 %v3149, %v3293
      %3295 = vmatmul.bf16.gmra.mxu0 %v3100
      %v3296 = vpop.f32.mrf.mxu0
      %v3297 = vadd.f32 %v3149, %v3296
      %v3298 = vpop.f32.mrf.mxu0
      %v3299 = vadd.f32 %v3149, %v3298
      %3300 = vmatmul.bf16.gmra.mxu0 %v3102
      %v3301 = vpop.f32.mrf.mxu0
      %v3302 = vadd.f32 %v3149, %v3301
      %v3303 = vpop.f32.mrf.mxu0
      %v3304 = vadd.f32 %v3149, %v3303
      %3305 = vmatmul.bf16.gmra.mxu0 %v3104
      %v3306 = vpop.f32.mrf.mxu0
      %v3307 = vadd.f32 %v3149, %v3306
      %v3308 = vpop.f32.mrf.mxu0
      %v3309 = vadd.f32 %v3149, %v3308
      %3310 = vmatmul.bf16.gmra.mxu0 %v3106
      %v3311 = vpop.f32.mrf.mxu0
      %v3312 = vadd.f32 %v3149, %v3311
      %v3313 = vpop.f32.mrf.mxu0
      %v3314 = vadd.f32 %v3149, %v3313
      %3315 = vmatmul.bf16.gmra.mxu0 %v3108
      %v3316 = vpop.f32.mrf.mxu0
      %v3317 = vadd.f32 %v3149, %v3316
      %v3318 = vpop.f32.mrf.mxu0
      %v3319 = vadd.f32 %v3149, %v3318
      %3320 = vmatmul.bf16.gmra.mxu0 %v3110
      %v3321 = vpop.f32.mrf.mxu0
      %v3322 = vadd.f32 %v3149, %v3321
      %v3323 = vpop.f32.mrf.mxu0
      %v3324 = vadd.f32 %v3149, %v3323
      %3325 = vmatmul.bf16.gmra.mxu0 %v3112
      %v3326 = vpop.f32.mrf.mxu0
      %v3327 = vadd.f32 %v3149, %v3326
      %v3328 = vpop.f32.mrf.mxu0
      %v3329 = vadd.f32 %v3149, %v3328
      %3330 = vmatmul.bf16.gmra.mxu0 %v3114
      %v3331 = vpop.f32.mrf.mxu0
      %v3332 = vadd.f32 %v3149, %v3331
      %v3333 = vpop.f32.mrf.mxu0
      %v3334 = vadd.f32 %v3149, %v3333
      %3335 = vdwg.mxu0
      %3336 = vmatpush.bf16.msra.mxu0 %v3230
      %3337 = vmatpush.bf16.msra.mxu0 %v3229
      %3338 = vmatpush.bf16.msra.mxu0 %v3228
      %3339 = vmatpush.bf16.msra.mxu0 %v3227
      %3340 = vmatpush.bf16.msra.mxu0 %v3226
      %3341 = vmatpush.bf16.msra.mxu0 %v3225
      %3342 = vmatpush.bf16.msra.mxu0 %v3224
      %3343 = vmatpush.bf16.msra.mxu0 %v3223
      %3344 = vmatmul.bf16.gmra.mxu0 %v3085
      %v3345 = vpop.f32.mrf.mxu0
      %v3346 = vadd.f32 %v3257, %v3345
      %v3347 = vpop.f32.mrf.mxu0
      %v3348 = vadd.f32 %v3259, %v3347
      %3349 = vmatmul.bf16.gmra.mxu0 %v3087
      %v3350 = vpop.f32.mrf.mxu0
      %v3351 = vadd.f32 %v3262, %v3350
      %v3352 = vpop.f32.mrf.mxu0
      %v3353 = vadd.f32 %v3264, %v3352
      %3354 = vmatmul.bf16.gmra.mxu0 %v3089
      %v3355 = vpop.f32.mrf.mxu0
      %v3356 = vadd.f32 %v3267, %v3355
      %v3357 = vpop.f32.mrf.mxu0
      %v3358 = vadd.f32 %v3269, %v3357
      %3359 = vmatmul.bf16.gmra.mxu0 %v3091
      %v3360 = vpop.f32.mrf.mxu0
      %v3361 = vadd.f32 %v3272, %v3360
      %v3362 = vpop.f32.mrf.mxu0
      %v3363 = vadd.f32 %v3274, %v3362
      %3364 = vmatmul.bf16.gmra.mxu0 %v3093
      %v3365 = vpop.f32.mrf.mxu0
      %v3366 = vadd.f32 %v3277, %v3365
      %v3367 = vpop.f32.mrf.mxu0
      %v3368 = vadd.f32 %v3279, %v3367
      %3369 = vmatmul.bf16.gmra.mxu0 %v3095
      %v3370 = vpop.f32.mrf.mxu0
      %v3371 = vadd.f32 %v3282, %v3370
      %v3372 = vpop.f32.mrf.mxu0
      %v3373 = vadd.f32 %v3284, %v3372
      %3374 = vmatmul.bf16.gmra.mxu0 %v3097
      %v3375 = vpop.f32.mrf.mxu0
      %v3376 = vadd.f32 %v3287, %v3375
      %v3377 = vpop.f32.mrf.mxu0
      %v3378 = vadd.f32 %v3289, %v3377
      %3379 = vmatmul.bf16.gmra.mxu0 %v3099
      %v3380 = vpop.f32.mrf.mxu0
      %v3381 = vadd.f32 %v3292, %v3380
      %v3382 = vpop.f32.mrf.mxu0
      %v3383 = vadd.f32 %v3294, %v3382
      %3384 = vmatmul.bf16.gmra.mxu0 %v3101
      %v3385 = vpop.f32.mrf.mxu0
      %v3386 = vadd.f32 %v3297, %v3385
      %v3387 = vpop.f32.mrf.mxu0
      %v3388 = vadd.f32 %v3299, %v3387
      %3389 = vmatmul.bf16.gmra.mxu0 %v3103
      %v3390 = vpop.f32.mrf.mxu0
      %v3391 = vadd.f32 %v3302, %v3390
      %v3392 = vpop.f32.mrf.mxu0
      %v3393 = vadd.f32 %v3304, %v3392
      %3394 = vmatmul.bf16.gmra.mxu0 %v3105
      %v3395 = vpop.f32.mrf.mxu0
      %v3396 = vadd.f32 %v3307, %v3395
      %v3397 = vpop.f32.mrf.mxu0
      %v3398 = vadd.f32 %v3309, %v3397
      %3399 = vmatmul.bf16.gmra.mxu0 %v3107
      %v3400 = vpop.f32.mrf.mxu0
      %v3401 = vadd.f32 %v3312, %v3400
      %v3402 = vpop.f32.mrf.mxu0
      %v3403 = vadd.f32 %v3314, %v3402
      %3404 = vmatmul.bf16.gmra.mxu0 %v3109
      %v3405 = vpop.f32.mrf.mxu0
      %v3406 = vadd.f32 %v3317, %v3405
      %v3407 = vpop.f32.mrf.mxu0
      %v3408 = vadd.f32 %v3319, %v3407
      %3409 = vmatmul.bf16.gmra.mxu0 %v3111
      %v3410 = vpop.f32.mrf.mxu0
      %v3411 = vadd.f32 %v3322, %v3410
      %v3412 = vpop.f32.mrf.mxu0
      %v3413 = vadd.f32 %v3324, %v3412
      %3414 = vmatmul.bf16.gmra.mxu0 %v3113
      %v3415 = vpop.f32.mrf.mxu0
      %v3416 = vadd.f32 %v3327, %v3415
      %v3417 = vpop.f32.mrf.mxu0
      %v3418 = vadd.f32 %v3329, %v3417
      %3419 = vmatmul.bf16.gmra.mxu0 %v3115
      %v3420 = vpop.f32.mrf.mxu0
      %v3421 = vadd.f32 %v3332, %v3420
      %v3422 = vpop.f32.mrf.mxu0
      %v3423 = vadd.f32 %v3334, %v3422
      %3424 = vdwg.mxu0
      %v3425 = vadd.f32 %v3346, %v494
      %v3426 = vadd.f32 %v3348, %v495
      %v3427 = vadd.f32 %v3351, %v496
      %v3428 = vadd.f32 %v3353, %v497
      %v3429 = vadd.f32 %v3356, %v498
      %v3430 = vadd.f32 %v3358, %v499
      %v3431 = vadd.f32 %v3361, %v500
      %v3432 = vadd.f32 %v3363, %v501
      %v3433 = vadd.f32 %v3366, %v502
      %v3434 = vadd.f32 %v3368, %v503
      %v3435 = vadd.f32 %v3371, %v504
      %v3436 = vadd.f32 %v3373, %v505
      %v3437 = vadd.f32 %v3376, %v506
      %v3438 = vadd.f32 %v3378, %v507
      %v3439 = vadd.f32 %v3381, %v508
      %v3440 = vadd.f32 %v3383, %v509
      %v3441 = vadd.f32 %v3386, %v510
      %v3442 = vadd.f32 %v3388, %v511
      %v3443 = vadd.f32 %v3391, %v512
      %v3444 = vadd.f32 %v3393, %v513
      %v3445 = vadd.f32 %v3396, %v514
      %v3446 = vadd.f32 %v3398, %v515
      %v3447 = vadd.f32 %v3401, %v516
      %v3448 = vadd.f32 %v3403, %v517
      %v3449 = vadd.f32 %v3406, %v518
      %v3450 = vadd.f32 %v3408, %v519
      %v3451 = vadd.f32 %v3411, %v520
      %v3452 = vadd.f32 %v3413, %v521
      %v3453 = vadd.f32 %v3416, %v522
      %v3454 = vadd.f32 %v3418, %v523
      %v3455 = vadd.f32 %v3421, %v524
      %v3456 = vadd.f32 %v3423, %v525
      %3457 = vst [vmem:[%s488] sm:$0xff] %v3425
      %3458 = vst [vmem:[%s488 + $0x8] sm:$0xff] %v3426
      %3459 = vst [vmem:[%s488 + $0x10] sm:$0xff] %v3427
      %3460 = vst [vmem:[%s488 + $0x18] sm:$0xff] %v3428
      %3461 = vst [vmem:[%s488 + $0x20] sm:$0xff] %v3429
      %3462 = vst [vmem:[%s488 + $0x28] sm:$0xff] %v3430
      %3463 = vst [vmem:[%s488 + $0x30] sm:$0xff] %v3431
      %3464 = vst [vmem:[%s488 + $0x38] sm:$0xff] %v3432
      %3465 = vst [vmem:[%s488 + $0x40] sm:$0xff] %v3433
      %3466 = vst [vmem:[%s488 + $0x48] sm:$0xff] %v3434
      %3467 = vst [vmem:[%s488 + $0x50] sm:$0xff] %v3435
      %3468 = vst [vmem:[%s488 + $0x58] sm:$0xff] %v3436
      %3469 = vst [vmem:[%s488 + $0x60] sm:$0xff] %v3437
      %3470 = vst [vmem:[%s488 + $0x68] sm:$0xff] %v3438
      %3471 = vst [vmem:[%s488 + $0x70] sm:$0xff] %v3439
      %3472 = vst [vmem:[%s488 + $0x78] sm:$0xff] %v3440
      %3473 = vst [vmem:[%s488 + $0x80] sm:$0xff] %v3441
      %3474 = vst [vmem:[%s488 + $0x88] sm:$0xff] %v3442
      %3475 = vst [vmem:[%s488 + $0x90] sm:$0xff] %v3443
      %3476 = vst [vmem:[%s488 + $0x98] sm:$0xff] %v3444
      %3477 = vst [vmem:[%s488 + $0xa0] sm:$0xff] %v3445
      %3478 = vst [vmem:[%s488 + $0xa8] sm:$0xff] %v3446
      %3479 = vst [vmem:[%s488 + $0xb0] sm:$0xff] %v3447
      %3480 = vst [vmem:[%s488 + $0xb8] sm:$0xff] %v3448
      %3481 = vst [vmem:[%s488 + $0xc0] sm:$0xff] %v3449
      %3482 = vst [vmem:[%s488 + $0xc8] sm:$0xff] %v3450
      %3483 = vst [vmem:[%s488 + $0xd0] sm:$0xff] %v3451
      %3484 = vst [vmem:[%s488 + $0xd8] sm:$0xff] %v3452
      %3485 = vst [vmem:[%s488 + $0xe0] sm:$0xff] %v3453
      %3486 = vst [vmem:[%s488 + $0xe8] sm:$0xff] %v3454
      %3487 = vst [vmem:[%s488 + $0xf0] sm:$0xff] %v3455
      %3488 = vst [vmem:[%s488 + $0xf8] sm:$0xff] %v3456
      %s3489 = smul.u32 32, %s25
      %p3490 = scmp.lt.s32.totalorder %s24, 1
      %s3491 = scalar_select %p3490, %s24, 1
      %p3492 = scmp.lt.s32.totalorder %s3489, 63
      %s3493 = scalar_select %p3492, %s3489, 63
      %s3494 = smul.addr %s3491, 64
      %s3495 = sadd.s32 %s3493, %s3494
      %s3496 = smul.addr %s3495, 8
      %s3497 = scalar_lea.vmem %s9, %s3496
      // Predicated region
      $region73: #{convnext_block_1d.1} parent=55 // pred_check
        %p3498 = pneg %p278
      $region74: #{convnext_block_1d.1} parent=55 // pred_check_branch
        %3500 = sbr.rel (%p3498) target = $region76
      $region75: #{convnext_block_1d.1} parent=55 // pred_region
        %s3501 = smul.u32 32, %s25
      $region76: #{convnext_block_1d.1} parent=55 // pred_fallthru
        _
    $region56: #{convnext_block_1d.1} parent=5 // pred_fallthru
      _
    %p3502 = scmp.le.s32.totalorder 2, %s15
    // Predicated region
    $region77: #{convnext_block_1d.1} parent=5 // pred_check
      %p3503 = pneg %p3502
    $region78: #{convnext_block_1d.1} parent=5 // pred_check_branch
      %3505 = sbr.rel (%p3503) target = $region80
    $region79: #{convnext_block_1d.1} parent=5 // pred_region
      %s3506 = ssub.s32 %s15, 2
      // Predicated region
      $region81: #{convnext_block_1d.1} parent=79 // pred_check
        %p3507 = pneg %p284
      $region82: #{convnext_block_1d.1} parent=79 // pred_check_branch
        %3509 = sbr.rel (%p3507) target = $region84
      $region83: #{convnext_block_1d.1} parent=79 // pred_region
        %s3510 = smul.u32 32, %s27
        %p3511 = scmp.lt.s32.totalorder %s26, 1
        %s3512 = scalar_select %p3511, %s26, 1
        %p3513 = scmp.lt.s32.totalorder %s3510, 63
        %s3514 = scalar_select %p3513, %s3510, 63
        %s3515 = smul.addr %s3512, 64
        %s3516 = sadd.s32 %s3514, %s3515
        %s3517 = smul.addr %s3516, 8
        %s3518 = scalar_lea.vmem %s9, %s3517
      $region84: #{convnext_block_1d.1} parent=79 // pred_fallthru
        _
    $region80: #{convnext_block_1d.1} parent=5 // pred_fallthru
      _
  $region6: #{convnext_block_1d.1} parent=0 // loop_footer
    %s19 = sadd.s32 1, %s15
  $region7: #{convnext_block_1d.1} parent=0 // loop_footer_branch
    %14 = sbr.rel target = $region3
  $region8: #{convnext_block_1d.1} parent=0 // loop_exit
    _

</llo_original>
